<compile_context>
chip_gen: v5e
topology: v5e:2x2
jax: 0.10.0
libtpu: 0.0.40
codegen_flags: <defaults>
</compile_context>

<pallas_src>
import functools
from typing import NamedTuple

import numpy as np

import jax
import jax.numpy as jnp
from jax import lax
from jax.experimental import pallas as pl
from jax.experimental.pallas import tpu as pltpu

_EPS = 1e-5          # nn.LayerNorm default eps
_SLOPE = 0.2         # nn.LeakyReLU(0.2)


def _leaky_relu(x):
    return jnp.where(x >= 0, x, _SLOPE * x)


def _layernorm_lastdim(x, gamma, beta):
    mu = jnp.mean(x, axis=-1, keepdims=True)
    d = x - mu
    var = jnp.mean(d * d, axis=-1, keepdims=True)
    return d * lax.rsqrt(var + _EPS) * gamma + beta


class EncCfg(NamedTuple):
    F: int            # num_wav_features
    WH: int           # wav_hidden
    H: int            # gru_hidden
    R: int            # repr_dim
    T: int            # 2*context + 1
    B: int            # batch size baked into the packed slabs
    n_gru: int
    total_steps: int


def _align8(n):
    return ((n + 7) // 8) * 8


def _build_layout(cfg):
    """Static row/column layout of the two packed parameter slabs."""
    GP = max(128, ((2 * cfg.H + 127) // 128) * 128)   # 128-lane pitch per gate block
    W3 = 3 * GP                                       # packed gate axis [r|z|n]
    TB = cfg.T * cfg.B
    WH2 = cfg.WH // 2
    lay = {"GP": GP, "W3": W3, "TB": TB, "WH2": WH2}

    # ---- bf16 weight slab (matmul operands), width W3 ----
    r = 0
    lay["w1"] = r; r += _align8(cfg.F)
    lay["w2"] = r; r += _align8(WH2)
    wih, whh = [], []
    hin = cfg.WH
    for _ in range(cfg.n_gru):
        wih.append((r, hin)); r += _align8(hin)
        whh.append(r); r += GP
        hin = cfg.H
    lay["wih"], lay["whh"] = wih, whh
    wstep = []
    for _ in range(cfg.total_steps):
        wstep.append(r); r += _align8(cfg.H)
    lay["wstep"] = wstep
    lay["w_rows"] = r

    # ---- f32 vector slab (biases / LayerNorm affines), width W3 ----
    v = 0
    lay["front_b"] = v; v += 8                        # rows: b1, g1, bt1, b2
    gru_v = []
    for _ in range(cfg.n_gru):
        gru_v.append(v); v += 8 + 2 * _align8(TB)     # bx,bhn | gamma_full | beta_full
    lay["gru_v"] = gru_v
    step_v = []
    for _ in range(cfg.total_steps):
        step_v.append(v); v += 8                      # rows: b, g, bt
    lay["step_v"] = step_v
    lay["v_rows"] = v
    return lay


# ---------------------------------------------------------------------------
# Host-side parameter packing: raw per-gate params -> two flat slabs
# ---------------------------------------------------------------------------
def pack_params(params, batch_size, compute_dtype=jnp.bfloat16):
    w1 = np.asarray(params["w1"], np.float32)
    F, WH2 = w1.shape
    WH = np.asarray(params["w2"]).shape[1]
    H = np.asarray(params["grus"][0]["whh_f"]).shape[-1]
    R = np.asarray(params["steps"][0]["w"]).shape[1]
    T = np.asarray(params["grus"][0]["gamma"]).shape[0]
    cfg = EncCfg(F=F, WH=WH, H=H, R=R, T=T, B=int(batch_size),
                 n_gru=len(params["grus"]), total_steps=len(params["steps"]))
    lay = _build_layout(cfg)
    GP, W3, TB = lay["GP"], lay["W3"], lay["TB"]

    wslab = np.zeros((lay["w_rows"], W3), np.float32)
    vslab = np.zeros((lay["v_rows"], W3), np.float32)

    # front MLP
    wslab[lay["w1"]:lay["w1"] + F, :WH2] = w1
    wslab[lay["w2"]:lay["w2"] + WH2, :WH] = np.asarray(params["w2"], np.float32)
    fb = lay["front_b"]
    vslab[fb + 0, :WH2] = np.asarray(params["b1"], np.float32).reshape(-1)
    vslab[fb + 1, :WH2] = np.asarray(params["g1"], np.float32).reshape(-1)
    vslab[fb + 2, :WH2] = np.asarray(params["bt1"], np.float32).reshape(-1)
    vslab[fb + 3, :WH] = np.asarray(params["b2"], np.float32).reshape(-1)

    # GRU layers: gate order along the packed axis is [r | z | n], each gate block
    # GP lanes wide with the forward direction at lanes [0:H] and backward at [H:2H].
    for l, lp in enumerate(params["grus"]):
        wih_off, hin = lay["wih"][l]
        whh_off = lay["whh"][l]
        vb = lay["gru_v"][l]
        for g in range(3):
            c = g * GP
            wslab[wih_off:wih_off + hin, c:c + H] = np.asarray(lp["wih_f"][g], np.float32)
            wslab[wih_off:wih_off + hin, c + H:c + 2 * H] = np.asarray(lp["wih_b"][g], np.float32)
            wslab[whh_off:whh_off + H, c:c + H] = np.asarray(lp["whh_f"][g], np.float32)
            wslab[whh_off + H:whh_off + 2 * H, c + H:c + 2 * H] = np.asarray(lp["whh_b"][g], np.float32)
            bf = np.asarray(lp["bih_f"][g], np.float32)
            bb = np.asarray(lp["bih_b"][g], np.float32)
            if g < 2:   # r, z gates: b_ih + b_hh can be pre-summed
                bf = bf + np.asarray(lp["bhh_f"][g], np.float32)
                bb = bb + np.asarray(lp["bhh_b"][g], np.float32)
            vslab[vb + 0, c:c + H] = bf
            vslab[vb + 0, c + H:c + 2 * H] = bb
        # b_hn stays inside the r*(...) term (PyTorch GRU semantics)
        vslab[vb + 1, :H] = np.asarray(lp["bhh_f"][2], np.float32)
        vslab[vb + 1, H:2 * H] = np.asarray(lp["bhh_b"][2], np.float32)
        goff = vb + 8
        boff = vb + 8 + _align8(TB)
        vslab[goff:goff + TB, :H] = np.repeat(np.asarray(lp["gamma"], np.float32),
                                              batch_size, axis=0)
        vslab[boff:boff + TB, :H] = np.repeat(np.asarray(lp["beta"], np.float32),
                                              batch_size, axis=0)

    # step heads
    for s, sp in enumerate(params["steps"]):
        wo = lay["wstep"][s]
        vo = lay["step_v"][s]
        wslab[wo:wo + H, :R] = np.asarray(sp["w"], np.float32)
        vslab[vo + 0, :R] = np.asarray(sp["b"], np.float32).reshape(-1)
        vslab[vo + 1, :R] = np.asarray(sp["g"], np.float32).reshape(-1)
        vslab[vo + 2, :R] = np.asarray(sp["bt"], np.float32).reshape(-1)

    return jnp.asarray(wslab, compute_dtype), jnp.asarray(vslab, jnp.float32), cfg


# ---------------------------------------------------------------------------
# Single fused kernel
# ---------------------------------------------------------------------------
def _fused_audio_encoder_kernel(x_ref, w_ref, v_ref, o_ref, *,
                                cfg, lay, n_steps, audio_residual, compute_dtype):
    F, WH, H, R, T, B = cfg.F, cfg.WH, cfg.H, cfg.R, cfg.T, cfg.B
    WH2, GP, W3, TB = lay["WH2"], lay["GP"], lay["W3"], lay["TB"]

    def mm(a, b):   # bf16 (or f32) operands, f32 accumulation on the MXU
        return jnp.dot(a.astype(compute_dtype), b, preferred_element_type=jnp.float32)

    def wblk(off, rows, cols=None):
        blk = w_ref[pl.ds(off, rows), :]
        return blk if cols is None else blk[:, :cols]

    def vblk(off, rows, cols=None):
        blk = v_ref[pl.ds(off, rows), :]
        return blk if cols is None else blk[:, :cols]

    # ---- front MLP, batched over all T*B rows (one matmul per Linear) ----
    w1 = wblk(lay["w1"], F, WH2)
    w2 = wblk(lay["w2"], WH2, WH)
    fb = lay["front_b"]
    b1, g1, bt1 = vblk(fb, 1, WH2), vblk(fb + 1, 1, WH2), vblk(fb + 2, 1, WH2)
    b2 = vblk(fb + 3, 1, WH)
    h = mm(x_ref[...], w1) + b1
    h = _leaky_relu(_layernorm_lastdim(h, g1, bt1))
    X = mm(h, w2) + b2                                       # (T*B, WH), f32

    # lanes of each GP-wide gate block belonging to the forward direction
    lane = lax.broadcasted_iota(jnp.int32, (B, W3), 1)
    take_fwd = (lane % GP) < H

    # ---- bidirectional GRU layers, fwd+bwd sum, LayerNorm over (T, H) ----
    for l in range(cfg.n_gru):
        wih_off, hin = lay["wih"][l]
        wih = wblk(wih_off, hin)                             # (Hin, 3*GP)
        whh = wblk(lay["whh"][l], GP)                        # (GP,  3*GP) block-diagonal
        vb = lay["gru_v"][l]
        bx = vblk(vb, 1)                                     # (1, 3*GP)
        bhn = jnp.broadcast_to(vblk(vb + 1, 1, GP), (B, GP))  # hoisted broadcast
        gamma = vblk(vb + 8, TB, H)                          # (T*B, H)
        beta = vblk(vb + 8 + _align8(TB), TB, H)

        # hoisted input projection: every timestep, both directions, one matmul
        XP = mm(X, wih) + bx                                 # (T*B, 3*GP)
        xp = [XP[t * B:(t + 1) * B, :] for t in range(T)]
        xg = [jnp.where(take_fwd, xp[i], xp[T - 1 - i]) for i in range(T)]

        # serial recurrence: one (B,GP)x(GP,3GP) hidden matmul per step serves both
        # directions; every gate slice below is whole-vreg (128-lane) aligned.
        hs = [None] * T
        hcur = jnp.zeros((B, GP), jnp.float32)               # [h_fwd | h_bwd | pad]
        for i in range(T):
            hp = mm(hcur, whh)                               # (B, 3*GP)
            rz = jax.nn.sigmoid(xg[i][:, :2 * GP] + hp[:, :2 * GP])
            r, z = rz[:, :GP], rz[:, GP:]
            n = jnp.tanh(xg[i][:, 2 * GP:] + r * (hp[:, 2 * GP:] + bhn))
            hcur = (1.0 - z) * n + z * hcur
            hs[i] = hcur

        # out[:, :, :H] + out[:, :, H:], then nn.LayerNorm((T, H)): per-batch stats
        s = [hs[t][:, :H] + hs[T - 1 - t][:, H:2 * H] for t in range(T)]
        tot = s[0]
        for t in range(1, T):
            tot = tot + s[t]
        cnt = float(T * H)
        mu = jnp.sum(tot, axis=1, keepdims=True) / cnt                 # (B, 1)
        d = [s_t - mu for s_t in s]
        vs = jnp.sum(d[0] * d[0], axis=1, keepdims=True)
        for t in range(1, T):
            vs = vs + jnp.sum(d[t] * d[t], axis=1, keepdims=True)
        inv = lax.rsqrt(vs / cnt + _EPS)                               # (B, 1)
        X = jnp.concatenate([d_t * inv for d_t in d], axis=0) * gamma + beta  # (T*B, H)

    # ---- progressive step heads, batched over all T*B rows ----
    cur = X
    for si in range(n_steps):
        w = wblk(lay["wstep"][si], H, R)
        vo = lay["step_v"][si]
        b, g, bt = vblk(vo, 1, R), vblk(vo + 1, 1, R), vblk(vo + 2, 1, R)
        prev = cur
        hh = _leaky_relu(_layernorm_lastdim(mm(cur, w) + b, g, bt))
        if audio_residual and si > 0:
            hh = hh + prev
        cur = hh
    o_ref[...] = cur                                          # single (T*B, R) store


# ---------------------------------------------------------------------------
# Full forward (single pallas_call)
# ---------------------------------------------------------------------------
@functools.partial(jax.jit, static_argnames=("cfg", "cur_step", "audio_residual"))
def audio_encoder_forward(wav, wslab, vslab, *, cfg, cur_step, audio_residual=True):
    B, T, F = wav.shape
    if (B, T, F) != (cfg.B, cfg.T, cfg.F):
        raise ValueError(f"wav shape {wav.shape} does not match packed cfg {cfg}")
    n_steps = cur_step + 1
    if n_steps > cfg.total_steps:
        raise ValueError("cur_step exceeds total_steps")
    if n_steps > 1 and cfg.R != cfg.H:
        raise ValueError("the step chain (and residual) requires repr_dim == gru_hidden")

    lay = _build_layout(cfg)
    GP, W3, TB = lay["GP"], lay["W3"], lay["TB"]

    x2d = jnp.transpose(wav, (1, 0, 2)).reshape(TB, F)        # time-major (T*B, F)

    # Advisory cost estimate for XLA scheduling around the custom call.
    flops = 2 * TB * (cfg.F * lay["WH2"] + lay["WH2"] * cfg.WH)
    hin = cfg.WH
    for _ in range(cfg.n_gru):
        flops += 2 * TB * hin * W3 + 2 * cfg.T * cfg.B * GP * W3
        hin = cfg.H
    flops += 2 * n_steps * TB * cfg.H * cfg.R
    trans = cfg.n_gru * TB * 3 * GP + (1 + cfg.n_gru + n_steps) * TB
    bytes_accessed = (wav.size + vslab.size + TB * cfg.R) * 4 \
        + wslab.size * wslab.dtype.itemsize

    kernel = functools.partial(
        _fused_audio_encoder_kernel, cfg=cfg, lay=lay, n_steps=n_steps,
        audio_residual=audio_residual, compute_dtype=wslab.dtype)

    out2d = pl.pallas_call(
        kernel,
        out_shape=jax.ShapeDtypeStruct((TB, cfg.R), jnp.float32),
        in_specs=[pl.BlockSpec(memory_space=pltpu.MemorySpace.VMEM)] * 3,
        out_specs=pl.BlockSpec(memory_space=pltpu.MemorySpace.VMEM),
        cost_estimate=pl.CostEstimate(flops=int(flops), transcendentals=int(trans),
                                      bytes_accessed=int(bytes_accessed)),
    )(x2d, wslab, vslab)

    final = jnp.transpose(out2d.reshape(T, B, cfg.R), (1, 0, 2))   # (B, T, R)
    # NOTE: the PyTorch code builds `latents` via empty_like(out).unsqueeze(0)
    # .expand(...), a stride-0 view, so every `latents[idx] = out` write aliases the
    # SAME buffer; the residual read latents[idx-1] is the previous step's output,
    # but the returned tensor contains cur_step+1 identical copies of the FINAL
    # step output.  We reproduce that exactly.
    return jnp.broadcast_to(final[:, None, :, :], (B, n_steps, T, cfg.R))


# ---------------------------------------------------------------------------
# Pure-JAX reference (raw params, direct PyTorch semantics) for validation.
# matmul_dtype lets us build a precision-matched (bf16-operand) baseline.
# ---------------------------------------------------------------------------
def reference_forward(wav, params, cur_step, audio_residual=True,
                      matmul_dtype=jnp.float32):
    use_f32 = np.dtype(matmul_dtype) == np.dtype(np.float32)

    def rmm(a, b):
        if use_f32:
            return jnp.matmul(a, b, precision=lax.Precision.HIGHEST)
        return jnp.matmul(a.astype(matmul_dtype), b.astype(matmul_dtype),
                          preferred_element_type=jnp.float32)

    B, T, _ = wav.shape
    out = rmm(wav, params["w1"]) + params["b1"]
    out = _leaky_relu(_layernorm_lastdim(out, params["g1"], params["bt1"]))
    out = rmm(out, params["w2"]) + params["b2"]                # (B, T, WH)

    for lp in params["grus"]:
        H = lp["whh_f"].shape[-1]
        x_tm = jnp.transpose(out, (1, 0, 2))                   # (T, B, Hin)

        def run_dir(wih, whh, bih, bhh, reverse):
            seq = x_tm[::-1] if reverse else x_tm

            def step(hprev, x_t):
                r = jax.nn.sigmoid(rmm(x_t, wih[0]) + bih[0] + rmm(hprev, whh[0]) + bhh[0])
                zg = jax.nn.sigmoid(rmm(x_t, wih[1]) + bih[1] + rmm(hprev, whh[1]) + bhh[1])
                n = jnp.tanh(rmm(x_t, wih[2]) + bih[2] + r * (rmm(hprev, whh[2]) + bhh[2]))
                hnew = (1.0 - zg) * n + zg * hprev
                return hnew, hnew

            _, ys = lax.scan(step, jnp.zeros((B, H), jnp.float32), seq)
            if reverse:
                ys = ys[::-1]
            return jnp.transpose(ys, (1, 0, 2))                # (B, T, H)

        s = (run_dir(lp["wih_f"], lp["whh_f"], lp["bih_f"], lp["bhh_f"], False)
             + run_dir(lp["wih_b"], lp["whh_b"], lp["bih_b"], lp["bhh_b"], True))
        mu = jnp.mean(s, axis=(1, 2), keepdims=True)
        var = jnp.mean((s - mu) ** 2, axis=(1, 2), keepdims=True)
        out = (s - mu) * lax.rsqrt(var + _EPS) * lp["gamma"][None] + lp["beta"][None]

    for idx in range(cur_step + 1):
        sp = params["steps"][idx]
        prev = out
        out = _leaky_relu(_layernorm_lastdim(rmm(out, sp["w"]) + sp["b"],
                                             sp["g"], sp["bt"]))
        if audio_residual and idx > 0:
            out = out + prev
    R = out.shape[-1]
    return jnp.broadcast_to(out[:, None, :, :], (B, cur_step + 1, T, R))


# ---------------------------------------------------------------------------
# Deterministic synthetic parameters (shapes from AudioEncoder.__init__)
# ---------------------------------------------------------------------------
def init_params(key, num_wav_features, T, wav_hidden, gru_hidden, repr_dim,
                num_wav_gru, total_steps):
    keys = iter(jax.random.split(key, 128))

    def rnd(shape, scale=0.1):
        return scale * jax.random.normal(next(keys), shape, dtype=jnp.float32)

    half = wav_hidden // 2
    params = {
        "w1": rnd((num_wav_features, half)), "b1": rnd((1, half)),
        "g1": 1.0 + rnd((1, half)), "bt1": rnd((1, half)),
        "w2": rnd((half, wav_hidden)), "b2": rnd((1, wav_hidden)),
    }
    grus = []
    hin = wav_hidden
    for _ in range(num_wav_gru):
        grus.append({
            # gate order along leading axis: [r, z, n] (PyTorch nn.GRU convention)
            "wih_f": rnd((3, hin, gru_hidden)),
            "whh_f": rnd((3, gru_hidden, gru_hidden)),
            "bih_f": rnd((3, gru_hidden)), "bhh_f": rnd((3, gru_hidden)),
            "wih_b": rnd((3, hin, gru_hidden)),
            "whh_b": rnd((3, gru_hidden, gru_hidden)),
            "bih_b": rnd((3, gru_hidden)), "bhh_b": rnd((3, gru_hidden)),
            "gamma": 1.0 + rnd((T, gru_hidden)),
            "beta": rnd((T, gru_hidden)),
        })
        hin = gru_hidden
    params["grus"] = grus
    params["steps"] = [{
        "w": rnd((gru_hidden, repr_dim)), "b": rnd((1, repr_dim)),
        "g": 1.0 + rnd((1, repr_dim)), "bt": rnd((1, repr_dim)),
    } for _ in range(total_steps)]
    return params


if __name__ == "__main__":
    B = 2
    context = 3
    T = 2 * context + 1          # total_wav_sequence = 7
    num_wav_features = 16
    wav_hidden = 32
    gru_hidden = 32
    repr_dim = 32                # must equal gru_hidden (step chain reuses the width)
    num_wav_gru = 2
    total_steps = 3
    cur_step = 2
    audio_residual = True

    key = jax.random.PRNGKey(0)
    pkey, xkey = jax.random.split(key)
    params = init_params(pkey, num_wav_features, T, wav_hidden, gru_hidden,
                         repr_dim, num_wav_gru, total_steps)
    wav = jax.random.normal(xkey, (B, T, num_wav_features), dtype=jnp.float32)

    wslab, vslab, cfg = pack_params(params, batch_size=B,
                                    compute_dtype=jnp.bfloat16)
    latents = audio_encoder_forward(wav, wslab, vslab, cfg=cfg,
                                    cur_step=cur_step,
                                    audio_residual=audio_residual)
    latents = jax.block_until_ready(latents)

    assert latents.shape == (B, cur_step + 1, T, repr_dim), latents.shape
    assert bool(jnp.all(jnp.isfinite(latents)))

    # Tight check against a reference with identical MXU precision (bf16 operands,
    # f32 accumulation): validates the slab packing, gate math and LayerNorms.
    ref_matched = reference_forward(wav, params, cur_step, audio_residual,
                                    matmul_dtype=jnp.bfloat16)
    err_matched = float(jnp.max(jnp.abs(latents - ref_matched)))
    assert err_matched < 1e-2, f"kernel vs matched-precision ref: {err_matched}"

    # Loose sanity bound against the full-f32 PyTorch-equivalent reference
    # (difference is purely the bf16 MXU operand quantization).
    ref_f32 = reference_forward(wav, params, cur_step, audio_residual,
                                matmul_dtype=jnp.float32)
    err_f32 = float(jnp.max(jnp.abs(latents - ref_f32)))
    assert err_f32 < 2e-1, f"kernel vs f32 ref: {err_f32}"

    print("KERNEL_OK")
</pallas_src>

<mosaic_0001>
module attributes {stable_mosaic.version = 11 : i64} {
  func.func @_fused_audio_encoder_kernel(%arg0: memref<14x16xf32, #tpu.memory_space<vmem>>, %arg1: memref<448x384xbf16, #tpu.memory_space<vmem>>, %arg2: memref<112x384xf32, #tpu.memory_space<vmem>>, %arg3: memref<14x32xf32, #tpu.memory_space<vmem>>) attributes {dimension_semantics = [], scalar_prefetch = 0 : i64, scratch_operands = 0 : i64, tpu.core_type = #tpu.core_type<tc>} {
    %c0 = arith.constant 0 : index
    %c0_0 = arith.constant 0 : index
    %0 = vector.load %arg1[%c0, %c0_0] : memref<448x384xbf16, #tpu.memory_space<vmem>>, vector<16x384xbf16>
    %1 = vector.extract_strided_slice %0 {offsets = [0, 0], sizes = [16, 16], strides = [1, 1]} : vector<16x384xbf16> to vector<16x16xbf16>
    %c16 = arith.constant 16 : index
    %c0_1 = arith.constant 0 : index
    %2 = vector.load %arg1[%c16, %c0_1] : memref<448x384xbf16, #tpu.memory_space<vmem>>, vector<16x384xbf16>
    %3 = vector.extract_strided_slice %2 {offsets = [0, 0], sizes = [16, 32], strides = [1, 1]} : vector<16x384xbf16> to vector<16x32xbf16>
    %c0_2 = arith.constant 0 : index
    %c0_3 = arith.constant 0 : index
    %4 = vector.load %arg2[%c0_2, %c0_3] : memref<112x384xf32, #tpu.memory_space<vmem>>, vector<1x384xf32>
    %5 = vector.extract_strided_slice %4 {offsets = [0, 0], sizes = [1, 16], strides = [1, 1]} : vector<1x384xf32> to vector<1x16xf32>
    %c1 = arith.constant 1 : index
    %c0_4 = arith.constant 0 : index
    %6 = vector.load %arg2[%c1, %c0_4] : memref<112x384xf32, #tpu.memory_space<vmem>>, vector<1x384xf32>
    %7 = vector.extract_strided_slice %6 {offsets = [0, 0], sizes = [1, 16], strides = [1, 1]} : vector<1x384xf32> to vector<1x16xf32>
    %c2 = arith.constant 2 : index
    %c0_5 = arith.constant 0 : index
    %8 = vector.load %arg2[%c2, %c0_5] : memref<112x384xf32, #tpu.memory_space<vmem>>, vector<1x384xf32>
    %9 = vector.extract_strided_slice %8 {offsets = [0, 0], sizes = [1, 16], strides = [1, 1]} : vector<1x384xf32> to vector<1x16xf32>
    %c3 = arith.constant 3 : index
    %c0_6 = arith.constant 0 : index
    %10 = vector.load %arg2[%c3, %c0_6] : memref<112x384xf32, #tpu.memory_space<vmem>>, vector<1x384xf32>
    %11 = vector.extract_strided_slice %10 {offsets = [0, 0], sizes = [1, 32], strides = [1, 1]} : vector<1x384xf32> to vector<1x32xf32>
    %c0_7 = arith.constant 0 : index
    %c0_8 = arith.constant 0 : index
    %12 = vector.load %arg0[%c0_7, %c0_8] : memref<14x16xf32, #tpu.memory_space<vmem>>, vector<14x16xf32>
    %13 = arith.truncf %12 : vector<14x16xf32> to vector<14x16xbf16>
    %cst = arith.constant dense<0.000000e+00> : vector<14x16xf32>
    %14 = tpu.matmul %13, %1, %cst {dimension_numbers = #tpu.dot_dimension_numbers<[1], [0], [0], [1], [0, 0, 1, 1], [], []>} : vector<14x16xbf16>, vector<16x16xbf16>, vector<14x16xf32> -> vector<14x16xf32>
    %15 = vector.broadcast %5 : vector<1x16xf32> to vector<14x16xf32>
    %16 = arith.addf %14, %15 : vector<14x16xf32>
    %cst_9 = arith.constant dense<0.000000e+00> : vector<14xf32>
    %17 = vector.multi_reduction <add>, %16, %cst_9 [1] : vector<14x16xf32> to vector<14xf32>
    %18 = vector.shape_cast %17 : vector<14xf32> to vector<14x1xf32>
    %cst_10 = arith.constant 1.600000e+01 : f32
    %19 = vector.broadcast %cst_10 : f32 to vector<14x1xf32>
    %20 = arith.divf %18, %19 : vector<14x1xf32>
    %21 = vector.broadcast %20 : vector<14x1xf32> to vector<14x16xf32>
    %22 = arith.subf %16, %21 : vector<14x16xf32>
    %23 = arith.mulf %22, %22 : vector<14x16xf32>
    %cst_11 = arith.constant dense<0.000000e+00> : vector<14xf32>
    %24 = vector.multi_reduction <add>, %23, %cst_11 [1] : vector<14x16xf32> to vector<14xf32>
    %25 = vector.shape_cast %24 : vector<14xf32> to vector<14x1xf32>
    %cst_12 = arith.constant 1.600000e+01 : f32
    %26 = vector.broadcast %cst_12 : f32 to vector<14x1xf32>
    %27 = arith.divf %25, %26 : vector<14x1xf32>
    %cst_13 = arith.constant 9.99999974E-6 : f32
    %28 = vector.broadcast %cst_13 : f32 to vector<14x1xf32>
    %29 = arith.addf %27, %28 : vector<14x1xf32>
    %30 = math.rsqrt %29 : vector<14x1xf32>
    %31 = vector.broadcast %30 : vector<14x1xf32> to vector<14x16xf32>
    %32 = arith.mulf %22, %31 : vector<14x16xf32>
    %33 = vector.broadcast %7 : vector<1x16xf32> to vector<14x16xf32>
    %34 = arith.mulf %32, %33 : vector<14x16xf32>
    %35 = vector.broadcast %9 : vector<1x16xf32> to vector<14x16xf32>
    %36 = arith.addf %34, %35 : vector<14x16xf32>
    %cst_14 = arith.constant 0.000000e+00 : f32
    %37 = vector.broadcast %cst_14 : f32 to vector<14x16xf32>
    %38 = arith.cmpf oge, %36, %37 : vector<14x16xf32>
    %cst_15 = arith.constant 2.000000e-01 : f32
    %39 = vector.broadcast %cst_15 : f32 to vector<14x16xf32>
    %40 = arith.mulf %39, %36 : vector<14x16xf32>
    %41 = arith.select %38, %36, %40 : vector<14x16xi1>, vector<14x16xf32>
    %42 = arith.truncf %41 : vector<14x16xf32> to vector<14x16xbf16>
    %cst_16 = arith.constant dense<0.000000e+00> : vector<14x32xf32>
    %43 = tpu.matmul %42, %3, %cst_16 {dimension_numbers = #tpu.dot_dimension_numbers<[1], [0], [0], [1], [0, 0, 1, 1], [], []>} : vector<14x16xbf16>, vector<16x32xbf16>, vector<14x32xf32> -> vector<14x32xf32>
    %44 = vector.broadcast %11 : vector<1x32xf32> to vector<14x32xf32>
    %45 = arith.addf %43, %44 : vector<14x32xf32>
    %46 = tpu.iota {dimensions = array<i32: 1>} : vector<2x384xi32>
    %c128_i32 = arith.constant 128 : i32
    %c0_i32 = arith.constant 0 : i32
    %47 = arith.cmpi eq, %c128_i32, %c0_i32 : i32
    %c1_i32 = arith.constant 1 : i32
    %48 = arith.select %47, %c1_i32, %c128_i32 : i32
    %49 = vector.broadcast %48 : i32 to vector<2x384xi32>
    %50 = arith.remsi %46, %49 : vector<2x384xi32>
    %c0_i32_17 = arith.constant 0 : i32
    %51 = vector.broadcast %c0_i32_17 : i32 to vector<2x384xi32>
    %52 = arith.cmpi ne, %50, %51 : vector<2x384xi32>
    %c0_i32_18 = arith.constant 0 : i32
    %53 = vector.broadcast %c0_i32_18 : i32 to vector<2x384xi32>
    %54 = arith.cmpi slt, %50, %53 : vector<2x384xi32>
    %c0_i32_19 = arith.constant 0 : i32
    %55 = arith.cmpi slt, %48, %c0_i32_19 : i32
    %56 = vector.broadcast %55 : i1 to vector<2x384xi1>
    %57 = vector.broadcast %56 : vector<2x384xi1> to vector<2x384xi1>
    %58 = arith.xori %54, %57 : vector<2x384xi1>
    %59 = arith.andi %58, %52 : vector<2x384xi1>
    %60 = vector.broadcast %48 : i32 to vector<2x384xi32>
    %61 = arith.addi %50, %60 : vector<2x384xi32>
    %62 = arith.select %59, %61, %50 : vector<2x384xi1>, vector<2x384xi32>
    %c32_i32 = arith.constant 32 : i32
    %63 = vector.broadcast %c32_i32 : i32 to vector<2x384xi32>
    %64 = arith.cmpi slt, %62, %63 : vector<2x384xi32>
    %c32 = arith.constant 32 : index
    %c0_20 = arith.constant 0 : index
    %65 = vector.load %arg1[%c32, %c0_20] : memref<448x384xbf16, #tpu.memory_space<vmem>>, vector<32x384xbf16>
    %c64 = arith.constant 64 : index
    %c0_21 = arith.constant 0 : index
    %66 = vector.load %arg1[%c64, %c0_21] : memref<448x384xbf16, #tpu.memory_space<vmem>>, vector<128x384xbf16>
    %c8 = arith.constant 8 : index
    %c0_22 = arith.constant 0 : index
    %67 = vector.load %arg2[%c8, %c0_22] : memref<112x384xf32, #tpu.memory_space<vmem>>, vector<1x384xf32>
    %c9 = arith.constant 9 : index
    %c0_23 = arith.constant 0 : index
    %68 = vector.load %arg2[%c9, %c0_23] : memref<112x384xf32, #tpu.memory_space<vmem>>, vector<1x384xf32>
    %69 = vector.extract_strided_slice %68 {offsets = [0, 0], sizes = [1, 128], strides = [1, 1]} : vector<1x384xf32> to vector<1x128xf32>
    %70 = vector.shape_cast %69 : vector<1x128xf32> to vector<1x128xf32>
    %71 = vector.broadcast %70 : vector<1x128xf32> to vector<2x128xf32>
    %c16_24 = arith.constant 16 : index
    %c0_25 = arith.constant 0 : index
    %72 = vector.load %arg2[%c16_24, %c0_25] : memref<112x384xf32, #tpu.memory_space<vmem>>, vector<14x384xf32>
    %73 = vector.extract_strided_slice %72 {offsets = [0, 0], sizes = [14, 32], strides = [1, 1]} : vector<14x384xf32> to vector<14x32xf32>
    %c32_26 = arith.constant 32 : index
    %c0_27 = arith.constant 0 : index
    %74 = vector.load %arg2[%c32_26, %c0_27] : memref<112x384xf32, #tpu.memory_space<vmem>>, vector<14x384xf32>
    %75 = vector.extract_strided_slice %74 {offsets = [0, 0], sizes = [14, 32], strides = [1, 1]} : vector<14x384xf32> to vector<14x32xf32>
    %76 = arith.truncf %45 : vector<14x32xf32> to vector<14x32xbf16>
    %cst_28 = arith.constant dense<0.000000e+00> : vector<14x384xf32>
    %77 = tpu.matmul %76, %65, %cst_28 {dimension_numbers = #tpu.dot_dimension_numbers<[1], [0], [0], [1], [0, 0, 1, 1], [], []>} : vector<14x32xbf16>, vector<32x384xbf16>, vector<14x384xf32> -> vector<14x384xf32>
    %78 = vector.broadcast %67 : vector<1x384xf32> to vector<14x384xf32>
    %79 = arith.addf %77, %78 : vector<14x384xf32>
    %80 = vector.extract_strided_slice %79 {offsets = [0, 0], sizes = [2, 384], strides = [1, 1]} : vector<14x384xf32> to vector<2x384xf32>
    %81 = vector.extract_strided_slice %79 {offsets = [2, 0], sizes = [2, 384], strides = [1, 1]} : vector<14x384xf32> to vector<2x384xf32>
    %82 = vector.extract_strided_slice %79 {offsets = [4, 0], sizes = [2, 384], strides = [1, 1]} : vector<14x384xf32> to vector<2x384xf32>
    %83 = vector.extract_strided_slice %79 {offsets = [6, 0], sizes = [2, 384], strides = [1, 1]} : vector<14x384xf32> to vector<2x384xf32>
    %84 = vector.extract_strided_slice %79 {offsets = [8, 0], sizes = [2, 384], strides = [1, 1]} : vector<14x384xf32> to vector<2x384xf32>
    %85 = vector.extract_strided_slice %79 {offsets = [10, 0], sizes = [2, 384], strides = [1, 1]} : vector<14x384xf32> to vector<2x384xf32>
    %86 = vector.extract_strided_slice %79 {offsets = [12, 0], sizes = [2, 384], strides = [1, 1]} : vector<14x384xf32> to vector<2x384xf32>
    %87 = arith.select %64, %80, %86 : vector<2x384xi1>, vector<2x384xf32>
    %88 = arith.select %64, %81, %85 : vector<2x384xi1>, vector<2x384xf32>
    %89 = arith.select %64, %82, %84 : vector<2x384xi1>, vector<2x384xf32>
    %90 = arith.select %64, %83, %83 : vector<2x384xi1>, vector<2x384xf32>
    %91 = arith.select %64, %84, %82 : vector<2x384xi1>, vector<2x384xf32>
    %92 = arith.select %64, %85, %81 : vector<2x384xi1>, vector<2x384xf32>
    %93 = arith.select %64, %86, %80 : vector<2x384xi1>, vector<2x384xf32>
    %cst_29 = arith.constant 0.000000e+00 : f32
    %94 = vector.broadcast %cst_29 : f32 to vector<2x128xf32>
    %95 = arith.truncf %94 : vector<2x128xf32> to vector<2x128xbf16>
    %cst_30 = arith.constant dense<0.000000e+00> : vector<2x384xf32>
    %96 = tpu.matmul %95, %66, %cst_30 {dimension_numbers = #tpu.dot_dimension_numbers<[1], [0], [0], [1], [0, 0, 1, 1], [], []>} : vector<2x128xbf16>, vector<128x384xbf16>, vector<2x384xf32> -> vector<2x384xf32>
    %97 = vector.extract_strided_slice %87 {offsets = [0, 0], sizes = [2, 256], strides = [1, 1]} : vector<2x384xf32> to vector<2x256xf32>
    %98 = vector.extract_strided_slice %96 {offsets = [0, 0], sizes = [2, 256], strides = [1, 1]} : vector<2x384xf32> to vector<2x256xf32>
    %99 = arith.addf %97, %98 : vector<2x256xf32>
    %100 = arith.negf %99 : vector<2x256xf32>
    %101 = math.exp %100 : vector<2x256xf32>
    %cst_31 = arith.constant 1.000000e+00 : f32
    %102 = vector.broadcast %cst_31 : f32 to vector<2x256xf32>
    %103 = arith.addf %102, %101 : vector<2x256xf32>
    %104 = arith.divf %102, %103 : vector<2x256xf32>
    %105 = vector.extract_strided_slice %104 {offsets = [0, 0], sizes = [2, 128], strides = [1, 1]} : vector<2x256xf32> to vector<2x128xf32>
    %106 = vector.extract_strided_slice %104 {offsets = [0, 128], sizes = [2, 128], strides = [1, 1]} : vector<2x256xf32> to vector<2x128xf32>
    %107 = vector.extract_strided_slice %87 {offsets = [0, 256], sizes = [2, 128], strides = [1, 1]} : vector<2x384xf32> to vector<2x128xf32>
    %108 = vector.extract_strided_slice %96 {offsets = [0, 256], sizes = [2, 128], strides = [1, 1]} : vector<2x384xf32> to vector<2x128xf32>
    %109 = arith.addf %108, %71 : vector<2x128xf32>
    %110 = arith.mulf %105, %109 : vector<2x128xf32>
    %111 = arith.addf %107, %110 : vector<2x128xf32>
    %112 = math.tanh %111 : vector<2x128xf32>
    %cst_32 = arith.constant 1.000000e+00 : f32
    %113 = vector.broadcast %cst_32 : f32 to vector<2x128xf32>
    %114 = arith.subf %113, %106 : vector<2x128xf32>
    %115 = arith.mulf %114, %112 : vector<2x128xf32>
    %116 = arith.mulf %106, %94 : vector<2x128xf32>
    %117 = arith.addf %115, %116 : vector<2x128xf32>
    %118 = arith.truncf %117 : vector<2x128xf32> to vector<2x128xbf16>
    %cst_33 = arith.constant dense<0.000000e+00> : vector<2x384xf32>
    %119 = tpu.matmul %118, %66, %cst_33 {dimension_numbers = #tpu.dot_dimension_numbers<[1], [0], [0], [1], [0, 0, 1, 1], [], []>} : vector<2x128xbf16>, vector<128x384xbf16>, vector<2x384xf32> -> vector<2x384xf32>
    %120 = vector.extract_strided_slice %88 {offsets = [0, 0], sizes = [2, 256], strides = [1, 1]} : vector<2x384xf32> to vector<2x256xf32>
    %121 = vector.extract_strided_slice %119 {offsets = [0, 0], sizes = [2, 256], strides = [1, 1]} : vector<2x384xf32> to vector<2x256xf32>
    %122 = arith.addf %120, %121 : vector<2x256xf32>
    %123 = arith.negf %122 : vector<2x256xf32>
    %124 = math.exp %123 : vector<2x256xf32>
    %cst_34 = arith.constant 1.000000e+00 : f32
    %125 = vector.broadcast %cst_34 : f32 to vector<2x256xf32>
    %126 = arith.addf %125, %124 : vector<2x256xf32>
    %127 = arith.divf %125, %126 : vector<2x256xf32>
    %128 = vector.extract_strided_slice %127 {offsets = [0, 0], sizes = [2, 128], strides = [1, 1]} : vector<2x256xf32> to vector<2x128xf32>
    %129 = vector.extract_strided_slice %127 {offsets = [0, 128], sizes = [2, 128], strides = [1, 1]} : vector<2x256xf32> to vector<2x128xf32>
    %130 = vector.extract_strided_slice %88 {offsets = [0, 256], sizes = [2, 128], strides = [1, 1]} : vector<2x384xf32> to vector<2x128xf32>
    %131 = vector.extract_strided_slice %119 {offsets = [0, 256], sizes = [2, 128], strides = [1, 1]} : vector<2x384xf32> to vector<2x128xf32>
    %132 = arith.addf %131, %71 : vector<2x128xf32>
    %133 = arith.mulf %128, %132 : vector<2x128xf32>
    %134 = arith.addf %130, %133 : vector<2x128xf32>
    %135 = math.tanh %134 : vector<2x128xf32>
    %cst_35 = arith.constant 1.000000e+00 : f32
    %136 = vector.broadcast %cst_35 : f32 to vector<2x128xf32>
    %137 = arith.subf %136, %129 : vector<2x128xf32>
    %138 = arith.mulf %137, %135 : vector<2x128xf32>
    %139 = arith.mulf %129, %117 : vector<2x128xf32>
    %140 = arith.addf %138, %139 : vector<2x128xf32>
    %141 = arith.truncf %140 : vector<2x128xf32> to vector<2x128xbf16>
    %cst_36 = arith.constant dense<0.000000e+00> : vector<2x384xf32>
    %142 = tpu.matmul %141, %66, %cst_36 {dimension_numbers = #tpu.dot_dimension_numbers<[1], [0], [0], [1], [0, 0, 1, 1], [], []>} : vector<2x128xbf16>, vector<128x384xbf16>, vector<2x384xf32> -> vector<2x384xf32>
    %143 = vector.extract_strided_slice %89 {offsets = [0, 0], sizes = [2, 256], strides = [1, 1]} : vector<2x384xf32> to vector<2x256xf32>
    %144 = vector.extract_strided_slice %142 {offsets = [0, 0], sizes = [2, 256], strides = [1, 1]} : vector<2x384xf32> to vector<2x256xf32>
    %145 = arith.addf %143, %144 : vector<2x256xf32>
    %146 = arith.negf %145 : vector<2x256xf32>
    %147 = math.exp %146 : vector<2x256xf32>
    %cst_37 = arith.constant 1.000000e+00 : f32
    %148 = vector.broadcast %cst_37 : f32 to vector<2x256xf32>
    %149 = arith.addf %148, %147 : vector<2x256xf32>
    %150 = arith.divf %148, %149 : vector<2x256xf32>
    %151 = vector.extract_strided_slice %150 {offsets = [0, 0], sizes = [2, 128], strides = [1, 1]} : vector<2x256xf32> to vector<2x128xf32>
    %152 = vector.extract_strided_slice %150 {offsets = [0, 128], sizes = [2, 128], strides = [1, 1]} : vector<2x256xf32> to vector<2x128xf32>
    %153 = vector.extract_strided_slice %89 {offsets = [0, 256], sizes = [2, 128], strides = [1, 1]} : vector<2x384xf32> to vector<2x128xf32>
    %154 = vector.extract_strided_slice %142 {offsets = [0, 256], sizes = [2, 128], strides = [1, 1]} : vector<2x384xf32> to vector<2x128xf32>
    %155 = arith.addf %154, %71 : vector<2x128xf32>
    %156 = arith.mulf %151, %155 : vector<2x128xf32>
    %157 = arith.addf %153, %156 : vector<2x128xf32>
    %158 = math.tanh %157 : vector<2x128xf32>
    %cst_38 = arith.constant 1.000000e+00 : f32
    %159 = vector.broadcast %cst_38 : f32 to vector<2x128xf32>
    %160 = arith.subf %159, %152 : vector<2x128xf32>
    %161 = arith.mulf %160, %158 : vector<2x128xf32>
    %162 = arith.mulf %152, %140 : vector<2x128xf32>
    %163 = arith.addf %161, %162 : vector<2x128xf32>
    %164 = arith.truncf %163 : vector<2x128xf32> to vector<2x128xbf16>
    %cst_39 = arith.constant dense<0.000000e+00> : vector<2x384xf32>
    %165 = tpu.matmul %164, %66, %cst_39 {dimension_numbers = #tpu.dot_dimension_numbers<[1], [0], [0], [1], [0, 0, 1, 1], [], []>} : vector<2x128xbf16>, vector<128x384xbf16>, vector<2x384xf32> -> vector<2x384xf32>
    %166 = vector.extract_strided_slice %90 {offsets = [0, 0], sizes = [2, 256], strides = [1, 1]} : vector<2x384xf32> to vector<2x256xf32>
    %167 = vector.extract_strided_slice %165 {offsets = [0, 0], sizes = [2, 256], strides = [1, 1]} : vector<2x384xf32> to vector<2x256xf32>
    %168 = arith.addf %166, %167 : vector<2x256xf32>
    %169 = arith.negf %168 : vector<2x256xf32>
    %170 = math.exp %169 : vector<2x256xf32>
    %cst_40 = arith.constant 1.000000e+00 : f32
    %171 = vector.broadcast %cst_40 : f32 to vector<2x256xf32>
    %172 = arith.addf %171, %170 : vector<2x256xf32>
    %173 = arith.divf %171, %172 : vector<2x256xf32>
    %174 = vector.extract_strided_slice %173 {offsets = [0, 0], sizes = [2, 128], strides = [1, 1]} : vector<2x256xf32> to vector<2x128xf32>
    %175 = vector.extract_strided_slice %173 {offsets = [0, 128], sizes = [2, 128], strides = [1, 1]} : vector<2x256xf32> to vector<2x128xf32>
    %176 = vector.extract_strided_slice %90 {offsets = [0, 256], sizes = [2, 128], strides = [1, 1]} : vector<2x384xf32> to vector<2x128xf32>
    %177 = vector.extract_strided_slice %165 {offsets = [0, 256], sizes = [2, 128], strides = [1, 1]} : vector<2x384xf32> to vector<2x128xf32>
    %178 = arith.addf %177, %71 : vector<2x128xf32>
    %179 = arith.mulf %174, %178 : vector<2x128xf32>
    %180 = arith.addf %176, %179 : vector<2x128xf32>
    %181 = math.tanh %180 : vector<2x128xf32>
    %cst_41 = arith.constant 1.000000e+00 : f32
    %182 = vector.broadcast %cst_41 : f32 to vector<2x128xf32>
    %183 = arith.subf %182, %175 : vector<2x128xf32>
    %184 = arith.mulf %183, %181 : vector<2x128xf32>
    %185 = arith.mulf %175, %163 : vector<2x128xf32>
    %186 = arith.addf %184, %185 : vector<2x128xf32>
    %187 = arith.truncf %186 : vector<2x128xf32> to vector<2x128xbf16>
    %cst_42 = arith.constant dense<0.000000e+00> : vector<2x384xf32>
    %188 = tpu.matmul %187, %66, %cst_42 {dimension_numbers = #tpu.dot_dimension_numbers<[1], [0], [0], [1], [0, 0, 1, 1], [], []>} : vector<2x128xbf16>, vector<128x384xbf16>, vector<2x384xf32> -> vector<2x384xf32>
    %189 = vector.extract_strided_slice %91 {offsets = [0, 0], sizes = [2, 256], strides = [1, 1]} : vector<2x384xf32> to vector<2x256xf32>
    %190 = vector.extract_strided_slice %188 {offsets = [0, 0], sizes = [2, 256], strides = [1, 1]} : vector<2x384xf32> to vector<2x256xf32>
    %191 = arith.addf %189, %190 : vector<2x256xf32>
    %192 = arith.negf %191 : vector<2x256xf32>
    %193 = math.exp %192 : vector<2x256xf32>
    %cst_43 = arith.constant 1.000000e+00 : f32
    %194 = vector.broadcast %cst_43 : f32 to vector<2x256xf32>
    %195 = arith.addf %194, %193 : vector<2x256xf32>
    %196 = arith.divf %194, %195 : vector<2x256xf32>
    %197 = vector.extract_strided_slice %196 {offsets = [0, 0], sizes = [2, 128], strides = [1, 1]} : vector<2x256xf32> to vector<2x128xf32>
    %198 = vector.extract_strided_slice %196 {offsets = [0, 128], sizes = [2, 128], strides = [1, 1]} : vector<2x256xf32> to vector<2x128xf32>
    %199 = vector.extract_strided_slice %91 {offsets = [0, 256], sizes = [2, 128], strides = [1, 1]} : vector<2x384xf32> to vector<2x128xf32>
    %200 = vector.extract_strided_slice %188 {offsets = [0, 256], sizes = [2, 128], strides = [1, 1]} : vector<2x384xf32> to vector<2x128xf32>
    %201 = arith.addf %200, %71 : vector<2x128xf32>
    %202 = arith.mulf %197, %201 : vector<2x128xf32>
    %203 = arith.addf %199, %202 : vector<2x128xf32>
    %204 = math.tanh %203 : vector<2x128xf32>
    %cst_44 = arith.constant 1.000000e+00 : f32
    %205 = vector.broadcast %cst_44 : f32 to vector<2x128xf32>
    %206 = arith.subf %205, %198 : vector<2x128xf32>
    %207 = arith.mulf %206, %204 : vector<2x128xf32>
    %208 = arith.mulf %198, %186 : vector<2x128xf32>
    %209 = arith.addf %207, %208 : vector<2x128xf32>
    %210 = arith.truncf %209 : vector<2x128xf32> to vector<2x128xbf16>
    %cst_45 = arith.constant dense<0.000000e+00> : vector<2x384xf32>
    %211 = tpu.matmul %210, %66, %cst_45 {dimension_numbers = #tpu.dot_dimension_numbers<[1], [0], [0], [1], [0, 0, 1, 1], [], []>} : vector<2x128xbf16>, vector<128x384xbf16>, vector<2x384xf32> -> vector<2x384xf32>
    %212 = vector.extract_strided_slice %92 {offsets = [0, 0], sizes = [2, 256], strides = [1, 1]} : vector<2x384xf32> to vector<2x256xf32>
    %213 = vector.extract_strided_slice %211 {offsets = [0, 0], sizes = [2, 256], strides = [1, 1]} : vector<2x384xf32> to vector<2x256xf32>
    %214 = arith.addf %212, %213 : vector<2x256xf32>
    %215 = arith.negf %214 : vector<2x256xf32>
    %216 = math.exp %215 : vector<2x256xf32>
    %cst_46 = arith.constant 1.000000e+00 : f32
    %217 = vector.broadcast %cst_46 : f32 to vector<2x256xf32>
    %218 = arith.addf %217, %216 : vector<2x256xf32>
    %219 = arith.divf %217, %218 : vector<2x256xf32>
    %220 = vector.extract_strided_slice %219 {offsets = [0, 0], sizes = [2, 128], strides = [1, 1]} : vector<2x256xf32> to vector<2x128xf32>
    %221 = vector.extract_strided_slice %219 {offsets = [0, 128], sizes = [2, 128], strides = [1, 1]} : vector<2x256xf32> to vector<2x128xf32>
    %222 = vector.extract_strided_slice %92 {offsets = [0, 256], sizes = [2, 128], strides = [1, 1]} : vector<2x384xf32> to vector<2x128xf32>
    %223 = vector.extract_strided_slice %211 {offsets = [0, 256], sizes = [2, 128], strides = [1, 1]} : vector<2x384xf32> to vector<2x128xf32>
    %224 = arith.addf %223, %71 : vector<2x128xf32>
    %225 = arith.mulf %220, %224 : vector<2x128xf32>
    %226 = arith.addf %222, %225 : vector<2x128xf32>
    %227 = math.tanh %226 : vector<2x128xf32>
    %cst_47 = arith.constant 1.000000e+00 : f32
    %228 = vector.broadcast %cst_47 : f32 to vector<2x128xf32>
    %229 = arith.subf %228, %221 : vector<2x128xf32>
    %230 = arith.mulf %229, %227 : vector<2x128xf32>
    %231 = arith.mulf %221, %209 : vector<2x128xf32>
    %232 = arith.addf %230, %231 : vector<2x128xf32>
    %233 = arith.truncf %232 : vector<2x128xf32> to vector<2x128xbf16>
    %cst_48 = arith.constant dense<0.000000e+00> : vector<2x384xf32>
    %234 = tpu.matmul %233, %66, %cst_48 {dimension_numbers = #tpu.dot_dimension_numbers<[1], [0], [0], [1], [0, 0, 1, 1], [], []>} : vector<2x128xbf16>, vector<128x384xbf16>, vector<2x384xf32> -> vector<2x384xf32>
    %235 = vector.extract_strided_slice %93 {offsets = [0, 0], sizes = [2, 256], strides = [1, 1]} : vector<2x384xf32> to vector<2x256xf32>
    %236 = vector.extract_strided_slice %234 {offsets = [0, 0], sizes = [2, 256], strides = [1, 1]} : vector<2x384xf32> to vector<2x256xf32>
    %237 = arith.addf %235, %236 : vector<2x256xf32>
    %238 = arith.negf %237 : vector<2x256xf32>
    %239 = math.exp %238 : vector<2x256xf32>
    %cst_49 = arith.constant 1.000000e+00 : f32
    %240 = vector.broadcast %cst_49 : f32 to vector<2x256xf32>
    %241 = arith.addf %240, %239 : vector<2x256xf32>
    %242 = arith.divf %240, %241 : vector<2x256xf32>
    %243 = vector.extract_strided_slice %242 {offsets = [0, 0], sizes = [2, 128], strides = [1, 1]} : vector<2x256xf32> to vector<2x128xf32>
    %244 = vector.extract_strided_slice %242 {offsets = [0, 128], sizes = [2, 128], strides = [1, 1]} : vector<2x256xf32> to vector<2x128xf32>
    %245 = vector.extract_strided_slice %93 {offsets = [0, 256], sizes = [2, 128], strides = [1, 1]} : vector<2x384xf32> to vector<2x128xf32>
    %246 = vector.extract_strided_slice %234 {offsets = [0, 256], sizes = [2, 128], strides = [1, 1]} : vector<2x384xf32> to vector<2x128xf32>
    %247 = arith.addf %246, %71 : vector<2x128xf32>
    %248 = arith.mulf %243, %247 : vector<2x128xf32>
    %249 = arith.addf %245, %248 : vector<2x128xf32>
    %250 = math.tanh %249 : vector<2x128xf32>
    %cst_50 = arith.constant 1.000000e+00 : f32
    %251 = vector.broadcast %cst_50 : f32 to vector<2x128xf32>
    %252 = arith.subf %251, %244 : vector<2x128xf32>
    %253 = arith.mulf %252, %250 : vector<2x128xf32>
    %254 = arith.mulf %244, %232 : vector<2x128xf32>
    %255 = arith.addf %253, %254 : vector<2x128xf32>
    %256 = vector.extract_strided_slice %117 {offsets = [0, 0], sizes = [2, 32], strides = [1, 1]} : vector<2x128xf32> to vector<2x32xf32>
    %257 = vector.extract_strided_slice %255 {offsets = [0, 32], sizes = [2, 32], strides = [1, 1]} : vector<2x128xf32> to vector<2x32xf32>
    %258 = arith.addf %256, %257 : vector<2x32xf32>
    %259 = vector.extract_strided_slice %140 {offsets = [0, 0], sizes = [2, 32], strides = [1, 1]} : vector<2x128xf32> to vector<2x32xf32>
    %260 = vector.extract_strided_slice %232 {offsets = [0, 32], sizes = [2, 32], strides = [1, 1]} : vector<2x128xf32> to vector<2x32xf32>
    %261 = arith.addf %259, %260 : vector<2x32xf32>
    %262 = vector.extract_strided_slice %163 {offsets = [0, 0], sizes = [2, 32], strides = [1, 1]} : vector<2x128xf32> to vector<2x32xf32>
    %263 = vector.extract_strided_slice %209 {offsets = [0, 32], sizes = [2, 32], strides = [1, 1]} : vector<2x128xf32> to vector<2x32xf32>
    %264 = arith.addf %262, %263 : vector<2x32xf32>
    %265 = vector.extract_strided_slice %186 {offsets = [0, 0], sizes = [2, 32], strides = [1, 1]} : vector<2x128xf32> to vector<2x32xf32>
    %266 = vector.extract_strided_slice %186 {offsets = [0, 32], sizes = [2, 32], strides = [1, 1]} : vector<2x128xf32> to vector<2x32xf32>
    %267 = arith.addf %265, %266 : vector<2x32xf32>
    %268 = vector.extract_strided_slice %209 {offsets = [0, 0], sizes = [2, 32], strides = [1, 1]} : vector<2x128xf32> to vector<2x32xf32>
    %269 = vector.extract_strided_slice %163 {offsets = [0, 32], sizes = [2, 32], strides = [1, 1]} : vector<2x128xf32> to vector<2x32xf32>
    %270 = arith.addf %268, %269 : vector<2x32xf32>
    %271 = vector.extract_strided_slice %232 {offsets = [0, 0], sizes = [2, 32], strides = [1, 1]} : vector<2x128xf32> to vector<2x32xf32>
    %272 = vector.extract_strided_slice %140 {offsets = [0, 32], sizes = [2, 32], strides = [1, 1]} : vector<2x128xf32> to vector<2x32xf32>
    %273 = arith.addf %271, %272 : vector<2x32xf32>
    %274 = vector.extract_strided_slice %255 {offsets = [0, 0], sizes = [2, 32], strides = [1, 1]} : vector<2x128xf32> to vector<2x32xf32>
    %275 = vector.extract_strided_slice %117 {offsets = [0, 32], sizes = [2, 32], strides = [1, 1]} : vector<2x128xf32> to vector<2x32xf32>
    %276 = arith.addf %274, %275 : vector<2x32xf32>
    %277 = arith.addf %258, %261 : vector<2x32xf32>
    %278 = arith.addf %277, %264 : vector<2x32xf32>
    %279 = arith.addf %278, %267 : vector<2x32xf32>
    %280 = arith.addf %279, %270 : vector<2x32xf32>
    %281 = arith.addf %280, %273 : vector<2x32xf32>
    %282 = arith.addf %281, %276 : vector<2x32xf32>
    %cst_51 = arith.constant dense<0.000000e+00> : vector<2xf32>
    %283 = vector.multi_reduction <add>, %282, %cst_51 [1] : vector<2x32xf32> to vector<2xf32>
    %284 = vector.shape_cast %283 : vector<2xf32> to vector<2x1xf32>
    %cst_52 = arith.constant 2.240000e+02 : f32
    %285 = vector.broadcast %cst_52 : f32 to vector<2x1xf32>
    %286 = arith.divf %284, %285 : vector<2x1xf32>
    %287 = vector.broadcast %286 : vector<2x1xf32> to vector<2x32xf32>
    %288 = arith.subf %258, %287 : vector<2x32xf32>
    %289 = vector.broadcast %286 : vector<2x1xf32> to vector<2x32xf32>
    %290 = arith.subf %261, %289 : vector<2x32xf32>
    %291 = vector.broadcast %286 : vector<2x1xf32> to vector<2x32xf32>
    %292 = arith.subf %264, %291 : vector<2x32xf32>
    %293 = vector.broadcast %286 : vector<2x1xf32> to vector<2x32xf32>
    %294 = arith.subf %267, %293 : vector<2x32xf32>
    %295 = vector.broadcast %286 : vector<2x1xf32> to vector<2x32xf32>
    %296 = arith.subf %270, %295 : vector<2x32xf32>
    %297 = vector.broadcast %286 : vector<2x1xf32> to vector<2x32xf32>
    %298 = arith.subf %273, %297 : vector<2x32xf32>
    %299 = vector.broadcast %286 : vector<2x1xf32> to vector<2x32xf32>
    %300 = arith.subf %276, %299 : vector<2x32xf32>
    %301 = arith.mulf %288, %288 : vector<2x32xf32>
    %cst_53 = arith.constant dense<0.000000e+00> : vector<2xf32>
    %302 = vector.multi_reduction <add>, %301, %cst_53 [1] : vector<2x32xf32> to vector<2xf32>
    %303 = vector.shape_cast %302 : vector<2xf32> to vector<2x1xf32>
    %304 = arith.mulf %290, %290 : vector<2x32xf32>
    %cst_54 = arith.constant dense<0.000000e+00> : vector<2xf32>
    %305 = vector.multi_reduction <add>, %304, %cst_54 [1] : vector<2x32xf32> to vector<2xf32>
    %306 = vector.shape_cast %305 : vector<2xf32> to vector<2x1xf32>
    %307 = arith.addf %303, %306 : vector<2x1xf32>
    %308 = arith.mulf %292, %292 : vector<2x32xf32>
    %cst_55 = arith.constant dense<0.000000e+00> : vector<2xf32>
    %309 = vector.multi_reduction <add>, %308, %cst_55 [1] : vector<2x32xf32> to vector<2xf32>
    %310 = vector.shape_cast %309 : vector<2xf32> to vector<2x1xf32>
    %311 = arith.addf %307, %310 : vector<2x1xf32>
    %312 = arith.mulf %294, %294 : vector<2x32xf32>
    %cst_56 = arith.constant dense<0.000000e+00> : vector<2xf32>
    %313 = vector.multi_reduction <add>, %312, %cst_56 [1] : vector<2x32xf32> to vector<2xf32>
    %314 = vector.shape_cast %313 : vector<2xf32> to vector<2x1xf32>
    %315 = arith.addf %311, %314 : vector<2x1xf32>
    %316 = arith.mulf %296, %296 : vector<2x32xf32>
    %cst_57 = arith.constant dense<0.000000e+00> : vector<2xf32>
    %317 = vector.multi_reduction <add>, %316, %cst_57 [1] : vector<2x32xf32> to vector<2xf32>
    %318 = vector.shape_cast %317 : vector<2xf32> to vector<2x1xf32>
    %319 = arith.addf %315, %318 : vector<2x1xf32>
    %320 = arith.mulf %298, %298 : vector<2x32xf32>
    %cst_58 = arith.constant dense<0.000000e+00> : vector<2xf32>
    %321 = vector.multi_reduction <add>, %320, %cst_58 [1] : vector<2x32xf32> to vector<2xf32>
    %322 = vector.shape_cast %321 : vector<2xf32> to vector<2x1xf32>
    %323 = arith.addf %319, %322 : vector<2x1xf32>
    %324 = arith.mulf %300, %300 : vector<2x32xf32>
    %cst_59 = arith.constant dense<0.000000e+00> : vector<2xf32>
    %325 = vector.multi_reduction <add>, %324, %cst_59 [1] : vector<2x32xf32> to vector<2xf32>
    %326 = vector.shape_cast %325 : vector<2xf32> to vector<2x1xf32>
    %327 = arith.addf %323, %326 : vector<2x1xf32>
    %cst_60 = arith.constant 2.240000e+02 : f32
    %328 = vector.broadcast %cst_60 : f32 to vector<2x1xf32>
    %329 = arith.divf %327, %328 : vector<2x1xf32>
    %cst_61 = arith.constant 9.99999974E-6 : f32
    %330 = vector.broadcast %cst_61 : f32 to vector<2x1xf32>
    %331 = arith.addf %329, %330 : vector<2x1xf32>
    %332 = math.rsqrt %331 : vector<2x1xf32>
    %333 = vector.broadcast %332 : vector<2x1xf32> to vector<2x32xf32>
    %334 = arith.mulf %288, %333 : vector<2x32xf32>
    %335 = vector.broadcast %332 : vector<2x1xf32> to vector<2x32xf32>
    %336 = arith.mulf %290, %335 : vector<2x32xf32>
    %337 = vector.broadcast %332 : vector<2x1xf32> to vector<2x32xf32>
    %338 = arith.mulf %292, %337 : vector<2x32xf32>
    %339 = vector.broadcast %332 : vector<2x1xf32> to vector<2x32xf32>
    %340 = arith.mulf %294, %339 : vector<2x32xf32>
    %341 = vector.broadcast %332 : vector<2x1xf32> to vector<2x32xf32>
    %342 = arith.mulf %296, %341 : vector<2x32xf32>
    %343 = vector.broadcast %332 : vector<2x1xf32> to vector<2x32xf32>
    %344 = arith.mulf %298, %343 : vector<2x32xf32>
    %345 = vector.broadcast %332 : vector<2x1xf32> to vector<2x32xf32>
    %346 = arith.mulf %300, %345 : vector<2x32xf32>
    %347 = tpu.concatenate %334, %336, %338, %340, %342, %344, %346 in 0 : vector<2x32xf32>, vector<2x32xf32>, vector<2x32xf32>, vector<2x32xf32>, vector<2x32xf32>, vector<2x32xf32>, vector<2x32xf32> -> vector<14x32xf32>
    %348 = arith.mulf %347, %73 : vector<14x32xf32>
    %349 = arith.addf %348, %75 : vector<14x32xf32>
    %c192 = arith.constant 192 : index
    %c0_62 = arith.constant 0 : index
    %350 = vector.load %arg1[%c192, %c0_62] : memref<448x384xbf16, #tpu.memory_space<vmem>>, vector<32x384xbf16>
    %c224 = arith.constant 224 : index
    %c0_63 = arith.constant 0 : index
    %351 = vector.load %arg1[%c224, %c0_63] : memref<448x384xbf16, #tpu.memory_space<vmem>>, vector<128x384xbf16>
    %c48 = arith.constant 48 : index
    %c0_64 = arith.constant 0 : index
    %352 = vector.load %arg2[%c48, %c0_64] : memref<112x384xf32, #tpu.memory_space<vmem>>, vector<1x384xf32>
    %c49 = arith.constant 49 : index
    %c0_65 = arith.constant 0 : index
    %353 = vector.load %arg2[%c49, %c0_65] : memref<112x384xf32, #tpu.memory_space<vmem>>, vector<1x384xf32>
    %354 = vector.extract_strided_slice %353 {offsets = [0, 0], sizes = [1, 128], strides = [1, 1]} : vector<1x384xf32> to vector<1x128xf32>
    %355 = vector.shape_cast %354 : vector<1x128xf32> to vector<1x128xf32>
    %356 = vector.broadcast %355 : vector<1x128xf32> to vector<2x128xf32>
    %c56 = arith.constant 56 : index
    %c0_66 = arith.constant 0 : index
    %357 = vector.load %arg2[%c56, %c0_66] : memref<112x384xf32, #tpu.memory_space<vmem>>, vector<14x384xf32>
    %358 = vector.extract_strided_slice %357 {offsets = [0, 0], sizes = [14, 32], strides = [1, 1]} : vector<14x384xf32> to vector<14x32xf32>
    %c72 = arith.constant 72 : index
    %c0_67 = arith.constant 0 : index
    %359 = vector.load %arg2[%c72, %c0_67] : memref<112x384xf32, #tpu.memory_space<vmem>>, vector<14x384xf32>
    %360 = vector.extract_strided_slice %359 {offsets = [0, 0], sizes = [14, 32], strides = [1, 1]} : vector<14x384xf32> to vector<14x32xf32>
    %361 = arith.truncf %349 : vector<14x32xf32> to vector<14x32xbf16>
    %cst_68 = arith.constant dense<0.000000e+00> : vector<14x384xf32>
    %362 = tpu.matmul %361, %350, %cst_68 {dimension_numbers = #tpu.dot_dimension_numbers<[1], [0], [0], [1], [0, 0, 1, 1], [], []>} : vector<14x32xbf16>, vector<32x384xbf16>, vector<14x384xf32> -> vector<14x384xf32>
    %363 = vector.broadcast %352 : vector<1x384xf32> to vector<14x384xf32>
    %364 = arith.addf %362, %363 : vector<14x384xf32>
    %365 = vector.extract_strided_slice %364 {offsets = [0, 0], sizes = [2, 384], strides = [1, 1]} : vector<14x384xf32> to vector<2x384xf32>
    %366 = vector.extract_strided_slice %364 {offsets = [2, 0], sizes = [2, 384], strides = [1, 1]} : vector<14x384xf32> to vector<2x384xf32>
    %367 = vector.extract_strided_slice %364 {offsets = [4, 0], sizes = [2, 384], strides = [1, 1]} : vector<14x384xf32> to vector<2x384xf32>
    %368 = vector.extract_strided_slice %364 {offsets = [6, 0], sizes = [2, 384], strides = [1, 1]} : vector<14x384xf32> to vector<2x384xf32>
    %369 = vector.extract_strided_slice %364 {offsets = [8, 0], sizes = [2, 384], strides = [1, 1]} : vector<14x384xf32> to vector<2x384xf32>
    %370 = vector.extract_strided_slice %364 {offsets = [10, 0], sizes = [2, 384], strides = [1, 1]} : vector<14x384xf32> to vector<2x384xf32>
    %371 = vector.extract_strided_slice %364 {offsets = [12, 0], sizes = [2, 384], strides = [1, 1]} : vector<14x384xf32> to vector<2x384xf32>
    %372 = arith.select %64, %365, %371 : vector<2x384xi1>, vector<2x384xf32>
    %373 = arith.select %64, %366, %370 : vector<2x384xi1>, vector<2x384xf32>
    %374 = arith.select %64, %367, %369 : vector<2x384xi1>, vector<2x384xf32>
    %375 = arith.select %64, %368, %368 : vector<2x384xi1>, vector<2x384xf32>
    %376 = arith.select %64, %369, %367 : vector<2x384xi1>, vector<2x384xf32>
    %377 = arith.select %64, %370, %366 : vector<2x384xi1>, vector<2x384xf32>
    %378 = arith.select %64, %371, %365 : vector<2x384xi1>, vector<2x384xf32>
    %cst_69 = arith.constant 0.000000e+00 : f32
    %379 = vector.broadcast %cst_69 : f32 to vector<2x128xf32>
    %380 = arith.truncf %379 : vector<2x128xf32> to vector<2x128xbf16>
    %cst_70 = arith.constant dense<0.000000e+00> : vector<2x384xf32>
    %381 = tpu.matmul %380, %351, %cst_70 {dimension_numbers = #tpu.dot_dimension_numbers<[1], [0], [0], [1], [0, 0, 1, 1], [], []>} : vector<2x128xbf16>, vector<128x384xbf16>, vector<2x384xf32> -> vector<2x384xf32>
    %382 = vector.extract_strided_slice %372 {offsets = [0, 0], sizes = [2, 256], strides = [1, 1]} : vector<2x384xf32> to vector<2x256xf32>
    %383 = vector.extract_strided_slice %381 {offsets = [0, 0], sizes = [2, 256], strides = [1, 1]} : vector<2x384xf32> to vector<2x256xf32>
    %384 = arith.addf %382, %383 : vector<2x256xf32>
    %385 = arith.negf %384 : vector<2x256xf32>
    %386 = math.exp %385 : vector<2x256xf32>
    %cst_71 = arith.constant 1.000000e+00 : f32
    %387 = vector.broadcast %cst_71 : f32 to vector<2x256xf32>
    %388 = arith.addf %387, %386 : vector<2x256xf32>
    %389 = arith.divf %387, %388 : vector<2x256xf32>
    %390 = vector.extract_strided_slice %389 {offsets = [0, 0], sizes = [2, 128], strides = [1, 1]} : vector<2x256xf32> to vector<2x128xf32>
    %391 = vector.extract_strided_slice %389 {offsets = [0, 128], sizes = [2, 128], strides = [1, 1]} : vector<2x256xf32> to vector<2x128xf32>
    %392 = vector.extract_strided_slice %372 {offsets = [0, 256], sizes = [2, 128], strides = [1, 1]} : vector<2x384xf32> to vector<2x128xf32>
    %393 = vector.extract_strided_slice %381 {offsets = [0, 256], sizes = [2, 128], strides = [1, 1]} : vector<2x384xf32> to vector<2x128xf32>
    %394 = arith.addf %393, %356 : vector<2x128xf32>
    %395 = arith.mulf %390, %394 : vector<2x128xf32>
    %396 = arith.addf %392, %395 : vector<2x128xf32>
    %397 = math.tanh %396 : vector<2x128xf32>
    %cst_72 = arith.constant 1.000000e+00 : f32
    %398 = vector.broadcast %cst_72 : f32 to vector<2x128xf32>
    %399 = arith.subf %398, %391 : vector<2x128xf32>
    %400 = arith.mulf %399, %397 : vector<2x128xf32>
    %401 = arith.mulf %391, %379 : vector<2x128xf32>
    %402 = arith.addf %400, %401 : vector<2x128xf32>
    %403 = arith.truncf %402 : vector<2x128xf32> to vector<2x128xbf16>
    %cst_73 = arith.constant dense<0.000000e+00> : vector<2x384xf32>
    %404 = tpu.matmul %403, %351, %cst_73 {dimension_numbers = #tpu.dot_dimension_numbers<[1], [0], [0], [1], [0, 0, 1, 1], [], []>} : vector<2x128xbf16>, vector<128x384xbf16>, vector<2x384xf32> -> vector<2x384xf32>
    %405 = vector.extract_strided_slice %373 {offsets = [0, 0], sizes = [2, 256], strides = [1, 1]} : vector<2x384xf32> to vector<2x256xf32>
    %406 = vector.extract_strided_slice %404 {offsets = [0, 0], sizes = [2, 256], strides = [1, 1]} : vector<2x384xf32> to vector<2x256xf32>
    %407 = arith.addf %405, %406 : vector<2x256xf32>
    %408 = arith.negf %407 : vector<2x256xf32>
    %409 = math.exp %408 : vector<2x256xf32>
    %cst_74 = arith.constant 1.000000e+00 : f32
    %410 = vector.broadcast %cst_74 : f32 to vector<2x256xf32>
    %411 = arith.addf %410, %409 : vector<2x256xf32>
    %412 = arith.divf %410, %411 : vector<2x256xf32>
    %413 = vector.extract_strided_slice %412 {offsets = [0, 0], sizes = [2, 128], strides = [1, 1]} : vector<2x256xf32> to vector<2x128xf32>
    %414 = vector.extract_strided_slice %412 {offsets = [0, 128], sizes = [2, 128], strides = [1, 1]} : vector<2x256xf32> to vector<2x128xf32>
    %415 = vector.extract_strided_slice %373 {offsets = [0, 256], sizes = [2, 128], strides = [1, 1]} : vector<2x384xf32> to vector<2x128xf32>
    %416 = vector.extract_strided_slice %404 {offsets = [0, 256], sizes = [2, 128], strides = [1, 1]} : vector<2x384xf32> to vector<2x128xf32>
    %417 = arith.addf %416, %356 : vector<2x128xf32>
    %418 = arith.mulf %413, %417 : vector<2x128xf32>
    %419 = arith.addf %415, %418 : vector<2x128xf32>
    %420 = math.tanh %419 : vector<2x128xf32>
    %cst_75 = arith.constant 1.000000e+00 : f32
    %421 = vector.broadcast %cst_75 : f32 to vector<2x128xf32>
    %422 = arith.subf %421, %414 : vector<2x128xf32>
    %423 = arith.mulf %422, %420 : vector<2x128xf32>
    %424 = arith.mulf %414, %402 : vector<2x128xf32>
    %425 = arith.addf %423, %424 : vector<2x128xf32>
    %426 = arith.truncf %425 : vector<2x128xf32> to vector<2x128xbf16>
    %cst_76 = arith.constant dense<0.000000e+00> : vector<2x384xf32>
    %427 = tpu.matmul %426, %351, %cst_76 {dimension_numbers = #tpu.dot_dimension_numbers<[1], [0], [0], [1], [0, 0, 1, 1], [], []>} : vector<2x128xbf16>, vector<128x384xbf16>, vector<2x384xf32> -> vector<2x384xf32>
    %428 = vector.extract_strided_slice %374 {offsets = [0, 0], sizes = [2, 256], strides = [1, 1]} : vector<2x384xf32> to vector<2x256xf32>
    %429 = vector.extract_strided_slice %427 {offsets = [0, 0], sizes = [2, 256], strides = [1, 1]} : vector<2x384xf32> to vector<2x256xf32>
    %430 = arith.addf %428, %429 : vector<2x256xf32>
    %431 = arith.negf %430 : vector<2x256xf32>
    %432 = math.exp %431 : vector<2x256xf32>
    %cst_77 = arith.constant 1.000000e+00 : f32
    %433 = vector.broadcast %cst_77 : f32 to vector<2x256xf32>
    %434 = arith.addf %433, %432 : vector<2x256xf32>
    %435 = arith.divf %433, %434 : vector<2x256xf32>
    %436 = vector.extract_strided_slice %435 {offsets = [0, 0], sizes = [2, 128], strides = [1, 1]} : vector<2x256xf32> to vector<2x128xf32>
    %437 = vector.extract_strided_slice %435 {offsets = [0, 128], sizes = [2, 128], strides = [1, 1]} : vector<2x256xf32> to vector<2x128xf32>
    %438 = vector.extract_strided_slice %374 {offsets = [0, 256], sizes = [2, 128], strides = [1, 1]} : vector<2x384xf32> to vector<2x128xf32>
    %439 = vector.extract_strided_slice %427 {offsets = [0, 256], sizes = [2, 128], strides = [1, 1]} : vector<2x384xf32> to vector<2x128xf32>
    %440 = arith.addf %439, %356 : vector<2x128xf32>
    %441 = arith.mulf %436, %440 : vector<2x128xf32>
    %442 = arith.addf %438, %441 : vector<2x128xf32>
    %443 = math.tanh %442 : vector<2x128xf32>
    %cst_78 = arith.constant 1.000000e+00 : f32
    %444 = vector.broadcast %cst_78 : f32 to vector<2x128xf32>
    %445 = arith.subf %444, %437 : vector<2x128xf32>
    %446 = arith.mulf %445, %443 : vector<2x128xf32>
    %447 = arith.mulf %437, %425 : vector<2x128xf32>
    %448 = arith.addf %446, %447 : vector<2x128xf32>
    %449 = arith.truncf %448 : vector<2x128xf32> to vector<2x128xbf16>
    %cst_79 = arith.constant dense<0.000000e+00> : vector<2x384xf32>
    %450 = tpu.matmul %449, %351, %cst_79 {dimension_numbers = #tpu.dot_dimension_numbers<[1], [0], [0], [1], [0, 0, 1, 1], [], []>} : vector<2x128xbf16>, vector<128x384xbf16>, vector<2x384xf32> -> vector<2x384xf32>
    %451 = vector.extract_strided_slice %375 {offsets = [0, 0], sizes = [2, 256], strides = [1, 1]} : vector<2x384xf32> to vector<2x256xf32>
    %452 = vector.extract_strided_slice %450 {offsets = [0, 0], sizes = [2, 256], strides = [1, 1]} : vector<2x384xf32> to vector<2x256xf32>
    %453 = arith.addf %451, %452 : vector<2x256xf32>
    %454 = arith.negf %453 : vector<2x256xf32>
    %455 = math.exp %454 : vector<2x256xf32>
    %cst_80 = arith.constant 1.000000e+00 : f32
    %456 = vector.broadcast %cst_80 : f32 to vector<2x256xf32>
    %457 = arith.addf %456, %455 : vector<2x256xf32>
    %458 = arith.divf %456, %457 : vector<2x256xf32>
    %459 = vector.extract_strided_slice %458 {offsets = [0, 0], sizes = [2, 128], strides = [1, 1]} : vector<2x256xf32> to vector<2x128xf32>
    %460 = vector.extract_strided_slice %458 {offsets = [0, 128], sizes = [2, 128], strides = [1, 1]} : vector<2x256xf32> to vector<2x128xf32>
    %461 = vector.extract_strided_slice %375 {offsets = [0, 256], sizes = [2, 128], strides = [1, 1]} : vector<2x384xf32> to vector<2x128xf32>
    %462 = vector.extract_strided_slice %450 {offsets = [0, 256], sizes = [2, 128], strides = [1, 1]} : vector<2x384xf32> to vector<2x128xf32>
    %463 = arith.addf %462, %356 : vector<2x128xf32>
    %464 = arith.mulf %459, %463 : vector<2x128xf32>
    %465 = arith.addf %461, %464 : vector<2x128xf32>
    %466 = math.tanh %465 : vector<2x128xf32>
    %cst_81 = arith.constant 1.000000e+00 : f32
    %467 = vector.broadcast %cst_81 : f32 to vector<2x128xf32>
    %468 = arith.subf %467, %460 : vector<2x128xf32>
    %469 = arith.mulf %468, %466 : vector<2x128xf32>
    %470 = arith.mulf %460, %448 : vector<2x128xf32>
    %471 = arith.addf %469, %470 : vector<2x128xf32>
    %472 = arith.truncf %471 : vector<2x128xf32> to vector<2x128xbf16>
    %cst_82 = arith.constant dense<0.000000e+00> : vector<2x384xf32>
    %473 = tpu.matmul %472, %351, %cst_82 {dimension_numbers = #tpu.dot_dimension_numbers<[1], [0], [0], [1], [0, 0, 1, 1], [], []>} : vector<2x128xbf16>, vector<128x384xbf16>, vector<2x384xf32> -> vector<2x384xf32>
    %474 = vector.extract_strided_slice %376 {offsets = [0, 0], sizes = [2, 256], strides = [1, 1]} : vector<2x384xf32> to vector<2x256xf32>
    %475 = vector.extract_strided_slice %473 {offsets = [0, 0], sizes = [2, 256], strides = [1, 1]} : vector<2x384xf32> to vector<2x256xf32>
    %476 = arith.addf %474, %475 : vector<2x256xf32>
    %477 = arith.negf %476 : vector<2x256xf32>
    %478 = math.exp %477 : vector<2x256xf32>
    %cst_83 = arith.constant 1.000000e+00 : f32
    %479 = vector.broadcast %cst_83 : f32 to vector<2x256xf32>
    %480 = arith.addf %479, %478 : vector<2x256xf32>
    %481 = arith.divf %479, %480 : vector<2x256xf32>
    %482 = vector.extract_strided_slice %481 {offsets = [0, 0], sizes = [2, 128], strides = [1, 1]} : vector<2x256xf32> to vector<2x128xf32>
    %483 = vector.extract_strided_slice %481 {offsets = [0, 128], sizes = [2, 128], strides = [1, 1]} : vector<2x256xf32> to vector<2x128xf32>
    %484 = vector.extract_strided_slice %376 {offsets = [0, 256], sizes = [2, 128], strides = [1, 1]} : vector<2x384xf32> to vector<2x128xf32>
    %485 = vector.extract_strided_slice %473 {offsets = [0, 256], sizes = [2, 128], strides = [1, 1]} : vector<2x384xf32> to vector<2x128xf32>
    %486 = arith.addf %485, %356 : vector<2x128xf32>
    %487 = arith.mulf %482, %486 : vector<2x128xf32>
    %488 = arith.addf %484, %487 : vector<2x128xf32>
    %489 = math.tanh %488 : vector<2x128xf32>
    %cst_84 = arith.constant 1.000000e+00 : f32
    %490 = vector.broadcast %cst_84 : f32 to vector<2x128xf32>
    %491 = arith.subf %490, %483 : vector<2x128xf32>
    %492 = arith.mulf %491, %489 : vector<2x128xf32>
    %493 = arith.mulf %483, %471 : vector<2x128xf32>
    %494 = arith.addf %492, %493 : vector<2x128xf32>
    %495 = arith.truncf %494 : vector<2x128xf32> to vector<2x128xbf16>
    %cst_85 = arith.constant dense<0.000000e+00> : vector<2x384xf32>
    %496 = tpu.matmul %495, %351, %cst_85 {dimension_numbers = #tpu.dot_dimension_numbers<[1], [0], [0], [1], [0, 0, 1, 1], [], []>} : vector<2x128xbf16>, vector<128x384xbf16>, vector<2x384xf32> -> vector<2x384xf32>
    %497 = vector.extract_strided_slice %377 {offsets = [0, 0], sizes = [2, 256], strides = [1, 1]} : vector<2x384xf32> to vector<2x256xf32>
    %498 = vector.extract_strided_slice %496 {offsets = [0, 0], sizes = [2, 256], strides = [1, 1]} : vector<2x384xf32> to vector<2x256xf32>
    %499 = arith.addf %497, %498 : vector<2x256xf32>
    %500 = arith.negf %499 : vector<2x256xf32>
    %501 = math.exp %500 : vector<2x256xf32>
    %cst_86 = arith.constant 1.000000e+00 : f32
    %502 = vector.broadcast %cst_86 : f32 to vector<2x256xf32>
    %503 = arith.addf %502, %501 : vector<2x256xf32>
    %504 = arith.divf %502, %503 : vector<2x256xf32>
    %505 = vector.extract_strided_slice %504 {offsets = [0, 0], sizes = [2, 128], strides = [1, 1]} : vector<2x256xf32> to vector<2x128xf32>
    %506 = vector.extract_strided_slice %504 {offsets = [0, 128], sizes = [2, 128], strides = [1, 1]} : vector<2x256xf32> to vector<2x128xf32>
    %507 = vector.extract_strided_slice %377 {offsets = [0, 256], sizes = [2, 128], strides = [1, 1]} : vector<2x384xf32> to vector<2x128xf32>
    %508 = vector.extract_strided_slice %496 {offsets = [0, 256], sizes = [2, 128], strides = [1, 1]} : vector<2x384xf32> to vector<2x128xf32>
    %509 = arith.addf %508, %356 : vector<2x128xf32>
    %510 = arith.mulf %505, %509 : vector<2x128xf32>
    %511 = arith.addf %507, %510 : vector<2x128xf32>
    %512 = math.tanh %511 : vector<2x128xf32>
    %cst_87 = arith.constant 1.000000e+00 : f32
    %513 = vector.broadcast %cst_87 : f32 to vector<2x128xf32>
    %514 = arith.subf %513, %506 : vector<2x128xf32>
    %515 = arith.mulf %514, %512 : vector<2x128xf32>
    %516 = arith.mulf %506, %494 : vector<2x128xf32>
    %517 = arith.addf %515, %516 : vector<2x128xf32>
    %518 = arith.truncf %517 : vector<2x128xf32> to vector<2x128xbf16>
    %cst_88 = arith.constant dense<0.000000e+00> : vector<2x384xf32>
    %519 = tpu.matmul %518, %351, %cst_88 {dimension_numbers = #tpu.dot_dimension_numbers<[1], [0], [0], [1], [0, 0, 1, 1], [], []>} : vector<2x128xbf16>, vector<128x384xbf16>, vector<2x384xf32> -> vector<2x384xf32>
    %520 = vector.extract_strided_slice %378 {offsets = [0, 0], sizes = [2, 256], strides = [1, 1]} : vector<2x384xf32> to vector<2x256xf32>
    %521 = vector.extract_strided_slice %519 {offsets = [0, 0], sizes = [2, 256], strides = [1, 1]} : vector<2x384xf32> to vector<2x256xf32>
    %522 = arith.addf %520, %521 : vector<2x256xf32>
    %523 = arith.negf %522 : vector<2x256xf32>
    %524 = math.exp %523 : vector<2x256xf32>
    %cst_89 = arith.constant 1.000000e+00 : f32
    %525 = vector.broadcast %cst_89 : f32 to vector<2x256xf32>
    %526 = arith.addf %525, %524 : vector<2x256xf32>
    %527 = arith.divf %525, %526 : vector<2x256xf32>
    %528 = vector.extract_strided_slice %527 {offsets = [0, 0], sizes = [2, 128], strides = [1, 1]} : vector<2x256xf32> to vector<2x128xf32>
    %529 = vector.extract_strided_slice %527 {offsets = [0, 128], sizes = [2, 128], strides = [1, 1]} : vector<2x256xf32> to vector<2x128xf32>
    %530 = vector.extract_strided_slice %378 {offsets = [0, 256], sizes = [2, 128], strides = [1, 1]} : vector<2x384xf32> to vector<2x128xf32>
    %531 = vector.extract_strided_slice %519 {offsets = [0, 256], sizes = [2, 128], strides = [1, 1]} : vector<2x384xf32> to vector<2x128xf32>
    %532 = arith.addf %531, %356 : vector<2x128xf32>
    %533 = arith.mulf %528, %532 : vector<2x128xf32>
    %534 = arith.addf %530, %533 : vector<2x128xf32>
    %535 = math.tanh %534 : vector<2x128xf32>
    %cst_90 = arith.constant 1.000000e+00 : f32
    %536 = vector.broadcast %cst_90 : f32 to vector<2x128xf32>
    %537 = arith.subf %536, %529 : vector<2x128xf32>
    %538 = arith.mulf %537, %535 : vector<2x128xf32>
    %539 = arith.mulf %529, %517 : vector<2x128xf32>
    %540 = arith.addf %538, %539 : vector<2x128xf32>
    %541 = vector.extract_strided_slice %402 {offsets = [0, 0], sizes = [2, 32], strides = [1, 1]} : vector<2x128xf32> to vector<2x32xf32>
    %542 = vector.extract_strided_slice %540 {offsets = [0, 32], sizes = [2, 32], strides = [1, 1]} : vector<2x128xf32> to vector<2x32xf32>
    %543 = arith.addf %541, %542 : vector<2x32xf32>
    %544 = vector.extract_strided_slice %425 {offsets = [0, 0], sizes = [2, 32], strides = [1, 1]} : vector<2x128xf32> to vector<2x32xf32>
    %545 = vector.extract_strided_slice %517 {offsets = [0, 32], sizes = [2, 32], strides = [1, 1]} : vector<2x128xf32> to vector<2x32xf32>
    %546 = arith.addf %544, %545 : vector<2x32xf32>
    %547 = vector.extract_strided_slice %448 {offsets = [0, 0], sizes = [2, 32], strides = [1, 1]} : vector<2x128xf32> to vector<2x32xf32>
    %548 = vector.extract_strided_slice %494 {offsets = [0, 32], sizes = [2, 32], strides = [1, 1]} : vector<2x128xf32> to vector<2x32xf32>
    %549 = arith.addf %547, %548 : vector<2x32xf32>
    %550 = vector.extract_strided_slice %471 {offsets = [0, 0], sizes = [2, 32], strides = [1, 1]} : vector<2x128xf32> to vector<2x32xf32>
    %551 = vector.extract_strided_slice %471 {offsets = [0, 32], sizes = [2, 32], strides = [1, 1]} : vector<2x128xf32> to vector<2x32xf32>
    %552 = arith.addf %550, %551 : vector<2x32xf32>
    %553 = vector.extract_strided_slice %494 {offsets = [0, 0], sizes = [2, 32], strides = [1, 1]} : vector<2x128xf32> to vector<2x32xf32>
    %554 = vector.extract_strided_slice %448 {offsets = [0, 32], sizes = [2, 32], strides = [1, 1]} : vector<2x128xf32> to vector<2x32xf32>
    %555 = arith.addf %553, %554 : vector<2x32xf32>
    %556 = vector.extract_strided_slice %517 {offsets = [0, 0], sizes = [2, 32], strides = [1, 1]} : vector<2x128xf32> to vector<2x32xf32>
    %557 = vector.extract_strided_slice %425 {offsets = [0, 32], sizes = [2, 32], strides = [1, 1]} : vector<2x128xf32> to vector<2x32xf32>
    %558 = arith.addf %556, %557 : vector<2x32xf32>
    %559 = vector.extract_strided_slice %540 {offsets = [0, 0], sizes = [2, 32], strides = [1, 1]} : vector<2x128xf32> to vector<2x32xf32>
    %560 = vector.extract_strided_slice %402 {offsets = [0, 32], sizes = [2, 32], strides = [1, 1]} : vector<2x128xf32> to vector<2x32xf32>
    %561 = arith.addf %559, %560 : vector<2x32xf32>
    %562 = arith.addf %543, %546 : vector<2x32xf32>
    %563 = arith.addf %562, %549 : vector<2x32xf32>
    %564 = arith.addf %563, %552 : vector<2x32xf32>
    %565 = arith.addf %564, %555 : vector<2x32xf32>
    %566 = arith.addf %565, %558 : vector<2x32xf32>
    %567 = arith.addf %566, %561 : vector<2x32xf32>
    %cst_91 = arith.constant dense<0.000000e+00> : vector<2xf32>
    %568 = vector.multi_reduction <add>, %567, %cst_91 [1] : vector<2x32xf32> to vector<2xf32>
    %569 = vector.shape_cast %568 : vector<2xf32> to vector<2x1xf32>
    %cst_92 = arith.constant 2.240000e+02 : f32
    %570 = vector.broadcast %cst_92 : f32 to vector<2x1xf32>
    %571 = arith.divf %569, %570 : vector<2x1xf32>
    %572 = vector.broadcast %571 : vector<2x1xf32> to vector<2x32xf32>
    %573 = arith.subf %543, %572 : vector<2x32xf32>
    %574 = vector.broadcast %571 : vector<2x1xf32> to vector<2x32xf32>
    %575 = arith.subf %546, %574 : vector<2x32xf32>
    %576 = vector.broadcast %571 : vector<2x1xf32> to vector<2x32xf32>
    %577 = arith.subf %549, %576 : vector<2x32xf32>
    %578 = vector.broadcast %571 : vector<2x1xf32> to vector<2x32xf32>
    %579 = arith.subf %552, %578 : vector<2x32xf32>
    %580 = vector.broadcast %571 : vector<2x1xf32> to vector<2x32xf32>
    %581 = arith.subf %555, %580 : vector<2x32xf32>
    %582 = vector.broadcast %571 : vector<2x1xf32> to vector<2x32xf32>
    %583 = arith.subf %558, %582 : vector<2x32xf32>
    %584 = vector.broadcast %571 : vector<2x1xf32> to vector<2x32xf32>
    %585 = arith.subf %561, %584 : vector<2x32xf32>
    %586 = arith.mulf %573, %573 : vector<2x32xf32>
    %cst_93 = arith.constant dense<0.000000e+00> : vector<2xf32>
    %587 = vector.multi_reduction <add>, %586, %cst_93 [1] : vector<2x32xf32> to vector<2xf32>
    %588 = vector.shape_cast %587 : vector<2xf32> to vector<2x1xf32>
    %589 = arith.mulf %575, %575 : vector<2x32xf32>
    %cst_94 = arith.constant dense<0.000000e+00> : vector<2xf32>
    %590 = vector.multi_reduction <add>, %589, %cst_94 [1] : vector<2x32xf32> to vector<2xf32>
    %591 = vector.shape_cast %590 : vector<2xf32> to vector<2x1xf32>
    %592 = arith.addf %588, %591 : vector<2x1xf32>
    %593 = arith.mulf %577, %577 : vector<2x32xf32>
    %cst_95 = arith.constant dense<0.000000e+00> : vector<2xf32>
    %594 = vector.multi_reduction <add>, %593, %cst_95 [1] : vector<2x32xf32> to vector<2xf32>
    %595 = vector.shape_cast %594 : vector<2xf32> to vector<2x1xf32>
    %596 = arith.addf %592, %595 : vector<2x1xf32>
    %597 = arith.mulf %579, %579 : vector<2x32xf32>
    %cst_96 = arith.constant dense<0.000000e+00> : vector<2xf32>
    %598 = vector.multi_reduction <add>, %597, %cst_96 [1] : vector<2x32xf32> to vector<2xf32>
    %599 = vector.shape_cast %598 : vector<2xf32> to vector<2x1xf32>
    %600 = arith.addf %596, %599 : vector<2x1xf32>
    %601 = arith.mulf %581, %581 : vector<2x32xf32>
    %cst_97 = arith.constant dense<0.000000e+00> : vector<2xf32>
    %602 = vector.multi_reduction <add>, %601, %cst_97 [1] : vector<2x32xf32> to vector<2xf32>
    %603 = vector.shape_cast %602 : vector<2xf32> to vector<2x1xf32>
    %604 = arith.addf %600, %603 : vector<2x1xf32>
    %605 = arith.mulf %583, %583 : vector<2x32xf32>
    %cst_98 = arith.constant dense<0.000000e+00> : vector<2xf32>
    %606 = vector.multi_reduction <add>, %605, %cst_98 [1] : vector<2x32xf32> to vector<2xf32>
    %607 = vector.shape_cast %606 : vector<2xf32> to vector<2x1xf32>
    %608 = arith.addf %604, %607 : vector<2x1xf32>
    %609 = arith.mulf %585, %585 : vector<2x32xf32>
    %cst_99 = arith.constant dense<0.000000e+00> : vector<2xf32>
    %610 = vector.multi_reduction <add>, %609, %cst_99 [1] : vector<2x32xf32> to vector<2xf32>
    %611 = vector.shape_cast %610 : vector<2xf32> to vector<2x1xf32>
    %612 = arith.addf %608, %611 : vector<2x1xf32>
    %cst_100 = arith.constant 2.240000e+02 : f32
    %613 = vector.broadcast %cst_100 : f32 to vector<2x1xf32>
    %614 = arith.divf %612, %613 : vector<2x1xf32>
    %cst_101 = arith.constant 9.99999974E-6 : f32
    %615 = vector.broadcast %cst_101 : f32 to vector<2x1xf32>
    %616 = arith.addf %614, %615 : vector<2x1xf32>
    %617 = math.rsqrt %616 : vector<2x1xf32>
    %618 = vector.broadcast %617 : vector<2x1xf32> to vector<2x32xf32>
    %619 = arith.mulf %573, %618 : vector<2x32xf32>
    %620 = vector.broadcast %617 : vector<2x1xf32> to vector<2x32xf32>
    %621 = arith.mulf %575, %620 : vector<2x32xf32>
    %622 = vector.broadcast %617 : vector<2x1xf32> to vector<2x32xf32>
    %623 = arith.mulf %577, %622 : vector<2x32xf32>
    %624 = vector.broadcast %617 : vector<2x1xf32> to vector<2x32xf32>
    %625 = arith.mulf %579, %624 : vector<2x32xf32>
    %626 = vector.broadcast %617 : vector<2x1xf32> to vector<2x32xf32>
    %627 = arith.mulf %581, %626 : vector<2x32xf32>
    %628 = vector.broadcast %617 : vector<2x1xf32> to vector<2x32xf32>
    %629 = arith.mulf %583, %628 : vector<2x32xf32>
    %630 = vector.broadcast %617 : vector<2x1xf32> to vector<2x32xf32>
    %631 = arith.mulf %585, %630 : vector<2x32xf32>
    %632 = tpu.concatenate %619, %621, %623, %625, %627, %629, %631 in 0 : vector<2x32xf32>, vector<2x32xf32>, vector<2x32xf32>, vector<2x32xf32>, vector<2x32xf32>, vector<2x32xf32>, vector<2x32xf32> -> vector<14x32xf32>
    %633 = arith.mulf %632, %358 : vector<14x32xf32>
    %634 = arith.addf %633, %360 : vector<14x32xf32>
    %c352 = arith.constant 352 : index
    %c0_102 = arith.constant 0 : index
    %635 = vector.load %arg1[%c352, %c0_102] : memref<448x384xbf16, #tpu.memory_space<vmem>>, vector<32x384xbf16>
    %636 = vector.extract_strided_slice %635 {offsets = [0, 0], sizes = [32, 32], strides = [1, 1]} : vector<32x384xbf16> to vector<32x32xbf16>
    %c88 = arith.constant 88 : index
    %c0_103 = arith.constant 0 : index
    %637 = vector.load %arg2[%c88, %c0_103] : memref<112x384xf32, #tpu.memory_space<vmem>>, vector<1x384xf32>
    %638 = vector.extract_strided_slice %637 {offsets = [0, 0], sizes = [1, 32], strides = [1, 1]} : vector<1x384xf32> to vector<1x32xf32>
    %c89 = arith.constant 89 : index
    %c0_104 = arith.constant 0 : index
    %639 = vector.load %arg2[%c89, %c0_104] : memref<112x384xf32, #tpu.memory_space<vmem>>, vector<1x384xf32>
    %640 = vector.extract_strided_slice %639 {offsets = [0, 0], sizes = [1, 32], strides = [1, 1]} : vector<1x384xf32> to vector<1x32xf32>
    %c90 = arith.constant 90 : index
    %c0_105 = arith.constant 0 : index
    %641 = vector.load %arg2[%c90, %c0_105] : memref<112x384xf32, #tpu.memory_space<vmem>>, vector<1x384xf32>
    %642 = vector.extract_strided_slice %641 {offsets = [0, 0], sizes = [1, 32], strides = [1, 1]} : vector<1x384xf32> to vector<1x32xf32>
    %643 = arith.truncf %634 : vector<14x32xf32> to vector<14x32xbf16>
    %cst_106 = arith.constant dense<0.000000e+00> : vector<14x32xf32>
    %644 = tpu.matmul %643, %636, %cst_106 {dimension_numbers = #tpu.dot_dimension_numbers<[1], [0], [0], [1], [0, 0, 1, 1], [], []>} : vector<14x32xbf16>, vector<32x32xbf16>, vector<14x32xf32> -> vector<14x32xf32>
    %645 = vector.broadcast %638 : vector<1x32xf32> to vector<14x32xf32>
    %646 = arith.addf %644, %645 : vector<14x32xf32>
    %cst_107 = arith.constant dense<0.000000e+00> : vector<14xf32>
    %647 = vector.multi_reduction <add>, %646, %cst_107 [1] : vector<14x32xf32> to vector<14xf32>
    %648 = vector.shape_cast %647 : vector<14xf32> to vector<14x1xf32>
    %cst_108 = arith.constant 3.200000e+01 : f32
    %649 = vector.broadcast %cst_108 : f32 to vector<14x1xf32>
    %650 = arith.divf %648, %649 : vector<14x1xf32>
    %651 = vector.broadcast %650 : vector<14x1xf32> to vector<14x32xf32>
    %652 = arith.subf %646, %651 : vector<14x32xf32>
    %653 = arith.mulf %652, %652 : vector<14x32xf32>
    %cst_109 = arith.constant dense<0.000000e+00> : vector<14xf32>
    %654 = vector.multi_reduction <add>, %653, %cst_109 [1] : vector<14x32xf32> to vector<14xf32>
    %655 = vector.shape_cast %654 : vector<14xf32> to vector<14x1xf32>
    %cst_110 = arith.constant 3.200000e+01 : f32
    %656 = vector.broadcast %cst_110 : f32 to vector<14x1xf32>
    %657 = arith.divf %655, %656 : vector<14x1xf32>
    %cst_111 = arith.constant 9.99999974E-6 : f32
    %658 = vector.broadcast %cst_111 : f32 to vector<14x1xf32>
    %659 = arith.addf %657, %658 : vector<14x1xf32>
    %660 = math.rsqrt %659 : vector<14x1xf32>
    %661 = vector.broadcast %660 : vector<14x1xf32> to vector<14x32xf32>
    %662 = arith.mulf %652, %661 : vector<14x32xf32>
    %663 = vector.broadcast %640 : vector<1x32xf32> to vector<14x32xf32>
    %664 = arith.mulf %662, %663 : vector<14x32xf32>
    %665 = vector.broadcast %642 : vector<1x32xf32> to vector<14x32xf32>
    %666 = arith.addf %664, %665 : vector<14x32xf32>
    %cst_112 = arith.constant 0.000000e+00 : f32
    %667 = vector.broadcast %cst_112 : f32 to vector<14x32xf32>
    %668 = arith.cmpf oge, %666, %667 : vector<14x32xf32>
    %cst_113 = arith.constant 2.000000e-01 : f32
    %669 = vector.broadcast %cst_113 : f32 to vector<14x32xf32>
    %670 = arith.mulf %669, %666 : vector<14x32xf32>
    %671 = arith.select %668, %666, %670 : vector<14x32xi1>, vector<14x32xf32>
    %c384 = arith.constant 384 : index
    %c0_114 = arith.constant 0 : index
    %672 = vector.load %arg1[%c384, %c0_114] : memref<448x384xbf16, #tpu.memory_space<vmem>>, vector<32x384xbf16>
    %673 = vector.extract_strided_slice %672 {offsets = [0, 0], sizes = [32, 32], strides = [1, 1]} : vector<32x384xbf16> to vector<32x32xbf16>
    %c96 = arith.constant 96 : index
    %c0_115 = arith.constant 0 : index
    %674 = vector.load %arg2[%c96, %c0_115] : memref<112x384xf32, #tpu.memory_space<vmem>>, vector<1x384xf32>
    %675 = vector.extract_strided_slice %674 {offsets = [0, 0], sizes = [1, 32], strides = [1, 1]} : vector<1x384xf32> to vector<1x32xf32>
    %c97 = arith.constant 97 : index
    %c0_116 = arith.constant 0 : index
    %676 = vector.load %arg2[%c97, %c0_116] : memref<112x384xf32, #tpu.memory_space<vmem>>, vector<1x384xf32>
    %677 = vector.extract_strided_slice %676 {offsets = [0, 0], sizes = [1, 32], strides = [1, 1]} : vector<1x384xf32> to vector<1x32xf32>
    %c98 = arith.constant 98 : index
    %c0_117 = arith.constant 0 : index
    %678 = vector.load %arg2[%c98, %c0_117] : memref<112x384xf32, #tpu.memory_space<vmem>>, vector<1x384xf32>
    %679 = vector.extract_strided_slice %678 {offsets = [0, 0], sizes = [1, 32], strides = [1, 1]} : vector<1x384xf32> to vector<1x32xf32>
    %680 = arith.truncf %671 : vector<14x32xf32> to vector<14x32xbf16>
    %cst_118 = arith.constant dense<0.000000e+00> : vector<14x32xf32>
    %681 = tpu.matmul %680, %673, %cst_118 {dimension_numbers = #tpu.dot_dimension_numbers<[1], [0], [0], [1], [0, 0, 1, 1], [], []>} : vector<14x32xbf16>, vector<32x32xbf16>, vector<14x32xf32> -> vector<14x32xf32>
    %682 = vector.broadcast %675 : vector<1x32xf32> to vector<14x32xf32>
    %683 = arith.addf %681, %682 : vector<14x32xf32>
    %cst_119 = arith.constant dense<0.000000e+00> : vector<14xf32>
    %684 = vector.multi_reduction <add>, %683, %cst_119 [1] : vector<14x32xf32> to vector<14xf32>
    %685 = vector.shape_cast %684 : vector<14xf32> to vector<14x1xf32>
    %cst_120 = arith.constant 3.200000e+01 : f32
    %686 = vector.broadcast %cst_120 : f32 to vector<14x1xf32>
    %687 = arith.divf %685, %686 : vector<14x1xf32>
    %688 = vector.broadcast %687 : vector<14x1xf32> to vector<14x32xf32>
    %689 = arith.subf %683, %688 : vector<14x32xf32>
    %690 = arith.mulf %689, %689 : vector<14x32xf32>
    %cst_121 = arith.constant dense<0.000000e+00> : vector<14xf32>
    %691 = vector.multi_reduction <add>, %690, %cst_121 [1] : vector<14x32xf32> to vector<14xf32>
    %692 = vector.shape_cast %691 : vector<14xf32> to vector<14x1xf32>
    %cst_122 = arith.constant 3.200000e+01 : f32
    %693 = vector.broadcast %cst_122 : f32 to vector<14x1xf32>
    %694 = arith.divf %692, %693 : vector<14x1xf32>
    %cst_123 = arith.constant 9.99999974E-6 : f32
    %695 = vector.broadcast %cst_123 : f32 to vector<14x1xf32>
    %696 = arith.addf %694, %695 : vector<14x1xf32>
    %697 = math.rsqrt %696 : vector<14x1xf32>
    %698 = vector.broadcast %697 : vector<14x1xf32> to vector<14x32xf32>
    %699 = arith.mulf %689, %698 : vector<14x32xf32>
    %700 = vector.broadcast %677 : vector<1x32xf32> to vector<14x32xf32>
    %701 = arith.mulf %699, %700 : vector<14x32xf32>
    %702 = vector.broadcast %679 : vector<1x32xf32> to vector<14x32xf32>
    %703 = arith.addf %701, %702 : vector<14x32xf32>
    %cst_124 = arith.constant 0.000000e+00 : f32
    %704 = vector.broadcast %cst_124 : f32 to vector<14x32xf32>
    %705 = arith.cmpf oge, %703, %704 : vector<14x32xf32>
    %cst_125 = arith.constant 2.000000e-01 : f32
    %706 = vector.broadcast %cst_125 : f32 to vector<14x32xf32>
    %707 = arith.mulf %706, %703 : vector<14x32xf32>
    %708 = arith.select %705, %703, %707 : vector<14x32xi1>, vector<14x32xf32>
    %709 = arith.addf %708, %671 : vector<14x32xf32>
    %c416 = arith.constant 416 : index
    %c0_126 = arith.constant 0 : index
    %710 = vector.load %arg1[%c416, %c0_126] : memref<448x384xbf16, #tpu.memory_space<vmem>>, vector<32x384xbf16>
    %711 = vector.extract_strided_slice %710 {offsets = [0, 0], sizes = [32, 32], strides = [1, 1]} : vector<32x384xbf16> to vector<32x32xbf16>
    %c104 = arith.constant 104 : index
    %c0_127 = arith.constant 0 : index
    %712 = vector.load %arg2[%c104, %c0_127] : memref<112x384xf32, #tpu.memory_space<vmem>>, vector<1x384xf32>
    %713 = vector.extract_strided_slice %712 {offsets = [0, 0], sizes = [1, 32], strides = [1, 1]} : vector<1x384xf32> to vector<1x32xf32>
    %c105 = arith.constant 105 : index
    %c0_128 = arith.constant 0 : index
    %714 = vector.load %arg2[%c105, %c0_128] : memref<112x384xf32, #tpu.memory_space<vmem>>, vector<1x384xf32>
    %715 = vector.extract_strided_slice %714 {offsets = [0, 0], sizes = [1, 32], strides = [1, 1]} : vector<1x384xf32> to vector<1x32xf32>
    %c106 = arith.constant 106 : index
    %c0_129 = arith.constant 0 : index
    %716 = vector.load %arg2[%c106, %c0_129] : memref<112x384xf32, #tpu.memory_space<vmem>>, vector<1x384xf32>
    %717 = vector.extract_strided_slice %716 {offsets = [0, 0], sizes = [1, 32], strides = [1, 1]} : vector<1x384xf32> to vector<1x32xf32>
    %718 = arith.truncf %709 : vector<14x32xf32> to vector<14x32xbf16>
    %cst_130 = arith.constant dense<0.000000e+00> : vector<14x32xf32>
    %719 = tpu.matmul %718, %711, %cst_130 {dimension_numbers = #tpu.dot_dimension_numbers<[1], [0], [0], [1], [0, 0, 1, 1], [], []>} : vector<14x32xbf16>, vector<32x32xbf16>, vector<14x32xf32> -> vector<14x32xf32>
    %720 = vector.broadcast %713 : vector<1x32xf32> to vector<14x32xf32>
    %721 = arith.addf %719, %720 : vector<14x32xf32>
    %cst_131 = arith.constant dense<0.000000e+00> : vector<14xf32>
    %722 = vector.multi_reduction <add>, %721, %cst_131 [1] : vector<14x32xf32> to vector<14xf32>
    %723 = vector.shape_cast %722 : vector<14xf32> to vector<14x1xf32>
    %cst_132 = arith.constant 3.200000e+01 : f32
    %724 = vector.broadcast %cst_132 : f32 to vector<14x1xf32>
    %725 = arith.divf %723, %724 : vector<14x1xf32>
    %726 = vector.broadcast %725 : vector<14x1xf32> to vector<14x32xf32>
    %727 = arith.subf %721, %726 : vector<14x32xf32>
    %728 = arith.mulf %727, %727 : vector<14x32xf32>
    %cst_133 = arith.constant dense<0.000000e+00> : vector<14xf32>
    %729 = vector.multi_reduction <add>, %728, %cst_133 [1] : vector<14x32xf32> to vector<14xf32>
    %730 = vector.shape_cast %729 : vector<14xf32> to vector<14x1xf32>
    %cst_134 = arith.constant 3.200000e+01 : f32
    %731 = vector.broadcast %cst_134 : f32 to vector<14x1xf32>
    %732 = arith.divf %730, %731 : vector<14x1xf32>
    %cst_135 = arith.constant 9.99999974E-6 : f32
    %733 = vector.broadcast %cst_135 : f32 to vector<14x1xf32>
    %734 = arith.addf %732, %733 : vector<14x1xf32>
    %735 = math.rsqrt %734 : vector<14x1xf32>
    %736 = vector.broadcast %735 : vector<14x1xf32> to vector<14x32xf32>
    %737 = arith.mulf %727, %736 : vector<14x32xf32>
    %738 = vector.broadcast %715 : vector<1x32xf32> to vector<14x32xf32>
    %739 = arith.mulf %737, %738 : vector<14x32xf32>
    %740 = vector.broadcast %717 : vector<1x32xf32> to vector<14x32xf32>
    %741 = arith.addf %739, %740 : vector<14x32xf32>
    %cst_136 = arith.constant 0.000000e+00 : f32
    %742 = vector.broadcast %cst_136 : f32 to vector<14x32xf32>
    %743 = arith.cmpf oge, %741, %742 : vector<14x32xf32>
    %cst_137 = arith.constant 2.000000e-01 : f32
    %744 = vector.broadcast %cst_137 : f32 to vector<14x32xf32>
    %745 = arith.mulf %744, %741 : vector<14x32xf32>
    %746 = arith.select %743, %741, %745 : vector<14x32xi1>, vector<14x32xf32>
    %747 = arith.addf %746, %709 : vector<14x32xf32>
    %c0_138 = arith.constant 0 : index
    %c0_139 = arith.constant 0 : index
    %748 = vector.load %arg3[%c0_138, %c0_139] : memref<14x32xf32, #tpu.memory_space<vmem>>, vector<14x32xf32>
    tpu.vector_store %arg3[%c0_138, %c0_139], %747 {strides = array<i32>} : memref<14x32xf32, #tpu.memory_space<vmem>>, vector<14x32xf32>,
    return
  }
}

</mosaic_0001>

<llo_original>
// kernel: audio_encoder_forward.1
$region0: #{audio_encoder_forward.1}
  #allocation0 [shape = 'u32[]', space=smem, size = 0x4, offset = 0x4, fixed_abs, tag = 'smem constant byte address 0x4 - core index']
  #allocation1 [shape = 'u32[72,128]{1,0:T(1,128)}', space=vmem, size = 0x9000, scoped, tag = 'internal scratch']
  %s0 = inlined_call_operand.vmem [shape: f32[14,16], index: 0, kind: input, shape index: {}]
  %s1 = inlined_call_operand.hbm [shape: bf16[448,384], index: 1, kind: input, shape index: {}]
  %s2 = inlined_call_operand.hbm [shape: f32[112,384], index: 2, kind: input, shape index: {}]
  %s3 = inlined_call_operand.vmem [shape: f32[14,32], index: 3, kind: output, shape index: {}]
  %s4 = sld [smem:[#allocation0]]
  $region30: #{audio_encoder_forward.1} parent=0
    _
  %s6 = ssub.s32 1, %s4
  %s7 = scalar_select 0, %s6, %s4
  $region1: #{audio_encoder_forward.1} parent=0
    #allocation2 [shape = 'u8[344064]{0}', space=vmem, size = 0x54000, scoped, tag = 'input window, operand 1, single buffered']
    #allocation3 [shape = 's32[1]{0}', space=sflag, size = 0x4, scoped, tag = 'scoped memory for audio_encoder_forward.1']
    #allocation4 [shape = 'u8[172032]{0}', space=vmem, size = 0x2a000, scoped, tag = 'input window, operand 2, single buffered']
    #allocation5 [shape = 's32[1]{0}', space=sflag, size = 0x4, scoped, tag = 'scoped memory for audio_encoder_forward.1']
    %8 = vsyncpa [#allocation3], 0
    %9 = vsyncpa [#allocation5], 0
    // Predicated region
    $region2: #{audio_encoder_forward.1} parent=1 // pred_check
      _
    $region3: #{audio_encoder_forward.1} parent=1 // pred_check_branch
      %11 = sbr.rel (0) target = $region5
    $region4: #{audio_encoder_forward.1} parent=1 // pred_region
      _
    $region5: #{audio_encoder_forward.1} parent=1 // pred_fallthru
      _
    // Predicated region
    $region6: #{audio_encoder_forward.1} parent=1 // pred_check
      _
    $region7: #{audio_encoder_forward.1} parent=1 // pred_check_branch
      %13 = sbr.rel (0) target = $region9
    $region8: #{audio_encoder_forward.1} parent=1 // pred_region
      %15 = vsyncadd [#allocation3], 0
      %s16 = sshll.u32 %s1, 4
      %s17 = int_to_ptr.hbm [resolvable:$true] %s16
      %s18 = sshll.u32 [#allocation2], 4
      %s19 = int_to_ptr.vmem [resolvable:$true] %s18
      %24 = dma.hbm_to_vmem [thread:$0]  %s17, 10752, %s19, [#allocation3], 192, 192, 12
    $region9: #{audio_encoder_forward.1} parent=1 // pred_fallthru
      _
    // Predicated region
    $region10: #{audio_encoder_forward.1} parent=1 // pred_check
      _
    $region11: #{audio_encoder_forward.1} parent=1 // pred_check_branch
      %26 = sbr.rel (0) target = $region13
    $region12: #{audio_encoder_forward.1} parent=1 // pred_region
      %28 = vsyncadd [#allocation5], 0
      %s29 = sshll.u32 %s2, 4
      %s30 = int_to_ptr.hbm [resolvable:$true] %s29
      %s31 = sshll.u32 [#allocation4], 4
      %s32 = int_to_ptr.vmem [resolvable:$true] %s31
      %37 = dma.hbm_to_vmem [thread:$0]  %s30, 5376, %s32, [#allocation5], 384, 384, 24
    $region13: #{audio_encoder_forward.1} parent=1 // pred_fallthru
      _
    // Predicated region
    $region14: #{audio_encoder_forward.1} parent=1 // pred_check
      _
    $region15: #{audio_encoder_forward.1} parent=1 // pred_check_branch
      %39 = sbr.rel (0) target = $region17
    $region16: #{audio_encoder_forward.1} parent=1 // pred_region
      %41 = dma.done [#allocation3], 10752
    $region17: #{audio_encoder_forward.1} parent=1 // pred_fallthru
      _
    // Predicated region
    $region18: #{audio_encoder_forward.1} parent=1 // pred_check
      _
    $region19: #{audio_encoder_forward.1} parent=1 // pred_check_branch
      %43 = sbr.rel (0) target = $region21
    $region20: #{audio_encoder_forward.1} parent=1 // pred_region
      %45 = dma.done [#allocation5], 5376
    $region21: #{audio_encoder_forward.1} parent=1 // pred_fallthru
      _
    %v47 = vld [vmem:[#allocation2] sm:$0xff]
    %v48 = vld [vmem:[#allocation2 + $0xc] sm:$0xff]
    %v49 = vld [vmem:[#allocation2 + $0x18] sm:$0xff]
    %v50 = vld [vmem:[#allocation2 + $0x24] sm:$0xff]
    %v51 = vld [vmem:[#allocation4] ss:$8 sm:$0x7]
    %s52 = scalar_lea.vmem [#allocation4], 1
    %v53 = vld [vmem:[%s52] ss:$8 sm:$0x7]
    %s54 = scalar_lea.vmem [#allocation4], 2
    %v55 = vld [vmem:[%s54] ss:$8 sm:$0x7]
    %s56 = scalar_lea.vmem [#allocation4], 3
    %v57 = vld [vmem:[%s56] ss:$8 sm:$0x7]
    %v58 = vld [vmem:[%s0] sm:$0xff]
    %v59 = vld [vmem:[%s0 + $0x8] sm:$0x3f]
    %v60 = vpack.c.bf16 %v59, %v58
    %v62 = vperm.slane %v51, 0
    %v66 = vunpack.c.l.b16 %v47
    %v67 = vunpack.c.l.b16 %v48
    %v68 = vpack.c.b16 %v67, %v66
    %vm70 = vcmask 130048
    %v72 = vsel %vm70, %v60, 0
    %74 = vmatpush.bf16.msra.mxu0 0
    %75 = vmatpush.bf16.msra.mxu0 0
    %76 = vmatpush.bf16.msra.mxu0 0
    %77 = vmatpush.bf16.msra.mxu0 0
    %78 = vmatpush.bf16.msra.mxu0 0
    %79 = vmatpush.bf16.msra.mxu0 0
    %80 = vmatpush.bf16.msra.mxu0 0
    %81 = vmatpush.bf16.msra.mxu0 %v68
    %82 = vmatmul.bf16.gmra.mxu0 %v72
    %v83 = vpop.f32.mrf.mxu0
    %v84 = vadd.f32 %v62, %v83
    %v85 = vpop.f32.mrf.mxu0
    %v86 = vadd.f32 %v62, %v85
    %87 = vdwg.mxu0
    %v88 = vsel %vm70, %v84, 0.0
    %89 = vadd.xlane.f32.xlu0 %v88
    %v90 = vpop.xlane.xlu0 %89
    %vm91 = vcmask 128000
    %v92 = vsel %vm91, %v86, 0.0
    %93 = vadd.xlane.f32.xlu0 %v92
    %v94 = vpop.xlane.xlu0 %93
    %v95 = vrcp.pop 16.0
    %v96 = vmul.f32 16.0, %v95
    %v97 = vsub.f32 1.0, %v96
    %v98 = vmul.f32 %v95, %v97
    %v99 = vadd.f32 %v95, %v98
    %vm100 = vweird.f32 %v95
    %v101 = vsel %vm100, %v95, %v99
    %v102 = vmul.f32 %v90, %v101
    %v103 = vmul.f32 %v94, %v101
    %v104 = vsub.f32 %v84, %v102
    %v105 = vsub.f32 %v86, %v103
    %v106 = vmul.f32 %v104, %v104
    %v107 = vmul.f32 %v105, %v105
    %v108 = vsel %vm70, %v106, 0.0
    %109 = vadd.xlane.f32.xlu0 %v108
    %v110 = vpop.xlane.xlu0 %109
    %v111 = vsel %vm91, %v107, 0.0
    %112 = vadd.xlane.f32.xlu0 %v111
    %v113 = vpop.xlane.xlu0 %112
    %v114 = vmul.f32 %v110, %v101
    %v115 = vmul.f32 %v113, %v101
    %v116 = vadd.f32 %v114, 1e-05
    %v117 = vadd.f32 %v115, 1e-05
    %v118 = vrsqrt.pop %v116
    %v119 = vmul.f32 %v118, %v116
    %v120 = vmul.f32 %v119, %v118
    %v121 = vmul.f32 0.5, %v120
    %v122 = vsub.f32 1.5, %v121
    %v123 = vmul.f32 %v118, %v122
    %vm124 = vweird.f32 %v116
    %vm125 = vweird.f32 %v118
    %vm126 = vmor %vm124, %vm125
    %v127 = vsel %vm126, %v118, %v123
    %v128 = vrsqrt.pop %v117
    %v129 = vmul.f32 %v128, %v117
    %v130 = vmul.f32 %v129, %v128
    %v131 = vmul.f32 0.5, %v130
    %v132 = vsub.f32 1.5, %v131
    %v133 = vmul.f32 %v128, %v132
    %vm134 = vweird.f32 %v117
    %vm135 = vweird.f32 %v128
    %vm136 = vmor %vm134, %vm135
    %v137 = vsel %vm136, %v128, %v133
    %v138 = vmul.f32 %v104, %v127
    %v139 = vmul.f32 %v105, %v137
    %v141 = vperm.slane %v53, 0
    %v143 = vmul.f32 %v138, %v141
    %v144 = vmul.f32 %v139, %v141
    %v146 = vperm.slane %v55, 0
    %v148 = vadd.f32 %v143, %v146
    %v149 = vadd.f32 %v144, %v146
    %vm150 = vcmp.ge.f32.partialorder %v148, 0.0
    %vm151 = vcmp.ge.f32.partialorder %v149, 0.0
    %v152 = vmul.f32 %v148, 0.2
    %v153 = vmul.f32 %v149, 0.2
    %v154 = vsel %vm150, %v148, %v152
    %v155 = vsel %vm151, %v149, %v153
    %v156 = vpack.c.bf16 %v155, %v154
    %v158 = vperm.slane %v57, 0
    %v162 = vunpack.c.l.b16 %v49
    %v163 = vunpack.c.l.b16 %v50
    %v164 = vpack.c.b16 %v163, %v162
    %v167 = vsel %vm70, %v156, 0
    %169 = vmatpush.bf16.msra.mxu0 0
    %170 = vmatpush.bf16.msra.mxu0 0
    %171 = vmatpush.bf16.msra.mxu0 0
    %172 = vmatpush.bf16.msra.mxu0 0
    %173 = vmatpush.bf16.msra.mxu0 0
    %174 = vmatpush.bf16.msra.mxu0 0
    %175 = vmatpush.bf16.msra.mxu0 0
    %176 = vmatpush.bf16.msra.mxu0 %v164
    %177 = vmatmul.bf16.gmra.mxu0 %v167
    %v178 = vpop.f32.mrf.mxu0
    %v179 = vadd.f32 %v158, %v178
    %v180 = vpop.f32.mrf.mxu0
    %v181 = vadd.f32 %v158, %v180
    %182 = vdwg.mxu0
    %v183 = vlaneseq
    %v184 = vand.u32 %v183, 127
    %v185 = vadd.s32 %v184, 128
    %v186 = vadd.s32 %v184, 256
    %vm187 = vcmp.lt.s32.totalorder %v184, 0
    %v188 = vsub.s32 0, %v184
    %v189 = vsel %vm187, %v188, %v184
    %v190 = vshrl.u32 %v189, 7
    %v191 = vand.u32 %v189, 127
    %v192 = vsub.s32 0, %v191
    %v193 = vsel %vm187, %v192, %v191
    %vm194 = vcmp.lt.s32.totalorder %v185, 0
    %v195 = vsub.s32 0, %v185
    %v196 = vsel %vm194, %v195, %v185
    %v197 = vshrl.u32 %v196, 7
    %v198 = vand.u32 %v196, 127
    %v199 = vsub.s32 0, %v198
    %v200 = vsel %vm194, %v199, %v198
    %vm201 = vcmp.lt.s32.totalorder %v186, 0
    %v202 = vsub.s32 0, %v186
    %v203 = vsel %vm201, %v202, %v186
    %v204 = vshrl.u32 %v203, 7
    %v205 = vand.u32 %v203, 127
    %v206 = vsub.s32 0, %v205
    %v207 = vsel %vm201, %v206, %v205
    %vm208 = vcmp.ne.s32.totalorder %v193, 0
    %vm209 = vcmp.ne.s32.totalorder %v200, 0
    %vm210 = vcmp.ne.s32.totalorder %v207, 0
    %vm211 = vcmp.lt.s32.totalorder %v193, 0
    %vm212 = vcmp.lt.s32.totalorder %v200, 0
    %vm213 = vcmp.lt.s32.totalorder %v207, 0
    %vm214 = vmand %vm211, %vm208
    %vm215 = vmand %vm212, %vm209
    %vm216 = vmand %vm213, %vm210
    %v217 = vadd.s32 %v193, 128
    %v218 = vadd.s32 %v200, 128
    %v219 = vadd.s32 %v207, 128
    %v220 = vsel %vm214, %v217, %v193
    %v221 = vsel %vm215, %v218, %v200
    %v222 = vsel %vm216, %v219, %v207
    %vm223 = vcmp.lt.s32.totalorder %v220, 32
    %vm224 = vcmp.lt.s32.totalorder %v221, 32
    %vm225 = vcmp.lt.s32.totalorder %v222, 32
    %v226 = vld [vmem:[#allocation2 + $0x30] sm:$0xff]
    %v227 = vld [vmem:[#allocation2 + $0x38] sm:$0xf]
    %v228 = vld [vmem:[#allocation2 + $0x3c] sm:$0xff]
    %v229 = vld [vmem:[#allocation2 + $0x44] sm:$0xf]
    %v230 = vld [vmem:[#allocation2 + $0x48] sm:$0xff]
    %v231 = vld [vmem:[#allocation2 + $0x50] sm:$0xf]
    %v232 = vld [vmem:[#allocation2 + $0x54] sm:$0xff]
    %v233 = vld [vmem:[#allocation2 + $0x5c] sm:$0xf]
    %v234 = vld [vmem:[#allocation2 + $0x60] sm:$0xff]
    %v235 = vld [vmem:[#allocation2 + $0x68] sm:$0xf]
    %v236 = vld [vmem:[#allocation2 + $0x6c] sm:$0xff]
    %v237 = vld [vmem:[#allocation2 + $0x74] sm:$0xf]
    %v238 = vld [vmem:[#allocation2 + $0x78] sm:$0xff]
    %v239 = vld [vmem:[#allocation2 + $0x80] sm:$0xf]
    %v240 = vld [vmem:[#allocation2 + $0x84] sm:$0xff]
    %v241 = vld [vmem:[#allocation2 + $0x8c] sm:$0xf]
    %v242 = vld [vmem:[#allocation2 + $0x90] sm:$0xff]
    %v243 = vld [vmem:[#allocation2 + $0x98] sm:$0xf]
    %v244 = vld [vmem:[#allocation2 + $0x9c] sm:$0xff]
    %v245 = vld [vmem:[#allocation2 + $0xa4] sm:$0xf]
    %v246 = vld [vmem:[#allocation2 + $0xa8] sm:$0xff]
    %v247 = vld [vmem:[#allocation2 + $0xb0] sm:$0xf]
    %v248 = vld [vmem:[#allocation2 + $0xb4] sm:$0xff]
    %v249 = vld [vmem:[#allocation2 + $0xbc] sm:$0xf]
    %v250 = vld [vmem:[#allocation2 + $0xc0] sm:$0xff]
    %v251 = vld [vmem:[#allocation2 + $0xc8] sm:$0xf]
    %v252 = vld [vmem:[#allocation2 + $0xcc] sm:$0xff]
    %v253 = vld [vmem:[#allocation2 + $0xd4] sm:$0xf]
    %v254 = vld [vmem:[#allocation2 + $0xd8] sm:$0xff]
    %v255 = vld [vmem:[#allocation2 + $0xe0] sm:$0xf]
    %v256 = vld [vmem:[#allocation2 + $0xe4] sm:$0xff]
    %v257 = vld [vmem:[#allocation2 + $0xec] sm:$0xf]
    %v258 = vld [vmem:[#allocation2 + $0xf0] sm:$0xff]
    %v259 = vld [vmem:[#allocation2 + $0xf8] sm:$0xf]
    %v260 = vld [vmem:[#allocation2 + $0xfc] sm:$0xff]
    %v261 = vld [vmem:[#allocation2 + $0x104] sm:$0xf]
    %v262 = vld [vmem:[#allocation2 + $0x108] sm:$0xff]
    %v263 = vld [vmem:[#allocation2 + $0x110] sm:$0xf]
    %v264 = vld [vmem:[#allocation2 + $0x114] sm:$0xff]
    %v265 = vld [vmem:[#allocation2 + $0x11c] sm:$0xf]
    %s266 = scalar_lea.vmem [#allocation4], 24
    %v267 = vld [vmem:[%s266] ss:$8 sm:$0x7]
    %s268 = scalar_lea.vmem [#allocation4], 25
    %v269 = vld [vmem:[%s268] ss:$8 sm:$0x7]
    %v271 = vperm.slane %v269, 0
    %v273 = vld [vmem:[#allocation4 + $0x30] sm:$0xff]
    %v274 = vld [vmem:[#allocation4 + $0x48] sm:$0x3f]
    %v275 = vld [vmem:[#allocation4 + $0x60] sm:$0xff]
    %v276 = vld [vmem:[#allocation4 + $0x78] sm:$0x3f]
    %v277 = vpack.c.bf16 %v181, %v179
    %v279 = vperm.slane %v267, 0
    %v280 = vperm.slane %v267, 1
    %v281 = vperm.slane %v267, 2
    %v293 = vunpack.c.l.b16 %v226
    %v294 = vunpack.c.h.b16 %v226
    %v295 = vunpack.c.l.b16 %v227
    %v296 = vunpack.c.l.b16 %v228
    %v297 = vunpack.c.h.b16 %v228
    %v298 = vunpack.c.l.b16 %v229
    %v299 = vunpack.c.l.b16 %v230
    %v300 = vunpack.c.h.b16 %v230
    %v301 = vunpack.c.l.b16 %v231
    %v302 = vunpack.c.l.b16 %v232
    %v303 = vunpack.c.h.b16 %v232
    %v304 = vunpack.c.l.b16 %v233
    %v305 = vpack.c.b16 %v296, %v293
    %v306 = vpack.c.b16 %v297, %v294
    %v307 = vpack.c.b16 %v298, %v295
    %v308 = vpack.c.b16 %v302, %v299
    %v309 = vpack.c.b16 %v303, %v300
    %v310 = vpack.c.b16 %v304, %v301
    %vm317 = vcmask 261120
    %v319 = vsel %vm317, %v277, 0
    %321 = vmatpush.bf16.msra.mxu0 0
    %322 = vmatpush.bf16.msra.mxu0 0
    %323 = vmatpush.bf16.msra.mxu0 0
    %324 = vmatpush.bf16.msra.mxu0 0
    %325 = vmatpush.bf16.msra.mxu0 0
    %326 = vmatpush.bf16.msra.mxu0 0
    %327 = vmatpush.bf16.msra.mxu0 %v308
    %328 = vmatpush.bf16.msra.mxu0 %v305
    %329 = vmatmul.bf16.gmra.mxu0 %v319
    %v330 = vpop.f32.mrf.mxu0
    %v331 = vadd.f32 %v279, %v330
    %v332 = vpop.f32.mrf.mxu0
    %v333 = vadd.f32 %v279, %v332
    %334 = vdwg.mxu0
    %335 = vmatpush.bf16.msra.mxu0 0
    %336 = vmatpush.bf16.msra.mxu0 0
    %337 = vmatpush.bf16.msra.mxu0 0
    %338 = vmatpush.bf16.msra.mxu0 0
    %339 = vmatpush.bf16.msra.mxu0 0
    %340 = vmatpush.bf16.msra.mxu0 0
    %341 = vmatpush.bf16.msra.mxu0 %v309
    %342 = vmatpush.bf16.msra.mxu0 %v306
    %343 = vmatmul.bf16.gmra.mxu0 %v319
    %v344 = vpop.f32.mrf.mxu0
    %v345 = vadd.f32 %v280, %v344
    %v346 = vpop.f32.mrf.mxu0
    %v347 = vadd.f32 %v280, %v346
    %348 = vdwg.mxu0
    %349 = vmatpush.bf16.msra.mxu0 0
    %350 = vmatpush.bf16.msra.mxu0 0
    %351 = vmatpush.bf16.msra.mxu0 0
    %352 = vmatpush.bf16.msra.mxu0 0
    %353 = vmatpush.bf16.msra.mxu0 0
    %354 = vmatpush.bf16.msra.mxu0 0
    %355 = vmatpush.bf16.msra.mxu0 %v310
    %356 = vmatpush.bf16.msra.mxu0 %v307
    %357 = vmatmul.bf16.gmra.mxu0 %v319
    %v358 = vpop.f32.mrf.mxu0
    %v359 = vadd.f32 %v281, %v358
    %v360 = vpop.f32.mrf.mxu0
    %v361 = vadd.f32 %v281, %v360
    %362 = vdwg.mxu0
    %v366 = vrot.slane %v333, 4
    %v367 = vrot.slane %v347, 4
    %v368 = vrot.slane %v361, 4
    %v372 = vsel %vm223, %v331, %v366
    %v373 = vsel %vm224, %v345, %v367
    %v374 = vsel %vm225, %v359, %v368
    %v375 = vsel %vm223, %v331, %v333
    %v376 = vsel %vm224, %v345, %v347
    %v377 = vsel %vm225, %v359, %v361
    %v381 = vrot.slane %v331, 4
    %v382 = vrot.slane %v345, 4
    %v383 = vrot.slane %v359, 4
    %v387 = vsel %vm223, %v333, %v381
    %v388 = vsel %vm224, %v347, %v382
    %v389 = vsel %vm225, %v361, %v383
    %v390 = vsel %vm223, %v333, %v331
    %v391 = vsel %vm224, %v347, %v345
    %v392 = vsel %vm225, %v361, %v359
    %v425 = vunpack.c.l.b16 %v234
    %v426 = vunpack.c.h.b16 %v234
    %v427 = vunpack.c.l.b16 %v235
    %v428 = vunpack.c.l.b16 %v236
    %v429 = vunpack.c.h.b16 %v236
    %v430 = vunpack.c.l.b16 %v237
    %v431 = vunpack.c.l.b16 %v238
    %v432 = vunpack.c.h.b16 %v238
    %v433 = vunpack.c.l.b16 %v239
    %v434 = vunpack.c.l.b16 %v240
    %v435 = vunpack.c.h.b16 %v240
    %v436 = vunpack.c.l.b16 %v241
    %v437 = vunpack.c.l.b16 %v242
    %v438 = vunpack.c.h.b16 %v242
    %v439 = vunpack.c.l.b16 %v243
    %v440 = vunpack.c.l.b16 %v244
    %v441 = vunpack.c.h.b16 %v244
    %v442 = vunpack.c.l.b16 %v245
    %v443 = vunpack.c.l.b16 %v246
    %v444 = vunpack.c.h.b16 %v246
    %v445 = vunpack.c.l.b16 %v247
    %v446 = vunpack.c.l.b16 %v248
    %v447 = vunpack.c.h.b16 %v248
    %v448 = vunpack.c.l.b16 %v249
    %v449 = vunpack.c.l.b16 %v250
    %v450 = vunpack.c.h.b16 %v250
    %v451 = vunpack.c.l.b16 %v251
    %v452 = vunpack.c.l.b16 %v252
    %v453 = vunpack.c.h.b16 %v252
    %v454 = vunpack.c.l.b16 %v253
    %v455 = vunpack.c.l.b16 %v254
    %v456 = vunpack.c.h.b16 %v254
    %v457 = vunpack.c.l.b16 %v255
    %v458 = vunpack.c.l.b16 %v256
    %v459 = vunpack.c.h.b16 %v256
    %v460 = vunpack.c.l.b16 %v257
    %v461 = vunpack.c.l.b16 %v258
    %v462 = vunpack.c.h.b16 %v258
    %v463 = vunpack.c.l.b16 %v259
    %v464 = vunpack.c.l.b16 %v260
    %v465 = vunpack.c.h.b16 %v260
    %v466 = vunpack.c.l.b16 %v261
    %v467 = vunpack.c.l.b16 %v262
    %v468 = vunpack.c.h.b16 %v262
    %v469 = vunpack.c.l.b16 %v263
    %v470 = vunpack.c.l.b16 %v264
    %v471 = vunpack.c.h.b16 %v264
    %v472 = vunpack.c.l.b16 %v265
    %v473 = vpack.c.b16 %v428, %v425
    %v474 = vpack.c.b16 %v429, %v426
    %v475 = vpack.c.b16 %v430, %v427
    %v476 = vpack.c.b16 %v434, %v431
    %v477 = vpack.c.b16 %v435, %v432
    %v478 = vpack.c.b16 %v436, %v433
    %v479 = vpack.c.b16 %v440, %v437
    %v480 = vpack.c.b16 %v441, %v438
    %v481 = vpack.c.b16 %v442, %v439
    %v482 = vpack.c.b16 %v446, %v443
    %v483 = vpack.c.b16 %v447, %v444
    %v484 = vpack.c.b16 %v448, %v445
    %v485 = vpack.c.b16 %v452, %v449
    %v486 = vpack.c.b16 %v453, %v450
    %v487 = vpack.c.b16 %v454, %v451
    %v488 = vpack.c.b16 %v458, %v455
    %v489 = vpack.c.b16 %v459, %v456
    %v490 = vpack.c.b16 %v460, %v457
    %v491 = vpack.c.b16 %v464, %v461
    %v492 = vpack.c.b16 %v465, %v462
    %v493 = vpack.c.b16 %v466, %v463
    %v494 = vpack.c.b16 %v470, %v467
    %v495 = vpack.c.b16 %v471, %v468
    %v496 = vpack.c.b16 %v472, %v469
    %521 = vmatpush.bf16.msra.mxu0 %v494
    %522 = vmatpush.bf16.msra.mxu0 %v491
    %523 = vmatpush.bf16.msra.mxu0 %v488
    %524 = vmatpush.bf16.msra.mxu0 %v485
    %525 = vmatpush.bf16.msra.mxu0 %v482
    %526 = vmatpush.bf16.msra.mxu0 %v479
    %527 = vmatpush.bf16.msra.mxu0 %v476
    %528 = vmatpush.bf16.msra.mxu0 %v473
    %529 = vmatmul.bf16.gmra.mxu0 0
    %v530 = vpop.f32.mrf.mxu0
    %v531 = vadd.f32 0.0, %v530
    %v532 = vpop.f32.mrf.mxu0
    %533 = vdwg.mxu0
    %534 = vmatpush.bf16.msra.mxu0 %v495
    %535 = vmatpush.bf16.msra.mxu0 %v492
    %536 = vmatpush.bf16.msra.mxu0 %v489
    %537 = vmatpush.bf16.msra.mxu0 %v486
    %538 = vmatpush.bf16.msra.mxu0 %v483
    %539 = vmatpush.bf16.msra.mxu0 %v480
    %540 = vmatpush.bf16.msra.mxu0 %v477
    %541 = vmatpush.bf16.msra.mxu0 %v474
    %542 = vmatmul.bf16.gmra.mxu0 0
    %v543 = vpop.f32.mrf.mxu0
    %v544 = vadd.f32 0.0, %v543
    %v545 = vpop.f32.mrf.mxu0
    %546 = vdwg.mxu0
    %547 = vmatpush.bf16.msra.mxu0 %v496
    %548 = vmatpush.bf16.msra.mxu0 %v493
    %549 = vmatpush.bf16.msra.mxu0 %v490
    %550 = vmatpush.bf16.msra.mxu0 %v487
    %551 = vmatpush.bf16.msra.mxu0 %v484
    %552 = vmatpush.bf16.msra.mxu0 %v481
    %553 = vmatpush.bf16.msra.mxu0 %v478
    %554 = vmatpush.bf16.msra.mxu0 %v475
    %555 = vmatmul.bf16.gmra.mxu0 0
    %v556 = vpop.f32.mrf.mxu0
    %v557 = vadd.f32 0.0, %v556
    %v558 = vpop.f32.mrf.mxu0
    %559 = vdwg.mxu0
    %v560 = vadd.f32 %v372, %v531
    %v561 = vadd.f32 %v373, %v544
    %v562 = vxor.u32 %v560, 2147483648
    %v563 = vxor.u32 %v561, 2147483648
    %v564 = vmul.f32 %v562, 1.442695
    %v565 = vpow.pop %v564
    %v566 = vmul.f32 %v563, 1.442695
    %v567 = vpow.pop %v566
    %v568 = vadd.f32 %v565, 1.0
    %v569 = vadd.f32 %v567, 1.0
    %v570 = vrcp.pop %v568
    %v571 = vmul.f32 %v568, %v570
    %v572 = vsub.f32 1.0, %v571
    %v573 = vmul.f32 %v570, %v572
    %v574 = vadd.f32 %v570, %v573
    %vm575 = vweird.f32 %v568
    %vm576 = vweird.f32 %v570
    %vm577 = vmor %vm575, %vm576
    %v578 = vsel %vm577, %v570, %v574
    %v579 = vand.u32 2147483647, %v568
    %vm580 = vcmp.eq.f32.partialorder %v579, 8.507059e+37
    %v581 = vand.u32 %v568, 2147483648
    %v582 = vor.u32 1.1754944e-38, %v581
    %v583 = vsel %vm580, %v582, %v578
    %v584 = vmul.f32 1.0, %v583
    %v585 = vrcp.pop %v569
    %v586 = vmul.f32 %v569, %v585
    %v587 = vsub.f32 1.0, %v586
    %v588 = vmul.f32 %v585, %v587
    %v589 = vadd.f32 %v585, %v588
    %vm590 = vweird.f32 %v569
    %vm591 = vweird.f32 %v585
    %vm592 = vmor %vm590, %vm591
    %v593 = vsel %vm592, %v585, %v589
    %v594 = vand.u32 2147483647, %v569
    %vm595 = vcmp.eq.f32.partialorder %v594, 8.507059e+37
    %v596 = vand.u32 %v569, 2147483648
    %v597 = vor.u32 1.1754944e-38, %v596
    %v598 = vsel %vm595, %v597, %v593
    %v599 = vmul.f32 1.0, %v598
    %v600 = vadd.f32 %v557, %v271
    %v601 = vmul.f32 %v584, %v600
    %v602 = vadd.f32 %v374, %v601
    %v603 = vtanh.pop %v602
    %v604 = vsub.f32 1.0, %v599
    %v605 = vmul.f32 %v604, %v603
    %v606 = vmul.f32 %v599, 0.0
    %v607 = vadd.f32 %v605, %v606
    %v608 = vpack.c.bf16 %v607, %v607
    %609 = vmatpush.bf16.msra.mxu0 %v494
    %610 = vmatpush.bf16.msra.mxu0 %v491
    %611 = vmatpush.bf16.msra.mxu0 %v488
    %612 = vmatpush.bf16.msra.mxu0 %v485
    %613 = vmatpush.bf16.msra.mxu0 %v482
    %614 = vmatpush.bf16.msra.mxu0 %v479
    %615 = vmatpush.bf16.msra.mxu0 %v476
    %616 = vmatpush.bf16.msra.mxu0 %v473
    %617 = vmatmul.bf16.gmra.mxu0 %v608
    %v618 = vpop.f32.mrf.mxu0
    %v619 = vadd.f32 0.0, %v618
    %v620 = vpop.f32.mrf.mxu0
    %621 = vdwg.mxu0
    %622 = vmatpush.bf16.msra.mxu0 %v495
    %623 = vmatpush.bf16.msra.mxu0 %v492
    %624 = vmatpush.bf16.msra.mxu0 %v489
    %625 = vmatpush.bf16.msra.mxu0 %v486
    %626 = vmatpush.bf16.msra.mxu0 %v483
    %627 = vmatpush.bf16.msra.mxu0 %v480
    %628 = vmatpush.bf16.msra.mxu0 %v477
    %629 = vmatpush.bf16.msra.mxu0 %v474
    %630 = vmatmul.bf16.gmra.mxu0 %v608
    %v631 = vpop.f32.mrf.mxu0
    %v632 = vadd.f32 0.0, %v631
    %v633 = vpop.f32.mrf.mxu0
    %634 = vdwg.mxu0
    %635 = vmatpush.bf16.msra.mxu0 %v496
    %636 = vmatpush.bf16.msra.mxu0 %v493
    %637 = vmatpush.bf16.msra.mxu0 %v490
    %638 = vmatpush.bf16.msra.mxu0 %v487
    %639 = vmatpush.bf16.msra.mxu0 %v484
    %640 = vmatpush.bf16.msra.mxu0 %v481
    %641 = vmatpush.bf16.msra.mxu0 %v478
    %642 = vmatpush.bf16.msra.mxu0 %v475
    %643 = vmatmul.bf16.gmra.mxu0 %v608
    %v644 = vpop.f32.mrf.mxu0
    %v645 = vadd.f32 0.0, %v644
    %v646 = vpop.f32.mrf.mxu0
    %647 = vdwg.mxu0
    %v650 = vrot.slane %v619, 6
    %v651 = vrot.slane %v632, 6
    %v654 = vadd.f32 %v375, %v650
    %v655 = vadd.f32 %v376, %v651
    %v656 = vxor.u32 %v654, 2147483648
    %v657 = vxor.u32 %v655, 2147483648
    %v658 = vmul.f32 %v656, 1.442695
    %v659 = vpow.pop %v658
    %v660 = vmul.f32 %v657, 1.442695
    %v661 = vpow.pop %v660
    %v662 = vadd.f32 %v659, 1.0
    %v663 = vadd.f32 %v661, 1.0
    %v664 = vrcp.pop %v662
    %v665 = vmul.f32 %v662, %v664
    %v666 = vsub.f32 1.0, %v665
    %v667 = vmul.f32 %v664, %v666
    %v668 = vadd.f32 %v664, %v667
    %vm669 = vweird.f32 %v662
    %vm670 = vweird.f32 %v664
    %vm671 = vmor %vm669, %vm670
    %v672 = vsel %vm671, %v664, %v668
    %v673 = vand.u32 2147483647, %v662
    %vm674 = vcmp.eq.f32.partialorder %v673, 8.507059e+37
    %v675 = vand.u32 %v662, 2147483648
    %v676 = vor.u32 1.1754944e-38, %v675
    %v677 = vsel %vm674, %v676, %v672
    %v678 = vmul.f32 1.0, %v677
    %v679 = vrcp.pop %v663
    %v680 = vmul.f32 %v663, %v679
    %v681 = vsub.f32 1.0, %v680
    %v682 = vmul.f32 %v679, %v681
    %v683 = vadd.f32 %v679, %v682
    %vm684 = vweird.f32 %v663
    %vm685 = vweird.f32 %v679
    %vm686 = vmor %vm684, %vm685
    %v687 = vsel %vm686, %v679, %v683
    %v688 = vand.u32 2147483647, %v663
    %vm689 = vcmp.eq.f32.partialorder %v688, 8.507059e+37
    %v690 = vand.u32 %v663, 2147483648
    %v691 = vor.u32 1.1754944e-38, %v690
    %v692 = vsel %vm689, %v691, %v687
    %v693 = vmul.f32 1.0, %v692
    %v694 = vadd.f32 %v645, %v271
    %v696 = vrot.slane %v694, 6
    %v698 = vmul.f32 %v678, %v696
    %v699 = vadd.f32 %v377, %v698
    %v700 = vtanh.pop %v699
    %v701 = vsub.f32 1.0, %v693
    %v702 = vmul.f32 %v701, %v700
    %v704 = vrot.slane %v607, 6
    %v706 = vmul.f32 %v693, %v704
    %v707 = vadd.f32 %v702, %v706
    %v708 = vpack.c.bf16 %v707, %v707
    %v710 = vrot.slane %v708, 1
    %712 = vmatpush.bf16.msra.mxu0 %v494
    %713 = vmatpush.bf16.msra.mxu0 %v491
    %714 = vmatpush.bf16.msra.mxu0 %v488
    %715 = vmatpush.bf16.msra.mxu0 %v485
    %716 = vmatpush.bf16.msra.mxu0 %v482
    %717 = vmatpush.bf16.msra.mxu0 %v479
    %718 = vmatpush.bf16.msra.mxu0 %v476
    %719 = vmatpush.bf16.msra.mxu0 %v473
    %720 = vmatmul.bf16.gmra.mxu0 %v710
    %v721 = vpop.f32.mrf.mxu0
    %v722 = vadd.f32 0.0, %v721
    %v723 = vpop.f32.mrf.mxu0
    %724 = vdwg.mxu0
    %725 = vmatpush.bf16.msra.mxu0 %v495
    %726 = vmatpush.bf16.msra.mxu0 %v492
    %727 = vmatpush.bf16.msra.mxu0 %v489
    %728 = vmatpush.bf16.msra.mxu0 %v486
    %729 = vmatpush.bf16.msra.mxu0 %v483
    %730 = vmatpush.bf16.msra.mxu0 %v480
    %731 = vmatpush.bf16.msra.mxu0 %v477
    %732 = vmatpush.bf16.msra.mxu0 %v474
    %733 = vmatmul.bf16.gmra.mxu0 %v710
    %v734 = vpop.f32.mrf.mxu0
    %v735 = vadd.f32 0.0, %v734
    %v736 = vpop.f32.mrf.mxu0
    %737 = vdwg.mxu0
    %738 = vmatpush.bf16.msra.mxu0 %v496
    %739 = vmatpush.bf16.msra.mxu0 %v493
    %740 = vmatpush.bf16.msra.mxu0 %v490
    %741 = vmatpush.bf16.msra.mxu0 %v487
    %742 = vmatpush.bf16.msra.mxu0 %v484
    %743 = vmatpush.bf16.msra.mxu0 %v481
    %744 = vmatpush.bf16.msra.mxu0 %v478
    %745 = vmatpush.bf16.msra.mxu0 %v475
    %746 = vmatmul.bf16.gmra.mxu0 %v710
    %v747 = vpop.f32.mrf.mxu0
    %v748 = vadd.f32 0.0, %v747
    %v749 = vpop.f32.mrf.mxu0
    %750 = vdwg.mxu0
    %v753 = vrot.slane %v722, 4
    %v754 = vrot.slane %v735, 4
    %v757 = vadd.f32 %v372, %v753
    %v758 = vadd.f32 %v373, %v754
    %v759 = vxor.u32 %v757, 2147483648
    %v760 = vxor.u32 %v758, 2147483648
    %v761 = vmul.f32 %v759, 1.442695
    %v762 = vpow.pop %v761
    %v763 = vmul.f32 %v760, 1.442695
    %v764 = vpow.pop %v763
    %v765 = vadd.f32 %v762, 1.0
    %v766 = vadd.f32 %v764, 1.0
    %v767 = vrcp.pop %v765
    %v768 = vmul.f32 %v765, %v767
    %v769 = vsub.f32 1.0, %v768
    %v770 = vmul.f32 %v767, %v769
    %v771 = vadd.f32 %v767, %v770
    %vm772 = vweird.f32 %v765
    %vm773 = vweird.f32 %v767
    %vm774 = vmor %vm772, %vm773
    %v775 = vsel %vm774, %v767, %v771
    %v776 = vand.u32 2147483647, %v765
    %vm777 = vcmp.eq.f32.partialorder %v776, 8.507059e+37
    %v778 = vand.u32 %v765, 2147483648
    %v779 = vor.u32 1.1754944e-38, %v778
    %v780 = vsel %vm777, %v779, %v775
    %v781 = vmul.f32 1.0, %v780
    %v782 = vrcp.pop %v766
    %v783 = vmul.f32 %v766, %v782
    %v784 = vsub.f32 1.0, %v783
    %v785 = vmul.f32 %v782, %v784
    %v786 = vadd.f32 %v782, %v785
    %vm787 = vweird.f32 %v766
    %vm788 = vweird.f32 %v782
    %vm789 = vmor %vm787, %vm788
    %v790 = vsel %vm789, %v782, %v786
    %v791 = vand.u32 2147483647, %v766
    %vm792 = vcmp.eq.f32.partialorder %v791, 8.507059e+37
    %v793 = vand.u32 %v766, 2147483648
    %v794 = vor.u32 1.1754944e-38, %v793
    %v795 = vsel %vm792, %v794, %v790
    %v796 = vmul.f32 1.0, %v795
    %v797 = vadd.f32 %v748, %v271
    %v799 = vrot.slane %v797, 4
    %v801 = vmul.f32 %v781, %v799
    %v802 = vadd.f32 %v374, %v801
    %v803 = vtanh.pop %v802
    %v804 = vsub.f32 1.0, %v796
    %v805 = vmul.f32 %v804, %v803
    %v807 = vrot.slane %v707, 6
    %v809 = vmul.f32 %v796, %v807
    %v810 = vadd.f32 %v805, %v809
    %v811 = vpack.c.bf16 %v810, %v810
    %v813 = vrot.slane %v811, 2
    %815 = vmatpush.bf16.msra.mxu0 %v494
    %816 = vmatpush.bf16.msra.mxu0 %v491
    %817 = vmatpush.bf16.msra.mxu0 %v488
    %818 = vmatpush.bf16.msra.mxu0 %v485
    %819 = vmatpush.bf16.msra.mxu0 %v482
    %820 = vmatpush.bf16.msra.mxu0 %v479
    %821 = vmatpush.bf16.msra.mxu0 %v476
    %822 = vmatpush.bf16.msra.mxu0 %v473
    %823 = vmatmul.bf16.gmra.mxu0 %v813
    %v824 = vpop.f32.mrf.mxu0
    %v825 = vadd.f32 0.0, %v824
    %v826 = vpop.f32.mrf.mxu0
    %827 = vdwg.mxu0
    %828 = vmatpush.bf16.msra.mxu0 %v495
    %829 = vmatpush.bf16.msra.mxu0 %v492
    %830 = vmatpush.bf16.msra.mxu0 %v489
    %831 = vmatpush.bf16.msra.mxu0 %v486
    %832 = vmatpush.bf16.msra.mxu0 %v483
    %833 = vmatpush.bf16.msra.mxu0 %v480
    %834 = vmatpush.bf16.msra.mxu0 %v477
    %835 = vmatpush.bf16.msra.mxu0 %v474
    %836 = vmatmul.bf16.gmra.mxu0 %v813
    %v837 = vpop.f32.mrf.mxu0
    %v838 = vadd.f32 0.0, %v837
    %v839 = vpop.f32.mrf.mxu0
    %840 = vdwg.mxu0
    %841 = vmatpush.bf16.msra.mxu0 %v496
    %842 = vmatpush.bf16.msra.mxu0 %v493
    %843 = vmatpush.bf16.msra.mxu0 %v490
    %844 = vmatpush.bf16.msra.mxu0 %v487
    %845 = vmatpush.bf16.msra.mxu0 %v484
    %846 = vmatpush.bf16.msra.mxu0 %v481
    %847 = vmatpush.bf16.msra.mxu0 %v478
    %848 = vmatpush.bf16.msra.mxu0 %v475
    %849 = vmatmul.bf16.gmra.mxu0 %v813
    %v850 = vpop.f32.mrf.mxu0
    %v851 = vadd.f32 0.0, %v850
    %v852 = vpop.f32.mrf.mxu0
    %853 = vdwg.mxu0
    %v856 = vrot.slane %v825, 2
    %v857 = vrot.slane %v838, 2
    %v860 = vadd.f32 %v331, %v856
    %v861 = vadd.f32 %v345, %v857
    %v862 = vxor.u32 %v860, 2147483648
    %v863 = vxor.u32 %v861, 2147483648
    %v864 = vmul.f32 %v862, 1.442695
    %v865 = vpow.pop %v864
    %v866 = vmul.f32 %v863, 1.442695
    %v867 = vpow.pop %v866
    %v868 = vadd.f32 %v865, 1.0
    %v869 = vadd.f32 %v867, 1.0
    %v870 = vrcp.pop %v868
    %v871 = vmul.f32 %v868, %v870
    %v872 = vsub.f32 1.0, %v871
    %v873 = vmul.f32 %v870, %v872
    %v874 = vadd.f32 %v870, %v873
    %vm875 = vweird.f32 %v868
    %vm876 = vweird.f32 %v870
    %vm877 = vmor %vm875, %vm876
    %v878 = vsel %vm877, %v870, %v874
    %v879 = vand.u32 2147483647, %v868
    %vm880 = vcmp.eq.f32.partialorder %v879, 8.507059e+37
    %v881 = vand.u32 %v868, 2147483648
    %v882 = vor.u32 1.1754944e-38, %v881
    %v883 = vsel %vm880, %v882, %v878
    %v884 = vmul.f32 1.0, %v883
    %v885 = vrcp.pop %v869
    %v886 = vmul.f32 %v869, %v885
    %v887 = vsub.f32 1.0, %v886
    %v888 = vmul.f32 %v885, %v887
    %v889 = vadd.f32 %v885, %v888
    %vm890 = vweird.f32 %v869
    %vm891 = vweird.f32 %v885
    %vm892 = vmor %vm890, %vm891
    %v893 = vsel %vm892, %v885, %v889
    %v894 = vand.u32 2147483647, %v869
    %vm895 = vcmp.eq.f32.partialorder %v894, 8.507059e+37
    %v896 = vand.u32 %v869, 2147483648
    %v897 = vor.u32 1.1754944e-38, %v896
    %v898 = vsel %vm895, %v897, %v893
    %v899 = vmul.f32 1.0, %v898
    %v900 = vadd.f32 %v851, %v271
    %v902 = vrot.slane %v900, 2
    %v904 = vmul.f32 %v884, %v902
    %v905 = vadd.f32 %v359, %v904
    %v906 = vtanh.pop %v905
    %v907 = vsub.f32 1.0, %v899
    %v908 = vmul.f32 %v907, %v906
    %v910 = vrot.slane %v810, 6
    %v912 = vmul.f32 %v899, %v910
    %v913 = vadd.f32 %v908, %v912
    %v914 = vpack.c.bf16 %v913, %v913
    %v916 = vrot.slane %v914, 3
    %918 = vmatpush.bf16.msra.mxu0 %v494
    %919 = vmatpush.bf16.msra.mxu0 %v491
    %920 = vmatpush.bf16.msra.mxu0 %v488
    %921 = vmatpush.bf16.msra.mxu0 %v485
    %922 = vmatpush.bf16.msra.mxu0 %v482
    %923 = vmatpush.bf16.msra.mxu0 %v479
    %924 = vmatpush.bf16.msra.mxu0 %v476
    %925 = vmatpush.bf16.msra.mxu0 %v473
    %926 = vmatmul.bf16.gmra.mxu0 %v916
    %v927 = vpop.f32.mrf.mxu0
    %v928 = vadd.f32 0.0, %v927
    %v929 = vpop.f32.mrf.mxu0
    %930 = vdwg.mxu0
    %931 = vmatpush.bf16.msra.mxu0 %v495
    %932 = vmatpush.bf16.msra.mxu0 %v492
    %933 = vmatpush.bf16.msra.mxu0 %v489
    %934 = vmatpush.bf16.msra.mxu0 %v486
    %935 = vmatpush.bf16.msra.mxu0 %v483
    %936 = vmatpush.bf16.msra.mxu0 %v480
    %937 = vmatpush.bf16.msra.mxu0 %v477
    %938 = vmatpush.bf16.msra.mxu0 %v474
    %939 = vmatmul.bf16.gmra.mxu0 %v916
    %v940 = vpop.f32.mrf.mxu0
    %v941 = vadd.f32 0.0, %v940
    %v942 = vpop.f32.mrf.mxu0
    %943 = vdwg.mxu0
    %944 = vmatpush.bf16.msra.mxu0 %v496
    %945 = vmatpush.bf16.msra.mxu0 %v493
    %946 = vmatpush.bf16.msra.mxu0 %v490
    %947 = vmatpush.bf16.msra.mxu0 %v487
    %948 = vmatpush.bf16.msra.mxu0 %v484
    %949 = vmatpush.bf16.msra.mxu0 %v481
    %950 = vmatpush.bf16.msra.mxu0 %v478
    %951 = vmatpush.bf16.msra.mxu0 %v475
    %952 = vmatmul.bf16.gmra.mxu0 %v916
    %v953 = vpop.f32.mrf.mxu0
    %v954 = vadd.f32 0.0, %v953
    %v955 = vpop.f32.mrf.mxu0
    %956 = vdwg.mxu0
    %v957 = vadd.f32 %v387, %v928
    %v958 = vadd.f32 %v388, %v941
    %v959 = vxor.u32 %v957, 2147483648
    %v960 = vxor.u32 %v958, 2147483648
    %v961 = vmul.f32 %v959, 1.442695
    %v962 = vpow.pop %v961
    %v963 = vmul.f32 %v960, 1.442695
    %v964 = vpow.pop %v963
    %v965 = vadd.f32 %v962, 1.0
    %v966 = vadd.f32 %v964, 1.0
    %v967 = vrcp.pop %v965
    %v968 = vmul.f32 %v965, %v967
    %v969 = vsub.f32 1.0, %v968
    %v970 = vmul.f32 %v967, %v969
    %v971 = vadd.f32 %v967, %v970
    %vm972 = vweird.f32 %v965
    %vm973 = vweird.f32 %v967
    %vm974 = vmor %vm972, %vm973
    %v975 = vsel %vm974, %v967, %v971
    %v976 = vand.u32 2147483647, %v965
    %vm977 = vcmp.eq.f32.partialorder %v976, 8.507059e+37
    %v978 = vand.u32 %v965, 2147483648
    %v979 = vor.u32 1.1754944e-38, %v978
    %v980 = vsel %vm977, %v979, %v975
    %v981 = vmul.f32 1.0, %v980
    %v982 = vrcp.pop %v966
    %v983 = vmul.f32 %v966, %v982
    %v984 = vsub.f32 1.0, %v983
    %v985 = vmul.f32 %v982, %v984
    %v986 = vadd.f32 %v982, %v985
    %vm987 = vweird.f32 %v966
    %vm988 = vweird.f32 %v982
    %vm989 = vmor %vm987, %vm988
    %v990 = vsel %vm989, %v982, %v986
    %v991 = vand.u32 2147483647, %v966
    %vm992 = vcmp.eq.f32.partialorder %v991, 8.507059e+37
    %v993 = vand.u32 %v966, 2147483648
    %v994 = vor.u32 1.1754944e-38, %v993
    %v995 = vsel %vm992, %v994, %v990
    %v996 = vmul.f32 1.0, %v995
    %v997 = vadd.f32 %v954, %v271
    %v998 = vmul.f32 %v981, %v997
    %v999 = vadd.f32 %v389, %v998
    %v1000 = vtanh.pop %v999
    %v1001 = vsub.f32 1.0, %v996
    %v1002 = vmul.f32 %v1001, %v1000
    %v1004 = vrot.slane %v913, 6
    %v1006 = vmul.f32 %v996, %v1004
    %v1007 = vadd.f32 %v1002, %v1006
    %v1008 = vpack.c.bf16 %v1007, %v1007
    %1009 = vmatpush.bf16.msra.mxu0 %v494
    %1010 = vmatpush.bf16.msra.mxu0 %v491
    %1011 = vmatpush.bf16.msra.mxu0 %v488
    %1012 = vmatpush.bf16.msra.mxu0 %v485
    %1013 = vmatpush.bf16.msra.mxu0 %v482
    %1014 = vmatpush.bf16.msra.mxu0 %v479
    %1015 = vmatpush.bf16.msra.mxu0 %v476
    %1016 = vmatpush.bf16.msra.mxu0 %v473
    %1017 = vmatmul.bf16.gmra.mxu0 %v1008
    %v1018 = vpop.f32.mrf.mxu0
    %v1019 = vadd.f32 0.0, %v1018
    %v1020 = vpop.f32.mrf.mxu0
    %1021 = vdwg.mxu0
    %1022 = vmatpush.bf16.msra.mxu0 %v495
    %1023 = vmatpush.bf16.msra.mxu0 %v492
    %1024 = vmatpush.bf16.msra.mxu0 %v489
    %1025 = vmatpush.bf16.msra.mxu0 %v486
    %1026 = vmatpush.bf16.msra.mxu0 %v483
    %1027 = vmatpush.bf16.msra.mxu0 %v480
    %1028 = vmatpush.bf16.msra.mxu0 %v477
    %1029 = vmatpush.bf16.msra.mxu0 %v474
    %1030 = vmatmul.bf16.gmra.mxu0 %v1008
    %v1031 = vpop.f32.mrf.mxu0
    %v1032 = vadd.f32 0.0, %v1031
    %v1033 = vpop.f32.mrf.mxu0
    %1034 = vdwg.mxu0
    %1035 = vmatpush.bf16.msra.mxu0 %v496
    %1036 = vmatpush.bf16.msra.mxu0 %v493
    %1037 = vmatpush.bf16.msra.mxu0 %v490
    %1038 = vmatpush.bf16.msra.mxu0 %v487
    %1039 = vmatpush.bf16.msra.mxu0 %v484
    %1040 = vmatpush.bf16.msra.mxu0 %v481
    %1041 = vmatpush.bf16.msra.mxu0 %v478
    %1042 = vmatpush.bf16.msra.mxu0 %v475
    %1043 = vmatmul.bf16.gmra.mxu0 %v1008
    %v1044 = vpop.f32.mrf.mxu0
    %v1045 = vadd.f32 0.0, %v1044
    %v1046 = vpop.f32.mrf.mxu0
    %1047 = vdwg.mxu0
    %v1050 = vrot.slane %v1019, 6
    %v1051 = vrot.slane %v1032, 6
    %v1054 = vadd.f32 %v390, %v1050
    %v1055 = vadd.f32 %v391, %v1051
    %v1056 = vxor.u32 %v1054, 2147483648
    %v1057 = vxor.u32 %v1055, 2147483648
    %v1058 = vmul.f32 %v1056, 1.442695
    %v1059 = vpow.pop %v1058
    %v1060 = vmul.f32 %v1057, 1.442695
    %v1061 = vpow.pop %v1060
    %v1062 = vadd.f32 %v1059, 1.0
    %v1063 = vadd.f32 %v1061, 1.0
    %v1064 = vrcp.pop %v1062
    %v1065 = vmul.f32 %v1062, %v1064
    %v1066 = vsub.f32 1.0, %v1065
    %v1067 = vmul.f32 %v1064, %v1066
    %v1068 = vadd.f32 %v1064, %v1067
    %vm1069 = vweird.f32 %v1062
    %vm1070 = vweird.f32 %v1064
    %vm1071 = vmor %vm1069, %vm1070
    %v1072 = vsel %vm1071, %v1064, %v1068
    %v1073 = vand.u32 2147483647, %v1062
    %vm1074 = vcmp.eq.f32.partialorder %v1073, 8.507059e+37
    %v1075 = vand.u32 %v1062, 2147483648
    %v1076 = vor.u32 1.1754944e-38, %v1075
    %v1077 = vsel %vm1074, %v1076, %v1072
    %v1078 = vmul.f32 1.0, %v1077
    %v1079 = vrcp.pop %v1063
    %v1080 = vmul.f32 %v1063, %v1079
    %v1081 = vsub.f32 1.0, %v1080
    %v1082 = vmul.f32 %v1079, %v1081
    %v1083 = vadd.f32 %v1079, %v1082
    %vm1084 = vweird.f32 %v1063
    %vm1085 = vweird.f32 %v1079
    %vm1086 = vmor %vm1084, %vm1085
    %v1087 = vsel %vm1086, %v1079, %v1083
    %v1088 = vand.u32 2147483647, %v1063
    %vm1089 = vcmp.eq.f32.partialorder %v1088, 8.507059e+37
    %v1090 = vand.u32 %v1063, 2147483648
    %v1091 = vor.u32 1.1754944e-38, %v1090
    %v1092 = vsel %vm1089, %v1091, %v1087
    %v1093 = vmul.f32 1.0, %v1092
    %v1094 = vadd.f32 %v1045, %v271
    %v1096 = vrot.slane %v1094, 6
    %v1098 = vmul.f32 %v1078, %v1096
    %v1099 = vadd.f32 %v392, %v1098
    %v1100 = vtanh.pop %v1099
    %v1101 = vsub.f32 1.0, %v1093
    %v1102 = vmul.f32 %v1101, %v1100
    %v1104 = vrot.slane %v1007, 6
    %v1106 = vmul.f32 %v1093, %v1104
    %v1107 = vadd.f32 %v1102, %v1106
    %v1108 = vpack.c.bf16 %v1107, %v1107
    %v1110 = vrot.slane %v1108, 1
    %1112 = vmatpush.bf16.msra.mxu0 %v494
    %1113 = vmatpush.bf16.msra.mxu0 %v491
    %1114 = vmatpush.bf16.msra.mxu0 %v488
    %1115 = vmatpush.bf16.msra.mxu0 %v485
    %1116 = vmatpush.bf16.msra.mxu0 %v482
    %1117 = vmatpush.bf16.msra.mxu0 %v479
    %1118 = vmatpush.bf16.msra.mxu0 %v476
    %1119 = vmatpush.bf16.msra.mxu0 %v473
    %1120 = vmatmul.bf16.gmra.mxu0 %v1110
    %v1121 = vpop.f32.mrf.mxu0
    %v1122 = vadd.f32 0.0, %v1121
    %v1123 = vpop.f32.mrf.mxu0
    %1124 = vdwg.mxu0
    %1125 = vmatpush.bf16.msra.mxu0 %v495
    %1126 = vmatpush.bf16.msra.mxu0 %v492
    %1127 = vmatpush.bf16.msra.mxu0 %v489
    %1128 = vmatpush.bf16.msra.mxu0 %v486
    %1129 = vmatpush.bf16.msra.mxu0 %v483
    %1130 = vmatpush.bf16.msra.mxu0 %v480
    %1131 = vmatpush.bf16.msra.mxu0 %v477
    %1132 = vmatpush.bf16.msra.mxu0 %v474
    %1133 = vmatmul.bf16.gmra.mxu0 %v1110
    %v1134 = vpop.f32.mrf.mxu0
    %v1135 = vadd.f32 0.0, %v1134
    %v1136 = vpop.f32.mrf.mxu0
    %1137 = vdwg.mxu0
    %1138 = vmatpush.bf16.msra.mxu0 %v496
    %1139 = vmatpush.bf16.msra.mxu0 %v493
    %1140 = vmatpush.bf16.msra.mxu0 %v490
    %1141 = vmatpush.bf16.msra.mxu0 %v487
    %1142 = vmatpush.bf16.msra.mxu0 %v484
    %1143 = vmatpush.bf16.msra.mxu0 %v481
    %1144 = vmatpush.bf16.msra.mxu0 %v478
    %1145 = vmatpush.bf16.msra.mxu0 %v475
    %1146 = vmatmul.bf16.gmra.mxu0 %v1110
    %v1147 = vpop.f32.mrf.mxu0
    %v1148 = vadd.f32 0.0, %v1147
    %v1149 = vpop.f32.mrf.mxu0
    %1150 = vdwg.mxu0
    %v1153 = vrot.slane %v1122, 4
    %v1154 = vrot.slane %v1135, 4
    %v1157 = vadd.f32 %v387, %v1153
    %v1158 = vadd.f32 %v388, %v1154
    %v1159 = vxor.u32 %v1157, 2147483648
    %v1160 = vxor.u32 %v1158, 2147483648
    %v1161 = vmul.f32 %v1159, 1.442695
    %v1162 = vpow.pop %v1161
    %v1163 = vmul.f32 %v1160, 1.442695
    %v1164 = vpow.pop %v1163
    %v1165 = vadd.f32 %v1162, 1.0
    %v1166 = vadd.f32 %v1164, 1.0
    %v1167 = vrcp.pop %v1165
    %v1168 = vmul.f32 %v1165, %v1167
    %v1169 = vsub.f32 1.0, %v1168
    %v1170 = vmul.f32 %v1167, %v1169
    %v1171 = vadd.f32 %v1167, %v1170
    %vm1172 = vweird.f32 %v1165
    %vm1173 = vweird.f32 %v1167
    %vm1174 = vmor %vm1172, %vm1173
    %v1175 = vsel %vm1174, %v1167, %v1171
    %v1176 = vand.u32 2147483647, %v1165
    %vm1177 = vcmp.eq.f32.partialorder %v1176, 8.507059e+37
    %v1178 = vand.u32 %v1165, 2147483648
    %v1179 = vor.u32 1.1754944e-38, %v1178
    %v1180 = vsel %vm1177, %v1179, %v1175
    %v1181 = vmul.f32 1.0, %v1180
    %v1182 = vrcp.pop %v1166
    %v1183 = vmul.f32 %v1166, %v1182
    %v1184 = vsub.f32 1.0, %v1183
    %v1185 = vmul.f32 %v1182, %v1184
    %v1186 = vadd.f32 %v1182, %v1185
    %vm1187 = vweird.f32 %v1166
    %vm1188 = vweird.f32 %v1182
    %vm1189 = vmor %vm1187, %vm1188
    %v1190 = vsel %vm1189, %v1182, %v1186
    %v1191 = vand.u32 2147483647, %v1166
    %vm1192 = vcmp.eq.f32.partialorder %v1191, 8.507059e+37
    %v1193 = vand.u32 %v1166, 2147483648
    %v1194 = vor.u32 1.1754944e-38, %v1193
    %v1195 = vsel %vm1192, %v1194, %v1190
    %v1196 = vmul.f32 1.0, %v1195
    %v1197 = vadd.f32 %v1148, %v271
    %v1199 = vrot.slane %v1197, 4
    %v1201 = vmul.f32 %v1181, %v1199
    %v1202 = vadd.f32 %v389, %v1201
    %v1203 = vtanh.pop %v1202
    %v1204 = vsub.f32 1.0, %v1196
    %v1205 = vmul.f32 %v1204, %v1203
    %v1207 = vrot.slane %v1107, 6
    %v1209 = vmul.f32 %v1196, %v1207
    %v1210 = vadd.f32 %v1205, %v1209
    %v1212 = vrot.slane %v1210, 4
    %1213 = vrot.lane.b32.xlu0 %v1212, 96
    %v1214 = vpop.permute.xlu0 %1213
    %v1216 = vadd.f32 %v607, %v1214
    %1217 = vrot.lane.b32.xlu0 %v1107, 96
    %v1218 = vpop.permute.xlu0 %1217
    %v1220 = vadd.f32 %v707, %v1218
    %v1221 = vrot.slane %v1007, 4
    %1222 = vrot.lane.b32.xlu0 %v1221, 96
    %v1223 = vpop.permute.xlu0 %1222
    %v1225 = vadd.f32 %v810, %v1223
    %1226 = vrot.lane.b32.xlu0 %v913, 96
    %v1227 = vpop.permute.xlu0 %1226
    %v1229 = vadd.f32 %v913, %v1227
    %v1230 = vrot.slane %v810, 4
    %1231 = vrot.lane.b32.xlu0 %v1230, 96
    %v1232 = vpop.permute.xlu0 %1231
    %v1234 = vadd.f32 %v1007, %v1232
    %1235 = vrot.lane.b32.xlu0 %v707, 96
    %v1236 = vpop.permute.xlu0 %1235
    %v1238 = vadd.f32 %v1107, %v1236
    %v1239 = vrot.slane %v607, 4
    %1240 = vrot.lane.b32.xlu0 %v1239, 96
    %v1241 = vpop.permute.xlu0 %1240
    %v1243 = vadd.f32 %v1210, %v1241
    %v1245 = vrot.slane %v1220, 2
    %v1247 = vadd.f32 %v1216, %v1245
    %v1249 = vrot.slane %v1225, 4
    %v1251 = vadd.f32 %v1247, %v1249
    %v1253 = vrot.slane %v1229, 6
    %v1255 = vadd.f32 %v1251, %v1253
    %v1256 = vadd.f32 %v1255, %v1234
    %v1258 = vrot.slane %v1238, 2
    %v1260 = vadd.f32 %v1256, %v1258
    %v1262 = vrot.slane %v1243, 4
    %v1264 = vadd.f32 %v1260, %v1262
    %vm1265 = vcmask 254976
    %v1266 = vsel %vm1265, %v1264, 0.0
    %1267 = vadd.xlane.f32.xlu0 %v1266
    %v1268 = vpop.xlane.xlu0 %1267
    %v1269 = vrcp.pop 224.0
    %v1270 = vmul.f32 224.0, %v1269
    %v1271 = vsub.f32 1.0, %v1270
    %v1272 = vmul.f32 %v1269, %v1271
    %v1273 = vadd.f32 %v1269, %v1272
    %vm1274 = vweird.f32 %v1269
    %v1275 = vsel %vm1274, %v1269, %v1273
    %v1276 = vmul.f32 %v1268, %v1275
    %v1277 = vsub.f32 %v1216, %v1276
    %v1279 = vrot.slane %v1276, 6
    %v1281 = vsub.f32 %v1220, %v1279
    %v1282 = vrot.slane %v1276, 4
    %v1284 = vsub.f32 %v1225, %v1282
    %v1285 = vrot.slane %v1276, 2
    %v1287 = vsub.f32 %v1229, %v1285
    %v1288 = vsub.f32 %v1234, %v1276
    %v1289 = vsub.f32 %v1238, %v1279
    %v1290 = vsub.f32 %v1243, %v1282
    %v1291 = vmul.f32 %v1277, %v1277
    %v1292 = vsel %vm1265, %v1291, 0.0
    %1293 = vadd.xlane.f32.xlu0 %v1292
    %v1294 = vpop.xlane.xlu0 %1293
    %v1295 = vmul.f32 %v1281, %v1281
    %vm1296 = vcmask 257026
    %v1297 = vsel %vm1296, %v1295, 0.0
    %1298 = vadd.xlane.f32.xlu0 %v1297
    %v1299 = vpop.xlane.xlu0 %1298
    %v1301 = vrot.slane %v1299, 2
    %v1303 = vadd.f32 %v1294, %v1301
    %v1304 = vmul.f32 %v1284, %v1284
    %vm1305 = vcmask 259076
    %v1306 = vsel %vm1305, %v1304, 0.0
    %1307 = vadd.xlane.f32.xlu0 %v1306
    %v1308 = vpop.xlane.xlu0 %1307
    %v1310 = vrot.slane %v1308, 4
    %v1312 = vadd.f32 %v1303, %v1310
    %v1313 = vmul.f32 %v1287, %v1287
    %vm1314 = vcmask 261126
    %v1315 = vsel %vm1314, %v1313, 0.0
    %1316 = vadd.xlane.f32.xlu0 %v1315
    %v1317 = vpop.xlane.xlu0 %1316
    %v1319 = vrot.slane %v1317, 6
    %v1321 = vadd.f32 %v1312, %v1319
    %v1322 = vmul.f32 %v1288, %v1288
    %v1323 = vsel %vm1265, %v1322, 0.0
    %1324 = vadd.xlane.f32.xlu0 %v1323
    %v1325 = vpop.xlane.xlu0 %1324
    %v1326 = vadd.f32 %v1321, %v1325
    %v1327 = vmul.f32 %v1289, %v1289
    %v1328 = vsel %vm1296, %v1327, 0.0
    %1329 = vadd.xlane.f32.xlu0 %v1328
    %v1330 = vpop.xlane.xlu0 %1329
    %v1332 = vrot.slane %v1330, 2
    %v1334 = vadd.f32 %v1326, %v1332
    %v1335 = vmul.f32 %v1290, %v1290
    %v1336 = vsel %vm1305, %v1335, 0.0
    %1337 = vadd.xlane.f32.xlu0 %v1336
    %v1338 = vpop.xlane.xlu0 %1337
    %v1340 = vrot.slane %v1338, 4
    %v1342 = vadd.f32 %v1334, %v1340
    %v1343 = vmul.f32 %v1342, %v1275
    %v1344 = vadd.f32 %v1343, 1e-05
    %v1345 = vrsqrt.pop %v1344
    %v1346 = vmul.f32 %v1345, %v1344
    %v1347 = vmul.f32 %v1346, %v1345
    %v1348 = vmul.f32 0.5, %v1347
    %v1349 = vsub.f32 1.5, %v1348
    %v1350 = vmul.f32 %v1345, %v1349
    %vm1351 = vweird.f32 %v1344
    %vm1352 = vweird.f32 %v1345
    %vm1353 = vmor %vm1351, %vm1352
    %v1354 = vsel %vm1353, %v1345, %v1350
    %1356 = vset.pattern.permute.xlu0 0
    %1357 = vperm.xlu0 %1356, %v1354
    %v1358 = vpop.permute.xlu0 %1357
    %v1360 = vmul.f32 %v1277, %v1358
    %v1361 = vrot.slane %v1358, 6
    %v1363 = vmul.f32 %v1281, %v1361
    %v1364 = vrot.slane %v1358, 4
    %v1366 = vmul.f32 %v1284, %v1364
    %v1367 = vrot.slane %v1358, 2
    %v1369 = vmul.f32 %v1287, %v1367
    %v1370 = vmul.f32 %v1288, %v1358
    %v1371 = vmul.f32 %v1289, %v1361
    %v1372 = vmul.f32 %v1290, %v1364
    %vm1373 = vcmask 1041408
    %v1374 = vsel %vm1373, %v1360, %v1363
    %vm1375 = vcmask 1043456
    %v1376 = vsel %vm1375, %v1374, %v1366
    %vm1377 = vcmask 1045504
    %v1378 = vsel %vm1377, %v1376, %v1369
    %v1379 = vsel %vm1373, %v1370, %v1371
    %v1380 = vsel %vm1375, %v1379, %v1372
    %v1381 = vmul.f32 %v1378, %v273
    %v1382 = vmul.f32 %v1380, %v274
    %v1383 = vadd.f32 %v1381, %v275
    %v1384 = vadd.f32 %v1382, %v276
    %v1385 = vld [vmem:[#allocation2 + $0x120] sm:$0xff]
    %v1386 = vld [vmem:[#allocation2 + $0x128] sm:$0xf]
    %v1387 = vld [vmem:[#allocation2 + $0x12c] sm:$0xff]
    %v1388 = vld [vmem:[#allocation2 + $0x134] sm:$0xf]
    %v1389 = vld [vmem:[#allocation2 + $0x138] sm:$0xff]
    %v1390 = vld [vmem:[#allocation2 + $0x140] sm:$0xf]
    %v1391 = vld [vmem:[#allocation2 + $0x144] sm:$0xff]
    %v1392 = vld [vmem:[#allocation2 + $0x14c] sm:$0xf]
    %v1393 = vld [vmem:[#allocation2 + $0x150] sm:$0xff]
    %v1394 = vld [vmem:[#allocation2 + $0x158] sm:$0xf]
    %v1395 = vld [vmem:[#allocation2 + $0x15c] sm:$0xff]
    %v1396 = vld [vmem:[#allocation2 + $0x164] sm:$0xf]
    %v1397 = vld [vmem:[#allocation2 + $0x168] sm:$0xff]
    %v1398 = vld [vmem:[#allocation2 + $0x170] sm:$0xf]
    %v1399 = vld [vmem:[#allocation2 + $0x174] sm:$0xff]
    %v1400 = vld [vmem:[#allocation2 + $0x17c] sm:$0xf]
    %v1401 = vld [vmem:[#allocation2 + $0x180] sm:$0xff]
    %v1402 = vld [vmem:[#allocation2 + $0x188] sm:$0xf]
    %v1403 = vld [vmem:[#allocation2 + $0x18c] sm:$0xff]
    %v1404 = vld [vmem:[#allocation2 + $0x194] sm:$0xf]
    %v1405 = vld [vmem:[#allocation2 + $0x198] sm:$0xff]
    %v1406 = vld [vmem:[#allocation2 + $0x1a0] sm:$0xf]
    %v1407 = vld [vmem:[#allocation2 + $0x1a4] sm:$0xff]
    %v1408 = vld [vmem:[#allocation2 + $0x1ac] sm:$0xf]
    %v1409 = vld [vmem:[#allocation2 + $0x1b0] sm:$0xff]
    %v1410 = vld [vmem:[#allocation2 + $0x1b8] sm:$0xf]
    %v1411 = vld [vmem:[#allocation2 + $0x1bc] sm:$0xff]
    %v1412 = vld [vmem:[#allocation2 + $0x1c4] sm:$0xf]
    %v1413 = vld [vmem:[#allocation2 + $0x1c8] sm:$0xff]
    %v1414 = vld [vmem:[#allocation2 + $0x1d0] sm:$0xf]
    %v1415 = vld [vmem:[#allocation2 + $0x1d4] sm:$0xff]
    %v1416 = vld [vmem:[#allocation2 + $0x1dc] sm:$0xf]
    %v1417 = vld [vmem:[#allocation2 + $0x1e0] sm:$0xff]
    %v1418 = vld [vmem:[#allocation2 + $0x1e8] sm:$0xf]
    %v1419 = vld [vmem:[#allocation2 + $0x1ec] sm:$0xff]
    %v1420 = vld [vmem:[#allocation2 + $0x1f4] sm:$0xf]
    %v1421 = vld [vmem:[#allocation2 + $0x1f8] sm:$0xff]
    %v1422 = vld [vmem:[#allocation2 + $0x200] sm:$0xf]
    %v1423 = vld [vmem:[#allocation2 + $0x204] sm:$0xff]
    %v1424 = vld [vmem:[#allocation2 + $0x20c] sm:$0xf]
    %s1425 = scalar_lea.vmem [#allocation4], 144
    %v1426 = vld [vmem:[%s1425] ss:$8 sm:$0x7]
    %s1427 = scalar_lea.vmem [#allocation4], 145
    %v1428 = vld [vmem:[%s1427] ss:$8 sm:$0x7]
    %v1430 = vperm.slane %v1428, 0
    %v1432 = vld [vmem:[#allocation4 + $0xa8] sm:$0xff]
    %v1433 = vld [vmem:[#allocation4 + $0xc0] sm:$0x3f]
    %v1434 = vld [vmem:[#allocation4 + $0xd8] sm:$0xff]
    %v1435 = vld [vmem:[#allocation4 + $0xf0] sm:$0x3f]
    %v1436 = vpack.c.bf16 %v1384, %v1383
    %v1438 = vperm.slane %v1426, 0
    %v1439 = vperm.slane %v1426, 1
    %v1440 = vperm.slane %v1426, 2
    %v1452 = vunpack.c.l.b16 %v1385
    %v1453 = vunpack.c.h.b16 %v1385
    %v1454 = vunpack.c.l.b16 %v1386
    %v1455 = vunpack.c.l.b16 %v1387
    %v1456 = vunpack.c.h.b16 %v1387
    %v1457 = vunpack.c.l.b16 %v1388
    %v1458 = vunpack.c.l.b16 %v1389
    %v1459 = vunpack.c.h.b16 %v1389
    %v1460 = vunpack.c.l.b16 %v1390
    %v1461 = vunpack.c.l.b16 %v1391
    %v1462 = vunpack.c.h.b16 %v1391
    %v1463 = vunpack.c.l.b16 %v1392
    %v1464 = vpack.c.b16 %v1455, %v1452
    %v1465 = vpack.c.b16 %v1456, %v1453
    %v1466 = vpack.c.b16 %v1457, %v1454
    %v1467 = vpack.c.b16 %v1461, %v1458
    %v1468 = vpack.c.b16 %v1462, %v1459
    %v1469 = vpack.c.b16 %v1463, %v1460
    %v1477 = vsel %vm317, %v1436, 0
    %1479 = vmatpush.bf16.msra.mxu0 0
    %1480 = vmatpush.bf16.msra.mxu0 0
    %1481 = vmatpush.bf16.msra.mxu0 0
    %1482 = vmatpush.bf16.msra.mxu0 0
    %1483 = vmatpush.bf16.msra.mxu0 0
    %1484 = vmatpush.bf16.msra.mxu0 0
    %1485 = vmatpush.bf16.msra.mxu0 %v1467
    %1486 = vmatpush.bf16.msra.mxu0 %v1464
    %1487 = vmatmul.bf16.gmra.mxu0 %v1477
    %v1488 = vpop.f32.mrf.mxu0
    %v1489 = vadd.f32 %v1438, %v1488
    %v1490 = vpop.f32.mrf.mxu0
    %v1491 = vadd.f32 %v1438, %v1490
    %1492 = vdwg.mxu0
    %1493 = vmatpush.bf16.msra.mxu0 0
    %1494 = vmatpush.bf16.msra.mxu0 0
    %1495 = vmatpush.bf16.msra.mxu0 0
    %1496 = vmatpush.bf16.msra.mxu0 0
    %1497 = vmatpush.bf16.msra.mxu0 0
    %1498 = vmatpush.bf16.msra.mxu0 0
    %1499 = vmatpush.bf16.msra.mxu0 %v1468
    %1500 = vmatpush.bf16.msra.mxu0 %v1465
    %1501 = vmatmul.bf16.gmra.mxu0 %v1477
    %v1502 = vpop.f32.mrf.mxu0
    %v1503 = vadd.f32 %v1439, %v1502
    %v1504 = vpop.f32.mrf.mxu0
    %v1505 = vadd.f32 %v1439, %v1504
    %1506 = vdwg.mxu0
    %1507 = vmatpush.bf16.msra.mxu0 0
    %1508 = vmatpush.bf16.msra.mxu0 0
    %1509 = vmatpush.bf16.msra.mxu0 0
    %1510 = vmatpush.bf16.msra.mxu0 0
    %1511 = vmatpush.bf16.msra.mxu0 0
    %1512 = vmatpush.bf16.msra.mxu0 0
    %1513 = vmatpush.bf16.msra.mxu0 %v1469
    %1514 = vmatpush.bf16.msra.mxu0 %v1466
    %1515 = vmatmul.bf16.gmra.mxu0 %v1477
    %v1516 = vpop.f32.mrf.mxu0
    %v1517 = vadd.f32 %v1440, %v1516
    %v1518 = vpop.f32.mrf.mxu0
    %v1519 = vadd.f32 %v1440, %v1518
    %1520 = vdwg.mxu0
    %v1524 = vrot.slane %v1491, 4
    %v1525 = vrot.slane %v1505, 4
    %v1526 = vrot.slane %v1519, 4
    %v1530 = vsel %vm223, %v1489, %v1524
    %v1531 = vsel %vm224, %v1503, %v1525
    %v1532 = vsel %vm225, %v1517, %v1526
    %v1533 = vsel %vm223, %v1489, %v1491
    %v1534 = vsel %vm224, %v1503, %v1505
    %v1535 = vsel %vm225, %v1517, %v1519
    %v1539 = vrot.slane %v1489, 4
    %v1540 = vrot.slane %v1503, 4
    %v1541 = vrot.slane %v1517, 4
    %v1545 = vsel %vm223, %v1491, %v1539
    %v1546 = vsel %vm224, %v1505, %v1540
    %v1547 = vsel %vm225, %v1519, %v1541
    %v1548 = vsel %vm223, %v1491, %v1489
    %v1549 = vsel %vm224, %v1505, %v1503
    %v1550 = vsel %vm225, %v1519, %v1517
    %v1583 = vunpack.c.l.b16 %v1393
    %v1584 = vunpack.c.h.b16 %v1393
    %v1585 = vunpack.c.l.b16 %v1394
    %v1586 = vunpack.c.l.b16 %v1395
    %v1587 = vunpack.c.h.b16 %v1395
    %v1588 = vunpack.c.l.b16 %v1396
    %v1589 = vunpack.c.l.b16 %v1397
    %v1590 = vunpack.c.h.b16 %v1397
    %v1591 = vunpack.c.l.b16 %v1398
    %v1592 = vunpack.c.l.b16 %v1399
    %v1593 = vunpack.c.h.b16 %v1399
    %v1594 = vunpack.c.l.b16 %v1400
    %v1595 = vunpack.c.l.b16 %v1401
    %v1596 = vunpack.c.h.b16 %v1401
    %v1597 = vunpack.c.l.b16 %v1402
    %v1598 = vunpack.c.l.b16 %v1403
    %v1599 = vunpack.c.h.b16 %v1403
    %v1600 = vunpack.c.l.b16 %v1404
    %v1601 = vunpack.c.l.b16 %v1405
    %v1602 = vunpack.c.h.b16 %v1405
    %v1603 = vunpack.c.l.b16 %v1406
    %v1604 = vunpack.c.l.b16 %v1407
    %v1605 = vunpack.c.h.b16 %v1407
    %v1606 = vunpack.c.l.b16 %v1408
    %v1607 = vunpack.c.l.b16 %v1409
    %v1608 = vunpack.c.h.b16 %v1409
    %v1609 = vunpack.c.l.b16 %v1410
    %v1610 = vunpack.c.l.b16 %v1411
    %v1611 = vunpack.c.h.b16 %v1411
    %v1612 = vunpack.c.l.b16 %v1412
    %v1613 = vunpack.c.l.b16 %v1413
    %v1614 = vunpack.c.h.b16 %v1413
    %v1615 = vunpack.c.l.b16 %v1414
    %v1616 = vunpack.c.l.b16 %v1415
    %v1617 = vunpack.c.h.b16 %v1415
    %v1618 = vunpack.c.l.b16 %v1416
    %v1619 = vunpack.c.l.b16 %v1417
    %v1620 = vunpack.c.h.b16 %v1417
    %v1621 = vunpack.c.l.b16 %v1418
    %v1622 = vunpack.c.l.b16 %v1419
    %v1623 = vunpack.c.h.b16 %v1419
    %v1624 = vunpack.c.l.b16 %v1420
    %v1625 = vunpack.c.l.b16 %v1421
    %v1626 = vunpack.c.h.b16 %v1421
    %v1627 = vunpack.c.l.b16 %v1422
    %v1628 = vunpack.c.l.b16 %v1423
    %v1629 = vunpack.c.h.b16 %v1423
    %v1630 = vunpack.c.l.b16 %v1424
    %v1631 = vpack.c.b16 %v1586, %v1583
    %v1632 = vpack.c.b16 %v1587, %v1584
    %v1633 = vpack.c.b16 %v1588, %v1585
    %v1634 = vpack.c.b16 %v1592, %v1589
    %v1635 = vpack.c.b16 %v1593, %v1590
    %v1636 = vpack.c.b16 %v1594, %v1591
    %v1637 = vpack.c.b16 %v1598, %v1595
    %v1638 = vpack.c.b16 %v1599, %v1596
    %v1639 = vpack.c.b16 %v1600, %v1597
    %v1640 = vpack.c.b16 %v1604, %v1601
    %v1641 = vpack.c.b16 %v1605, %v1602
    %v1642 = vpack.c.b16 %v1606, %v1603
    %v1643 = vpack.c.b16 %v1610, %v1607
    %v1644 = vpack.c.b16 %v1611, %v1608
    %v1645 = vpack.c.b16 %v1612, %v1609
    %v1646 = vpack.c.b16 %v1616, %v1613
    %v1647 = vpack.c.b16 %v1617, %v1614
    %v1648 = vpack.c.b16 %v1618, %v1615
    %v1649 = vpack.c.b16 %v1622, %v1619
    %v1650 = vpack.c.b16 %v1623, %v1620
    %v1651 = vpack.c.b16 %v1624, %v1621
    %v1652 = vpack.c.b16 %v1628, %v1625
    %v1653 = vpack.c.b16 %v1629, %v1626
    %v1654 = vpack.c.b16 %v1630, %v1627
    %1679 = vmatpush.bf16.msra.mxu0 %v1652
    %1680 = vmatpush.bf16.msra.mxu0 %v1649
    %1681 = vmatpush.bf16.msra.mxu0 %v1646
    %1682 = vmatpush.bf16.msra.mxu0 %v1643
    %1683 = vmatpush.bf16.msra.mxu0 %v1640
    %1684 = vmatpush.bf16.msra.mxu0 %v1637
    %1685 = vmatpush.bf16.msra.mxu0 %v1634
    %1686 = vmatpush.bf16.msra.mxu0 %v1631
    %1687 = vmatmul.bf16.gmra.mxu0 0
    %v1688 = vpop.f32.mrf.mxu0
    %v1689 = vadd.f32 0.0, %v1688
    %v1690 = vpop.f32.mrf.mxu0
    %1691 = vdwg.mxu0
    %1692 = vmatpush.bf16.msra.mxu0 %v1653
    %1693 = vmatpush.bf16.msra.mxu0 %v1650
    %1694 = vmatpush.bf16.msra.mxu0 %v1647
    %1695 = vmatpush.bf16.msra.mxu0 %v1644
    %1696 = vmatpush.bf16.msra.mxu0 %v1641
    %1697 = vmatpush.bf16.msra.mxu0 %v1638
    %1698 = vmatpush.bf16.msra.mxu0 %v1635
    %1699 = vmatpush.bf16.msra.mxu0 %v1632
    %1700 = vmatmul.bf16.gmra.mxu0 0
    %v1701 = vpop.f32.mrf.mxu0
    %v1702 = vadd.f32 0.0, %v1701
    %v1703 = vpop.f32.mrf.mxu0
    %1704 = vdwg.mxu0
    %1705 = vmatpush.bf16.msra.mxu0 %v1654
    %1706 = vmatpush.bf16.msra.mxu0 %v1651
    %1707 = vmatpush.bf16.msra.mxu0 %v1648
    %1708 = vmatpush.bf16.msra.mxu0 %v1645
    %1709 = vmatpush.bf16.msra.mxu0 %v1642
    %1710 = vmatpush.bf16.msra.mxu0 %v1639
    %1711 = vmatpush.bf16.msra.mxu0 %v1636
    %1712 = vmatpush.bf16.msra.mxu0 %v1633
    %1713 = vmatmul.bf16.gmra.mxu0 0
    %v1714 = vpop.f32.mrf.mxu0
    %v1715 = vadd.f32 0.0, %v1714
    %v1716 = vpop.f32.mrf.mxu0
    %1717 = vdwg.mxu0
    %v1718 = vadd.f32 %v1530, %v1689
    %v1719 = vadd.f32 %v1531, %v1702
    %v1720 = vxor.u32 %v1718, 2147483648
    %v1721 = vxor.u32 %v1719, 2147483648
    %v1722 = vmul.f32 %v1720, 1.442695
    %v1723 = vpow.pop %v1722
    %v1724 = vmul.f32 %v1721, 1.442695
    %v1725 = vpow.pop %v1724
    %v1726 = vadd.f32 %v1723, 1.0
    %v1727 = vadd.f32 %v1725, 1.0
    %v1728 = vrcp.pop %v1726
    %v1729 = vmul.f32 %v1726, %v1728
    %v1730 = vsub.f32 1.0, %v1729
    %v1731 = vmul.f32 %v1728, %v1730
    %v1732 = vadd.f32 %v1728, %v1731
    %vm1733 = vweird.f32 %v1726
    %vm1734 = vweird.f32 %v1728
    %vm1735 = vmor %vm1733, %vm1734
    %v1736 = vsel %vm1735, %v1728, %v1732
    %v1737 = vand.u32 2147483647, %v1726
    %vm1738 = vcmp.eq.f32.partialorder %v1737, 8.507059e+37
    %v1739 = vand.u32 %v1726, 2147483648
    %v1740 = vor.u32 1.1754944e-38, %v1739
    %v1741 = vsel %vm1738, %v1740, %v1736
    %v1742 = vmul.f32 1.0, %v1741
    %v1743 = vrcp.pop %v1727
    %v1744 = vmul.f32 %v1727, %v1743
    %v1745 = vsub.f32 1.0, %v1744
    %v1746 = vmul.f32 %v1743, %v1745
    %v1747 = vadd.f32 %v1743, %v1746
    %vm1748 = vweird.f32 %v1727
    %vm1749 = vweird.f32 %v1743
    %vm1750 = vmor %vm1748, %vm1749
    %v1751 = vsel %vm1750, %v1743, %v1747
    %v1752 = vand.u32 2147483647, %v1727
    %vm1753 = vcmp.eq.f32.partialorder %v1752, 8.507059e+37
    %v1754 = vand.u32 %v1727, 2147483648
    %v1755 = vor.u32 1.1754944e-38, %v1754
    %v1756 = vsel %vm1753, %v1755, %v1751
    %v1757 = vmul.f32 1.0, %v1756
    %v1758 = vadd.f32 %v1715, %v1430
    %v1759 = vmul.f32 %v1742, %v1758
    %v1760 = vadd.f32 %v1532, %v1759
    %v1761 = vtanh.pop %v1760
    %v1762 = vsub.f32 1.0, %v1757
    %v1763 = vmul.f32 %v1762, %v1761
    %v1764 = vmul.f32 %v1757, 0.0
    %v1765 = vadd.f32 %v1763, %v1764
    %v1766 = vpack.c.bf16 %v1765, %v1765
    %1767 = vmatpush.bf16.msra.mxu0 %v1652
    %1768 = vmatpush.bf16.msra.mxu0 %v1649
    %1769 = vmatpush.bf16.msra.mxu0 %v1646
    %1770 = vmatpush.bf16.msra.mxu0 %v1643
    %1771 = vmatpush.bf16.msra.mxu0 %v1640
    %1772 = vmatpush.bf16.msra.mxu0 %v1637
    %1773 = vmatpush.bf16.msra.mxu0 %v1634
    %1774 = vmatpush.bf16.msra.mxu0 %v1631
    %1775 = vmatmul.bf16.gmra.mxu0 %v1766
    %v1776 = vpop.f32.mrf.mxu0
    %v1777 = vadd.f32 0.0, %v1776
    %v1778 = vpop.f32.mrf.mxu0
    %1779 = vdwg.mxu0
    %1780 = vmatpush.bf16.msra.mxu0 %v1653
    %1781 = vmatpush.bf16.msra.mxu0 %v1650
    %1782 = vmatpush.bf16.msra.mxu0 %v1647
    %1783 = vmatpush.bf16.msra.mxu0 %v1644
    %1784 = vmatpush.bf16.msra.mxu0 %v1641
    %1785 = vmatpush.bf16.msra.mxu0 %v1638
    %1786 = vmatpush.bf16.msra.mxu0 %v1635
    %1787 = vmatpush.bf16.msra.mxu0 %v1632
    %1788 = vmatmul.bf16.gmra.mxu0 %v1766
    %v1789 = vpop.f32.mrf.mxu0
    %v1790 = vadd.f32 0.0, %v1789
    %v1791 = vpop.f32.mrf.mxu0
    %1792 = vdwg.mxu0
    %1793 = vmatpush.bf16.msra.mxu0 %v1654
    %1794 = vmatpush.bf16.msra.mxu0 %v1651
    %1795 = vmatpush.bf16.msra.mxu0 %v1648
    %1796 = vmatpush.bf16.msra.mxu0 %v1645
    %1797 = vmatpush.bf16.msra.mxu0 %v1642
    %1798 = vmatpush.bf16.msra.mxu0 %v1639
    %1799 = vmatpush.bf16.msra.mxu0 %v1636
    %1800 = vmatpush.bf16.msra.mxu0 %v1633
    %1801 = vmatmul.bf16.gmra.mxu0 %v1766
    %v1802 = vpop.f32.mrf.mxu0
    %v1803 = vadd.f32 0.0, %v1802
    %v1804 = vpop.f32.mrf.mxu0
    %1805 = vdwg.mxu0
    %v1808 = vrot.slane %v1777, 6
    %v1809 = vrot.slane %v1790, 6
    %v1812 = vadd.f32 %v1533, %v1808
    %v1813 = vadd.f32 %v1534, %v1809
    %v1814 = vxor.u32 %v1812, 2147483648
    %v1815 = vxor.u32 %v1813, 2147483648
    %v1816 = vmul.f32 %v1814, 1.442695
    %v1817 = vpow.pop %v1816
    %v1818 = vmul.f32 %v1815, 1.442695
    %v1819 = vpow.pop %v1818
    %v1820 = vadd.f32 %v1817, 1.0
    %v1821 = vadd.f32 %v1819, 1.0
    %v1822 = vrcp.pop %v1820
    %v1823 = vmul.f32 %v1820, %v1822
    %v1824 = vsub.f32 1.0, %v1823
    %v1825 = vmul.f32 %v1822, %v1824
    %v1826 = vadd.f32 %v1822, %v1825
    %vm1827 = vweird.f32 %v1820
    %vm1828 = vweird.f32 %v1822
    %vm1829 = vmor %vm1827, %vm1828
    %v1830 = vsel %vm1829, %v1822, %v1826
    %v1831 = vand.u32 2147483647, %v1820
    %vm1832 = vcmp.eq.f32.partialorder %v1831, 8.507059e+37
    %v1833 = vand.u32 %v1820, 2147483648
    %v1834 = vor.u32 1.1754944e-38, %v1833
    %v1835 = vsel %vm1832, %v1834, %v1830
    %v1836 = vmul.f32 1.0, %v1835
    %v1837 = vrcp.pop %v1821
    %v1838 = vmul.f32 %v1821, %v1837
    %v1839 = vsub.f32 1.0, %v1838
    %v1840 = vmul.f32 %v1837, %v1839
    %v1841 = vadd.f32 %v1837, %v1840
    %vm1842 = vweird.f32 %v1821
    %vm1843 = vweird.f32 %v1837
    %vm1844 = vmor %vm1842, %vm1843
    %v1845 = vsel %vm1844, %v1837, %v1841
    %v1846 = vand.u32 2147483647, %v1821
    %vm1847 = vcmp.eq.f32.partialorder %v1846, 8.507059e+37
    %v1848 = vand.u32 %v1821, 2147483648
    %v1849 = vor.u32 1.1754944e-38, %v1848
    %v1850 = vsel %vm1847, %v1849, %v1845
    %v1851 = vmul.f32 1.0, %v1850
    %v1852 = vadd.f32 %v1803, %v1430
    %v1854 = vrot.slane %v1852, 6
    %v1856 = vmul.f32 %v1836, %v1854
    %v1857 = vadd.f32 %v1535, %v1856
    %v1858 = vtanh.pop %v1857
    %v1859 = vsub.f32 1.0, %v1851
    %v1860 = vmul.f32 %v1859, %v1858
    %v1862 = vrot.slane %v1765, 6
    %v1864 = vmul.f32 %v1851, %v1862
    %v1865 = vadd.f32 %v1860, %v1864
    %v1866 = vpack.c.bf16 %v1865, %v1865
    %v1868 = vrot.slane %v1866, 1
    %1870 = vmatpush.bf16.msra.mxu0 %v1652
    %1871 = vmatpush.bf16.msra.mxu0 %v1649
    %1872 = vmatpush.bf16.msra.mxu0 %v1646
    %1873 = vmatpush.bf16.msra.mxu0 %v1643
    %1874 = vmatpush.bf16.msra.mxu0 %v1640
    %1875 = vmatpush.bf16.msra.mxu0 %v1637
    %1876 = vmatpush.bf16.msra.mxu0 %v1634
    %1877 = vmatpush.bf16.msra.mxu0 %v1631
    %1878 = vmatmul.bf16.gmra.mxu0 %v1868
    %v1879 = vpop.f32.mrf.mxu0
    %v1880 = vadd.f32 0.0, %v1879
    %v1881 = vpop.f32.mrf.mxu0
    %1882 = vdwg.mxu0
    %1883 = vmatpush.bf16.msra.mxu0 %v1653
    %1884 = vmatpush.bf16.msra.mxu0 %v1650
    %1885 = vmatpush.bf16.msra.mxu0 %v1647
    %1886 = vmatpush.bf16.msra.mxu0 %v1644
    %1887 = vmatpush.bf16.msra.mxu0 %v1641
    %1888 = vmatpush.bf16.msra.mxu0 %v1638
    %1889 = vmatpush.bf16.msra.mxu0 %v1635
    %1890 = vmatpush.bf16.msra.mxu0 %v1632
    %1891 = vmatmul.bf16.gmra.mxu0 %v1868
    %v1892 = vpop.f32.mrf.mxu0
    %v1893 = vadd.f32 0.0, %v1892
    %v1894 = vpop.f32.mrf.mxu0
    %1895 = vdwg.mxu0
    %1896 = vmatpush.bf16.msra.mxu0 %v1654
    %1897 = vmatpush.bf16.msra.mxu0 %v1651
    %1898 = vmatpush.bf16.msra.mxu0 %v1648
    %1899 = vmatpush.bf16.msra.mxu0 %v1645
    %1900 = vmatpush.bf16.msra.mxu0 %v1642
    %1901 = vmatpush.bf16.msra.mxu0 %v1639
    %1902 = vmatpush.bf16.msra.mxu0 %v1636
    %1903 = vmatpush.bf16.msra.mxu0 %v1633
    %1904 = vmatmul.bf16.gmra.mxu0 %v1868
    %v1905 = vpop.f32.mrf.mxu0
    %v1906 = vadd.f32 0.0, %v1905
    %v1907 = vpop.f32.mrf.mxu0
    %1908 = vdwg.mxu0
    %v1911 = vrot.slane %v1880, 4
    %v1912 = vrot.slane %v1893, 4
    %v1915 = vadd.f32 %v1530, %v1911
    %v1916 = vadd.f32 %v1531, %v1912
    %v1917 = vxor.u32 %v1915, 2147483648
    %v1918 = vxor.u32 %v1916, 2147483648
    %v1919 = vmul.f32 %v1917, 1.442695
    %v1920 = vpow.pop %v1919
    %v1921 = vmul.f32 %v1918, 1.442695
    %v1922 = vpow.pop %v1921
    %v1923 = vadd.f32 %v1920, 1.0
    %v1924 = vadd.f32 %v1922, 1.0
    %v1925 = vrcp.pop %v1923
    %v1926 = vmul.f32 %v1923, %v1925
    %v1927 = vsub.f32 1.0, %v1926
    %v1928 = vmul.f32 %v1925, %v1927
    %v1929 = vadd.f32 %v1925, %v1928
    %vm1930 = vweird.f32 %v1923
    %vm1931 = vweird.f32 %v1925
    %vm1932 = vmor %vm1930, %vm1931
    %v1933 = vsel %vm1932, %v1925, %v1929
    %v1934 = vand.u32 2147483647, %v1923
    %vm1935 = vcmp.eq.f32.partialorder %v1934, 8.507059e+37
    %v1936 = vand.u32 %v1923, 2147483648
    %v1937 = vor.u32 1.1754944e-38, %v1936
    %v1938 = vsel %vm1935, %v1937, %v1933
    %v1939 = vmul.f32 1.0, %v1938
    %v1940 = vrcp.pop %v1924
    %v1941 = vmul.f32 %v1924, %v1940
    %v1942 = vsub.f32 1.0, %v1941
    %v1943 = vmul.f32 %v1940, %v1942
    %v1944 = vadd.f32 %v1940, %v1943
    %vm1945 = vweird.f32 %v1924
    %vm1946 = vweird.f32 %v1940
    %vm1947 = vmor %vm1945, %vm1946
    %v1948 = vsel %vm1947, %v1940, %v1944
    %v1949 = vand.u32 2147483647, %v1924
    %vm1950 = vcmp.eq.f32.partialorder %v1949, 8.507059e+37
    %v1951 = vand.u32 %v1924, 2147483648
    %v1952 = vor.u32 1.1754944e-38, %v1951
    %v1953 = vsel %vm1950, %v1952, %v1948
    %v1954 = vmul.f32 1.0, %v1953
    %v1955 = vadd.f32 %v1906, %v1430
    %v1957 = vrot.slane %v1955, 4
    %v1959 = vmul.f32 %v1939, %v1957
    %v1960 = vadd.f32 %v1532, %v1959
    %v1961 = vtanh.pop %v1960
    %v1962 = vsub.f32 1.0, %v1954
    %v1963 = vmul.f32 %v1962, %v1961
    %v1965 = vrot.slane %v1865, 6
    %v1967 = vmul.f32 %v1954, %v1965
    %v1968 = vadd.f32 %v1963, %v1967
    %v1969 = vpack.c.bf16 %v1968, %v1968
    %v1971 = vrot.slane %v1969, 2
    %1973 = vmatpush.bf16.msra.mxu0 %v1652
    %1974 = vmatpush.bf16.msra.mxu0 %v1649
    %1975 = vmatpush.bf16.msra.mxu0 %v1646
    %1976 = vmatpush.bf16.msra.mxu0 %v1643
    %1977 = vmatpush.bf16.msra.mxu0 %v1640
    %1978 = vmatpush.bf16.msra.mxu0 %v1637
    %1979 = vmatpush.bf16.msra.mxu0 %v1634
    %1980 = vmatpush.bf16.msra.mxu0 %v1631
    %1981 = vmatmul.bf16.gmra.mxu0 %v1971
    %v1982 = vpop.f32.mrf.mxu0
    %v1983 = vadd.f32 0.0, %v1982
    %v1984 = vpop.f32.mrf.mxu0
    %1985 = vdwg.mxu0
    %1986 = vmatpush.bf16.msra.mxu0 %v1653
    %1987 = vmatpush.bf16.msra.mxu0 %v1650
    %1988 = vmatpush.bf16.msra.mxu0 %v1647
    %1989 = vmatpush.bf16.msra.mxu0 %v1644
    %1990 = vmatpush.bf16.msra.mxu0 %v1641
    %1991 = vmatpush.bf16.msra.mxu0 %v1638
    %1992 = vmatpush.bf16.msra.mxu0 %v1635
    %1993 = vmatpush.bf16.msra.mxu0 %v1632
    %1994 = vmatmul.bf16.gmra.mxu0 %v1971
    %v1995 = vpop.f32.mrf.mxu0
    %v1996 = vadd.f32 0.0, %v1995
    %v1997 = vpop.f32.mrf.mxu0
    %1998 = vdwg.mxu0
    %1999 = vmatpush.bf16.msra.mxu0 %v1654
    %2000 = vmatpush.bf16.msra.mxu0 %v1651
    %2001 = vmatpush.bf16.msra.mxu0 %v1648
    %2002 = vmatpush.bf16.msra.mxu0 %v1645
    %2003 = vmatpush.bf16.msra.mxu0 %v1642
    %2004 = vmatpush.bf16.msra.mxu0 %v1639
    %2005 = vmatpush.bf16.msra.mxu0 %v1636
    %2006 = vmatpush.bf16.msra.mxu0 %v1633
    %2007 = vmatmul.bf16.gmra.mxu0 %v1971
    %v2008 = vpop.f32.mrf.mxu0
    %v2009 = vadd.f32 0.0, %v2008
    %v2010 = vpop.f32.mrf.mxu0
    %2011 = vdwg.mxu0
    %v2014 = vrot.slane %v1983, 2
    %v2015 = vrot.slane %v1996, 2
    %v2018 = vadd.f32 %v1489, %v2014
    %v2019 = vadd.f32 %v1503, %v2015
    %v2020 = vxor.u32 %v2018, 2147483648
    %v2021 = vxor.u32 %v2019, 2147483648
    %v2022 = vmul.f32 %v2020, 1.442695
    %v2023 = vpow.pop %v2022
    %v2024 = vmul.f32 %v2021, 1.442695
    %v2025 = vpow.pop %v2024
    %v2026 = vadd.f32 %v2023, 1.0
    %v2027 = vadd.f32 %v2025, 1.0
    %v2028 = vrcp.pop %v2026
    %v2029 = vmul.f32 %v2026, %v2028
    %v2030 = vsub.f32 1.0, %v2029
    %v2031 = vmul.f32 %v2028, %v2030
    %v2032 = vadd.f32 %v2028, %v2031
    %vm2033 = vweird.f32 %v2026
    %vm2034 = vweird.f32 %v2028
    %vm2035 = vmor %vm2033, %vm2034
    %v2036 = vsel %vm2035, %v2028, %v2032
    %v2037 = vand.u32 2147483647, %v2026
    %vm2038 = vcmp.eq.f32.partialorder %v2037, 8.507059e+37
    %v2039 = vand.u32 %v2026, 2147483648
    %v2040 = vor.u32 1.1754944e-38, %v2039
    %v2041 = vsel %vm2038, %v2040, %v2036
    %v2042 = vmul.f32 1.0, %v2041
    %v2043 = vrcp.pop %v2027
    %v2044 = vmul.f32 %v2027, %v2043
    %v2045 = vsub.f32 1.0, %v2044
    %v2046 = vmul.f32 %v2043, %v2045
    %v2047 = vadd.f32 %v2043, %v2046
    %vm2048 = vweird.f32 %v2027
    %vm2049 = vweird.f32 %v2043
    %vm2050 = vmor %vm2048, %vm2049
    %v2051 = vsel %vm2050, %v2043, %v2047
    %v2052 = vand.u32 2147483647, %v2027
    %vm2053 = vcmp.eq.f32.partialorder %v2052, 8.507059e+37
    %v2054 = vand.u32 %v2027, 2147483648
    %v2055 = vor.u32 1.1754944e-38, %v2054
    %v2056 = vsel %vm2053, %v2055, %v2051
    %v2057 = vmul.f32 1.0, %v2056
    %v2058 = vadd.f32 %v2009, %v1430
    %v2060 = vrot.slane %v2058, 2
    %v2062 = vmul.f32 %v2042, %v2060
    %v2063 = vadd.f32 %v1517, %v2062
    %v2064 = vtanh.pop %v2063
    %v2065 = vsub.f32 1.0, %v2057
    %v2066 = vmul.f32 %v2065, %v2064
    %v2068 = vrot.slane %v1968, 6
    %v2070 = vmul.f32 %v2057, %v2068
    %v2071 = vadd.f32 %v2066, %v2070
    %v2072 = vpack.c.bf16 %v2071, %v2071
    %v2074 = vrot.slane %v2072, 3
    %2076 = vmatpush.bf16.msra.mxu0 %v1652
    %2077 = vmatpush.bf16.msra.mxu0 %v1649
    %2078 = vmatpush.bf16.msra.mxu0 %v1646
    %2079 = vmatpush.bf16.msra.mxu0 %v1643
    %2080 = vmatpush.bf16.msra.mxu0 %v1640
    %2081 = vmatpush.bf16.msra.mxu0 %v1637
    %2082 = vmatpush.bf16.msra.mxu0 %v1634
    %2083 = vmatpush.bf16.msra.mxu0 %v1631
    %2084 = vmatmul.bf16.gmra.mxu0 %v2074
    %v2085 = vpop.f32.mrf.mxu0
    %v2086 = vadd.f32 0.0, %v2085
    %v2087 = vpop.f32.mrf.mxu0
    %2088 = vdwg.mxu0
    %2089 = vmatpush.bf16.msra.mxu0 %v1653
    %2090 = vmatpush.bf16.msra.mxu0 %v1650
    %2091 = vmatpush.bf16.msra.mxu0 %v1647
    %2092 = vmatpush.bf16.msra.mxu0 %v1644
    %2093 = vmatpush.bf16.msra.mxu0 %v1641
    %2094 = vmatpush.bf16.msra.mxu0 %v1638
    %2095 = vmatpush.bf16.msra.mxu0 %v1635
    %2096 = vmatpush.bf16.msra.mxu0 %v1632
    %2097 = vmatmul.bf16.gmra.mxu0 %v2074
    %v2098 = vpop.f32.mrf.mxu0
    %v2099 = vadd.f32 0.0, %v2098
    %v2100 = vpop.f32.mrf.mxu0
    %2101 = vdwg.mxu0
    %2102 = vmatpush.bf16.msra.mxu0 %v1654
    %2103 = vmatpush.bf16.msra.mxu0 %v1651
    %2104 = vmatpush.bf16.msra.mxu0 %v1648
    %2105 = vmatpush.bf16.msra.mxu0 %v1645
    %2106 = vmatpush.bf16.msra.mxu0 %v1642
    %2107 = vmatpush.bf16.msra.mxu0 %v1639
    %2108 = vmatpush.bf16.msra.mxu0 %v1636
    %2109 = vmatpush.bf16.msra.mxu0 %v1633
    %2110 = vmatmul.bf16.gmra.mxu0 %v2074
    %v2111 = vpop.f32.mrf.mxu0
    %v2112 = vadd.f32 0.0, %v2111
    %v2113 = vpop.f32.mrf.mxu0
    %2114 = vdwg.mxu0
    %v2115 = vadd.f32 %v1545, %v2086
    %v2116 = vadd.f32 %v1546, %v2099
    %v2117 = vxor.u32 %v2115, 2147483648
    %v2118 = vxor.u32 %v2116, 2147483648
    %v2119 = vmul.f32 %v2117, 1.442695
    %v2120 = vpow.pop %v2119
    %v2121 = vmul.f32 %v2118, 1.442695
    %v2122 = vpow.pop %v2121
    %v2123 = vadd.f32 %v2120, 1.0
    %v2124 = vadd.f32 %v2122, 1.0
    %v2125 = vrcp.pop %v2123
    %v2126 = vmul.f32 %v2123, %v2125
    %v2127 = vsub.f32 1.0, %v2126
    %v2128 = vmul.f32 %v2125, %v2127
    %v2129 = vadd.f32 %v2125, %v2128
    %vm2130 = vweird.f32 %v2123
    %vm2131 = vweird.f32 %v2125
    %vm2132 = vmor %vm2130, %vm2131
    %v2133 = vsel %vm2132, %v2125, %v2129
    %v2134 = vand.u32 2147483647, %v2123
    %vm2135 = vcmp.eq.f32.partialorder %v2134, 8.507059e+37
    %v2136 = vand.u32 %v2123, 2147483648
    %v2137 = vor.u32 1.1754944e-38, %v2136
    %v2138 = vsel %vm2135, %v2137, %v2133
    %v2139 = vmul.f32 1.0, %v2138
    %v2140 = vrcp.pop %v2124
    %v2141 = vmul.f32 %v2124, %v2140
    %v2142 = vsub.f32 1.0, %v2141
    %v2143 = vmul.f32 %v2140, %v2142
    %v2144 = vadd.f32 %v2140, %v2143
    %vm2145 = vweird.f32 %v2124
    %vm2146 = vweird.f32 %v2140
    %vm2147 = vmor %vm2145, %vm2146
    %v2148 = vsel %vm2147, %v2140, %v2144
    %v2149 = vand.u32 2147483647, %v2124
    %vm2150 = vcmp.eq.f32.partialorder %v2149, 8.507059e+37
    %v2151 = vand.u32 %v2124, 2147483648
    %v2152 = vor.u32 1.1754944e-38, %v2151
    %v2153 = vsel %vm2150, %v2152, %v2148
    %v2154 = vmul.f32 1.0, %v2153
    %v2155 = vadd.f32 %v2112, %v1430
    %v2156 = vmul.f32 %v2139, %v2155
    %v2157 = vadd.f32 %v1547, %v2156
    %v2158 = vtanh.pop %v2157
    %v2159 = vsub.f32 1.0, %v2154
    %v2160 = vmul.f32 %v2159, %v2158
    %v2162 = vrot.slane %v2071, 6
    %v2164 = vmul.f32 %v2154, %v2162
    %v2165 = vadd.f32 %v2160, %v2164
    %v2166 = vpack.c.bf16 %v2165, %v2165
    %2167 = vmatpush.bf16.msra.mxu0 %v1652
    %2168 = vmatpush.bf16.msra.mxu0 %v1649
    %2169 = vmatpush.bf16.msra.mxu0 %v1646
    %2170 = vmatpush.bf16.msra.mxu0 %v1643
    %2171 = vmatpush.bf16.msra.mxu0 %v1640
    %2172 = vmatpush.bf16.msra.mxu0 %v1637
    %2173 = vmatpush.bf16.msra.mxu0 %v1634
    %2174 = vmatpush.bf16.msra.mxu0 %v1631
    %2175 = vmatmul.bf16.gmra.mxu0 %v2166
    %v2176 = vpop.f32.mrf.mxu0
    %v2177 = vadd.f32 0.0, %v2176
    %v2178 = vpop.f32.mrf.mxu0
    %2179 = vdwg.mxu0
    %2180 = vmatpush.bf16.msra.mxu0 %v1653
    %2181 = vmatpush.bf16.msra.mxu0 %v1650
    %2182 = vmatpush.bf16.msra.mxu0 %v1647
    %2183 = vmatpush.bf16.msra.mxu0 %v1644
    %2184 = vmatpush.bf16.msra.mxu0 %v1641
    %2185 = vmatpush.bf16.msra.mxu0 %v1638
    %2186 = vmatpush.bf16.msra.mxu0 %v1635
    %2187 = vmatpush.bf16.msra.mxu0 %v1632
    %2188 = vmatmul.bf16.gmra.mxu0 %v2166
    %v2189 = vpop.f32.mrf.mxu0
    %v2190 = vadd.f32 0.0, %v2189
    %v2191 = vpop.f32.mrf.mxu0
    %2192 = vdwg.mxu0
    %2193 = vmatpush.bf16.msra.mxu0 %v1654
    %2194 = vmatpush.bf16.msra.mxu0 %v1651
    %2195 = vmatpush.bf16.msra.mxu0 %v1648
    %2196 = vmatpush.bf16.msra.mxu0 %v1645
    %2197 = vmatpush.bf16.msra.mxu0 %v1642
    %2198 = vmatpush.bf16.msra.mxu0 %v1639
    %2199 = vmatpush.bf16.msra.mxu0 %v1636
    %2200 = vmatpush.bf16.msra.mxu0 %v1633
    %2201 = vmatmul.bf16.gmra.mxu0 %v2166
    %v2202 = vpop.f32.mrf.mxu0
    %v2203 = vadd.f32 0.0, %v2202
    %v2204 = vpop.f32.mrf.mxu0
    %2205 = vdwg.mxu0
    %v2208 = vrot.slane %v2177, 6
    %v2209 = vrot.slane %v2190, 6
    %v2212 = vadd.f32 %v1548, %v2208
    %v2213 = vadd.f32 %v1549, %v2209
    %v2214 = vxor.u32 %v2212, 2147483648
    %v2215 = vxor.u32 %v2213, 2147483648
    %v2216 = vmul.f32 %v2214, 1.442695
    %v2217 = vpow.pop %v2216
    %v2218 = vmul.f32 %v2215, 1.442695
    %v2219 = vpow.pop %v2218
    %v2220 = vadd.f32 %v2217, 1.0
    %v2221 = vadd.f32 %v2219, 1.0
    %v2222 = vrcp.pop %v2220
    %v2223 = vmul.f32 %v2220, %v2222
    %v2224 = vsub.f32 1.0, %v2223
    %v2225 = vmul.f32 %v2222, %v2224
    %v2226 = vadd.f32 %v2222, %v2225
    %vm2227 = vweird.f32 %v2220
    %vm2228 = vweird.f32 %v2222
    %vm2229 = vmor %vm2227, %vm2228
    %v2230 = vsel %vm2229, %v2222, %v2226
    %v2231 = vand.u32 2147483647, %v2220
    %vm2232 = vcmp.eq.f32.partialorder %v2231, 8.507059e+37
    %v2233 = vand.u32 %v2220, 2147483648
    %v2234 = vor.u32 1.1754944e-38, %v2233
    %v2235 = vsel %vm2232, %v2234, %v2230
    %v2236 = vmul.f32 1.0, %v2235
    %v2237 = vrcp.pop %v2221
    %v2238 = vmul.f32 %v2221, %v2237
    %v2239 = vsub.f32 1.0, %v2238
    %v2240 = vmul.f32 %v2237, %v2239
    %v2241 = vadd.f32 %v2237, %v2240
    %vm2242 = vweird.f32 %v2221
    %vm2243 = vweird.f32 %v2237
    %vm2244 = vmor %vm2242, %vm2243
    %v2245 = vsel %vm2244, %v2237, %v2241
    %v2246 = vand.u32 2147483647, %v2221
    %vm2247 = vcmp.eq.f32.partialorder %v2246, 8.507059e+37
    %v2248 = vand.u32 %v2221, 2147483648
    %v2249 = vor.u32 1.1754944e-38, %v2248
    %v2250 = vsel %vm2247, %v2249, %v2245
    %v2251 = vmul.f32 1.0, %v2250
    %v2252 = vadd.f32 %v2203, %v1430
    %v2254 = vrot.slane %v2252, 6
    %v2256 = vmul.f32 %v2236, %v2254
    %v2257 = vadd.f32 %v1550, %v2256
    %v2258 = vtanh.pop %v2257
    %v2259 = vsub.f32 1.0, %v2251
    %v2260 = vmul.f32 %v2259, %v2258
    %v2262 = vrot.slane %v2165, 6
    %v2264 = vmul.f32 %v2251, %v2262
    %v2265 = vadd.f32 %v2260, %v2264
    %v2266 = vpack.c.bf16 %v2265, %v2265
    %v2268 = vrot.slane %v2266, 1
    %2270 = vmatpush.bf16.msra.mxu0 %v1652
    %2271 = vmatpush.bf16.msra.mxu0 %v1649
    %2272 = vmatpush.bf16.msra.mxu0 %v1646
    %2273 = vmatpush.bf16.msra.mxu0 %v1643
    %2274 = vmatpush.bf16.msra.mxu0 %v1640
    %2275 = vmatpush.bf16.msra.mxu0 %v1637
    %2276 = vmatpush.bf16.msra.mxu0 %v1634
    %2277 = vmatpush.bf16.msra.mxu0 %v1631
    %2278 = vmatmul.bf16.gmra.mxu0 %v2268
    %v2279 = vpop.f32.mrf.mxu0
    %v2280 = vadd.f32 0.0, %v2279
    %v2281 = vpop.f32.mrf.mxu0
    %2282 = vdwg.mxu0
    %2283 = vmatpush.bf16.msra.mxu0 %v1653
    %2284 = vmatpush.bf16.msra.mxu0 %v1650
    %2285 = vmatpush.bf16.msra.mxu0 %v1647
    %2286 = vmatpush.bf16.msra.mxu0 %v1644
    %2287 = vmatpush.bf16.msra.mxu0 %v1641
    %2288 = vmatpush.bf16.msra.mxu0 %v1638
    %2289 = vmatpush.bf16.msra.mxu0 %v1635
    %2290 = vmatpush.bf16.msra.mxu0 %v1632
    %2291 = vmatmul.bf16.gmra.mxu0 %v2268
    %v2292 = vpop.f32.mrf.mxu0
    %v2293 = vadd.f32 0.0, %v2292
    %v2294 = vpop.f32.mrf.mxu0
    %2295 = vdwg.mxu0
    %2296 = vmatpush.bf16.msra.mxu0 %v1654
    %2297 = vmatpush.bf16.msra.mxu0 %v1651
    %2298 = vmatpush.bf16.msra.mxu0 %v1648
    %2299 = vmatpush.bf16.msra.mxu0 %v1645
    %2300 = vmatpush.bf16.msra.mxu0 %v1642
    %2301 = vmatpush.bf16.msra.mxu0 %v1639
    %2302 = vmatpush.bf16.msra.mxu0 %v1636
    %2303 = vmatpush.bf16.msra.mxu0 %v1633
    %2304 = vmatmul.bf16.gmra.mxu0 %v2268
    %v2305 = vpop.f32.mrf.mxu0
    %v2306 = vadd.f32 0.0, %v2305
    %v2307 = vpop.f32.mrf.mxu0
    %2308 = vdwg.mxu0
    %v2311 = vrot.slane %v2280, 4
    %v2312 = vrot.slane %v2293, 4
    %v2315 = vadd.f32 %v1545, %v2311
    %v2316 = vadd.f32 %v1546, %v2312
    %v2317 = vxor.u32 %v2315, 2147483648
    %v2318 = vxor.u32 %v2316, 2147483648
    %v2319 = vmul.f32 %v2317, 1.442695
    %v2320 = vpow.pop %v2319
    %v2321 = vmul.f32 %v2318, 1.442695
    %v2322 = vpow.pop %v2321
    %v2323 = vadd.f32 %v2320, 1.0
    %v2324 = vadd.f32 %v2322, 1.0
    %v2325 = vrcp.pop %v2323
    %v2326 = vmul.f32 %v2323, %v2325
    %v2327 = vsub.f32 1.0, %v2326
    %v2328 = vmul.f32 %v2325, %v2327
    %v2329 = vadd.f32 %v2325, %v2328
    %vm2330 = vweird.f32 %v2323
    %vm2331 = vweird.f32 %v2325
    %vm2332 = vmor %vm2330, %vm2331
    %v2333 = vsel %vm2332, %v2325, %v2329
    %v2334 = vand.u32 2147483647, %v2323
    %vm2335 = vcmp.eq.f32.partialorder %v2334, 8.507059e+37
    %v2336 = vand.u32 %v2323, 2147483648
    %v2337 = vor.u32 1.1754944e-38, %v2336
    %v2338 = vsel %vm2335, %v2337, %v2333
    %v2339 = vmul.f32 1.0, %v2338
    %v2340 = vrcp.pop %v2324
    %v2341 = vmul.f32 %v2324, %v2340
    %v2342 = vsub.f32 1.0, %v2341
    %v2343 = vmul.f32 %v2340, %v2342
    %v2344 = vadd.f32 %v2340, %v2343
    %vm2345 = vweird.f32 %v2324
    %vm2346 = vweird.f32 %v2340
    %vm2347 = vmor %vm2345, %vm2346
    %v2348 = vsel %vm2347, %v2340, %v2344
    %v2349 = vand.u32 2147483647, %v2324
    %vm2350 = vcmp.eq.f32.partialorder %v2349, 8.507059e+37
    %v2351 = vand.u32 %v2324, 2147483648
    %v2352 = vor.u32 1.1754944e-38, %v2351
    %v2353 = vsel %vm2350, %v2352, %v2348
    %v2354 = vmul.f32 1.0, %v2353
    %v2355 = vadd.f32 %v2306, %v1430
    %v2357 = vrot.slane %v2355, 4
    %v2359 = vmul.f32 %v2339, %v2357
    %v2360 = vadd.f32 %v1547, %v2359
    %v2361 = vtanh.pop %v2360
    %v2362 = vsub.f32 1.0, %v2354
    %v2363 = vmul.f32 %v2362, %v2361
    %v2365 = vrot.slane %v2265, 6
    %v2367 = vmul.f32 %v2354, %v2365
    %v2368 = vadd.f32 %v2363, %v2367
    %v2370 = vrot.slane %v2368, 4
    %2371 = vrot.lane.b32.xlu0 %v2370, 96
    %v2372 = vpop.permute.xlu0 %2371
    %v2374 = vadd.f32 %v1765, %v2372
    %2375 = vrot.lane.b32.xlu0 %v2265, 96
    %v2376 = vpop.permute.xlu0 %2375
    %v2378 = vadd.f32 %v1865, %v2376
    %v2379 = vrot.slane %v2165, 4
    %2380 = vrot.lane.b32.xlu0 %v2379, 96
    %v2381 = vpop.permute.xlu0 %2380
    %v2383 = vadd.f32 %v1968, %v2381
    %2384 = vrot.lane.b32.xlu0 %v2071, 96
    %v2385 = vpop.permute.xlu0 %2384
    %v2387 = vadd.f32 %v2071, %v2385
    %v2388 = vrot.slane %v1968, 4
    %2389 = vrot.lane.b32.xlu0 %v2388, 96
    %v2390 = vpop.permute.xlu0 %2389
    %v2392 = vadd.f32 %v2165, %v2390
    %2393 = vrot.lane.b32.xlu0 %v1865, 96
    %v2394 = vpop.permute.xlu0 %2393
    %v2396 = vadd.f32 %v2265, %v2394
    %v2397 = vrot.slane %v1765, 4
    %2398 = vrot.lane.b32.xlu0 %v2397, 96
    %v2399 = vpop.permute.xlu0 %2398
    %v2401 = vadd.f32 %v2368, %v2399
    %v2403 = vrot.slane %v2378, 2
    %v2405 = vadd.f32 %v2374, %v2403
    %v2407 = vrot.slane %v2383, 4
    %v2409 = vadd.f32 %v2405, %v2407
    %v2411 = vrot.slane %v2387, 6
    %v2413 = vadd.f32 %v2409, %v2411
    %v2414 = vadd.f32 %v2413, %v2392
    %v2416 = vrot.slane %v2396, 2
    %v2418 = vadd.f32 %v2414, %v2416
    %v2420 = vrot.slane %v2401, 4
    %v2422 = vadd.f32 %v2418, %v2420
    %v2423 = vsel %vm1265, %v2422, 0.0
    %2424 = vadd.xlane.f32.xlu0 %v2423
    %v2425 = vpop.xlane.xlu0 %2424
    %v2426 = vmul.f32 %v2425, %v1275
    %v2427 = vsub.f32 %v2374, %v2426
    %v2429 = vrot.slane %v2426, 6
    %v2431 = vsub.f32 %v2378, %v2429
    %v2432 = vrot.slane %v2426, 4
    %v2434 = vsub.f32 %v2383, %v2432
    %v2435 = vrot.slane %v2426, 2
    %v2437 = vsub.f32 %v2387, %v2435
    %v2438 = vsub.f32 %v2392, %v2426
    %v2439 = vsub.f32 %v2396, %v2429
    %v2440 = vsub.f32 %v2401, %v2432
    %v2441 = vmul.f32 %v2427, %v2427
    %v2442 = vsel %vm1265, %v2441, 0.0
    %2443 = vadd.xlane.f32.xlu0 %v2442
    %v2444 = vpop.xlane.xlu0 %2443
    %v2445 = vmul.f32 %v2431, %v2431
    %v2446 = vsel %vm1296, %v2445, 0.0
    %2447 = vadd.xlane.f32.xlu0 %v2446
    %v2448 = vpop.xlane.xlu0 %2447
    %v2450 = vrot.slane %v2448, 2
    %v2452 = vadd.f32 %v2444, %v2450
    %v2453 = vmul.f32 %v2434, %v2434
    %v2454 = vsel %vm1305, %v2453, 0.0
    %2455 = vadd.xlane.f32.xlu0 %v2454
    %v2456 = vpop.xlane.xlu0 %2455
    %v2458 = vrot.slane %v2456, 4
    %v2460 = vadd.f32 %v2452, %v2458
    %v2461 = vmul.f32 %v2437, %v2437
    %v2462 = vsel %vm1314, %v2461, 0.0
    %2463 = vadd.xlane.f32.xlu0 %v2462
    %v2464 = vpop.xlane.xlu0 %2463
    %v2466 = vrot.slane %v2464, 6
    %v2468 = vadd.f32 %v2460, %v2466
    %v2469 = vmul.f32 %v2438, %v2438
    %v2470 = vsel %vm1265, %v2469, 0.0
    %2471 = vadd.xlane.f32.xlu0 %v2470
    %v2472 = vpop.xlane.xlu0 %2471
    %v2473 = vadd.f32 %v2468, %v2472
    %v2474 = vmul.f32 %v2439, %v2439
    %v2475 = vsel %vm1296, %v2474, 0.0
    %2476 = vadd.xlane.f32.xlu0 %v2475
    %v2477 = vpop.xlane.xlu0 %2476
    %v2479 = vrot.slane %v2477, 2
    %v2481 = vadd.f32 %v2473, %v2479
    %v2482 = vmul.f32 %v2440, %v2440
    %v2483 = vsel %vm1305, %v2482, 0.0
    %2484 = vadd.xlane.f32.xlu0 %v2483
    %v2485 = vpop.xlane.xlu0 %2484
    %v2487 = vrot.slane %v2485, 4
    %v2489 = vadd.f32 %v2481, %v2487
    %v2490 = vmul.f32 %v2489, %v1275
    %v2491 = vadd.f32 %v2490, 1e-05
    %v2492 = vrsqrt.pop %v2491
    %v2493 = vmul.f32 %v2492, %v2491
    %v2494 = vmul.f32 %v2493, %v2492
    %v2495 = vmul.f32 0.5, %v2494
    %v2496 = vsub.f32 1.5, %v2495
    %v2497 = vmul.f32 %v2492, %v2496
    %vm2498 = vweird.f32 %v2491
    %vm2499 = vweird.f32 %v2492
    %vm2500 = vmor %vm2498, %vm2499
    %v2501 = vsel %vm2500, %v2492, %v2497
    %2503 = vset.pattern.permute.xlu0 0
    %2504 = vperm.xlu0 %2503, %v2501
    %v2505 = vpop.permute.xlu0 %2504
    %v2507 = vmul.f32 %v2427, %v2505
    %v2508 = vrot.slane %v2505, 6
    %v2510 = vmul.f32 %v2431, %v2508
    %v2511 = vrot.slane %v2505, 4
    %v2513 = vmul.f32 %v2434, %v2511
    %v2514 = vrot.slane %v2505, 2
    %v2516 = vmul.f32 %v2437, %v2514
    %v2517 = vmul.f32 %v2438, %v2505
    %v2518 = vmul.f32 %v2439, %v2508
    %v2519 = vmul.f32 %v2440, %v2511
    %v2520 = vsel %vm1373, %v2507, %v2510
    %v2521 = vsel %vm1375, %v2520, %v2513
    %v2522 = vsel %vm1377, %v2521, %v2516
    %v2523 = vsel %vm1373, %v2517, %v2518
    %v2524 = vsel %vm1375, %v2523, %v2519
    %v2525 = vmul.f32 %v2522, %v1432
    %v2526 = vmul.f32 %v2524, %v1433
    %v2527 = vadd.f32 %v2525, %v1434
    %v2528 = vadd.f32 %v2526, %v1435
    %v2529 = vld [vmem:[#allocation2 + $0x210] sm:$0xff]
    %v2530 = vld [vmem:[#allocation2 + $0x21c] sm:$0xff]
    %v2531 = vld [vmem:[#allocation2 + $0x228] sm:$0xff]
    %v2532 = vld [vmem:[#allocation2 + $0x234] sm:$0xff]
    %s2533 = scalar_lea.vmem [#allocation4], 264
    %v2534 = vld [vmem:[%s2533] ss:$8 sm:$0x7]
    %s2535 = scalar_lea.vmem [#allocation4], 265
    %v2536 = vld [vmem:[%s2535] ss:$8 sm:$0x7]
    %s2537 = scalar_lea.vmem [#allocation4], 266
    %v2538 = vld [vmem:[%s2537] ss:$8 sm:$0x7]
    %v2539 = vpack.c.bf16 %v2528, %v2527
    %v2541 = vperm.slane %v2534, 0
    %v2547 = vunpack.c.l.b16 %v2529
    %v2548 = vunpack.c.l.b16 %v2530
    %v2549 = vunpack.c.l.b16 %v2531
    %v2550 = vunpack.c.l.b16 %v2532
    %v2551 = vpack.c.b16 %v2548, %v2547
    %v2552 = vpack.c.b16 %v2550, %v2549
    %v2556 = vsel %vm317, %v2539, 0
    %2558 = vmatpush.bf16.msra.mxu0 0
    %2559 = vmatpush.bf16.msra.mxu0 0
    %2560 = vmatpush.bf16.msra.mxu0 0
    %2561 = vmatpush.bf16.msra.mxu0 0
    %2562 = vmatpush.bf16.msra.mxu0 0
    %2563 = vmatpush.bf16.msra.mxu0 0
    %2564 = vmatpush.bf16.msra.mxu0 %v2552
    %2565 = vmatpush.bf16.msra.mxu0 %v2551
    %2566 = vmatmul.bf16.gmra.mxu0 %v2556
    %v2567 = vpop.f32.mrf.mxu0
    %v2568 = vadd.f32 %v2541, %v2567
    %v2569 = vpop.f32.mrf.mxu0
    %v2570 = vadd.f32 %v2541, %v2569
    %2571 = vdwg.mxu0
    %v2572 = vsel %vm317, %v2568, 0.0
    %2573 = vadd.xlane.f32.xlu0 %v2572
    %v2574 = vpop.xlane.xlu0 %2573
    %vm2575 = vcmask 259072
    %v2576 = vsel %vm2575, %v2570, 0.0
    %2577 = vadd.xlane.f32.xlu0 %v2576
    %v2578 = vpop.xlane.xlu0 %2577
    %v2579 = vrcp.pop 32.0
    %v2580 = vmul.f32 32.0, %v2579
    %v2581 = vsub.f32 1.0, %v2580
    %v2582 = vmul.f32 %v2579, %v2581
    %v2583 = vadd.f32 %v2579, %v2582
    %vm2584 = vweird.f32 %v2579
    %v2585 = vsel %vm2584, %v2579, %v2583
    %v2586 = vmul.f32 %v2574, %v2585
    %v2587 = vmul.f32 %v2578, %v2585
    %v2588 = vsub.f32 %v2568, %v2586
    %v2589 = vsub.f32 %v2570, %v2587
    %v2590 = vmul.f32 %v2588, %v2588
    %v2591 = vmul.f32 %v2589, %v2589
    %v2592 = vsel %vm317, %v2590, 0.0
    %2593 = vadd.xlane.f32.xlu0 %v2592
    %v2594 = vpop.xlane.xlu0 %2593
    %v2595 = vsel %vm2575, %v2591, 0.0
    %2596 = vadd.xlane.f32.xlu0 %v2595
    %v2597 = vpop.xlane.xlu0 %2596
    %v2598 = vmul.f32 %v2594, %v2585
    %v2599 = vmul.f32 %v2597, %v2585
    %v2600 = vadd.f32 %v2598, 1e-05
    %v2601 = vadd.f32 %v2599, 1e-05
    %v2602 = vrsqrt.pop %v2600
    %v2603 = vmul.f32 %v2602, %v2600
    %v2604 = vmul.f32 %v2603, %v2602
    %v2605 = vmul.f32 0.5, %v2604
    %v2606 = vsub.f32 1.5, %v2605
    %v2607 = vmul.f32 %v2602, %v2606
    %vm2608 = vweird.f32 %v2600
    %vm2609 = vweird.f32 %v2602
    %vm2610 = vmor %vm2608, %vm2609
    %v2611 = vsel %vm2610, %v2602, %v2607
    %v2612 = vrsqrt.pop %v2601
    %v2613 = vmul.f32 %v2612, %v2601
    %v2614 = vmul.f32 %v2613, %v2612
    %v2615 = vmul.f32 0.5, %v2614
    %v2616 = vsub.f32 1.5, %v2615
    %v2617 = vmul.f32 %v2612, %v2616
    %vm2618 = vweird.f32 %v2601
    %vm2619 = vweird.f32 %v2612
    %vm2620 = vmor %vm2618, %vm2619
    %v2621 = vsel %vm2620, %v2612, %v2617
    %v2622 = vmul.f32 %v2588, %v2611
    %v2623 = vmul.f32 %v2589, %v2621
    %v2625 = vperm.slane %v2536, 0
    %v2627 = vmul.f32 %v2622, %v2625
    %v2628 = vmul.f32 %v2623, %v2625
    %v2630 = vperm.slane %v2538, 0
    %v2632 = vadd.f32 %v2627, %v2630
    %v2633 = vadd.f32 %v2628, %v2630
    %vm2634 = vcmp.ge.f32.partialorder %v2632, 0.0
    %vm2635 = vcmp.ge.f32.partialorder %v2633, 0.0
    %v2636 = vmul.f32 %v2632, 0.2
    %v2637 = vmul.f32 %v2633, 0.2
    %v2638 = vsel %vm2634, %v2632, %v2636
    %v2639 = vsel %vm2635, %v2633, %v2637
    %v2640 = vld [vmem:[#allocation2 + $0x240] sm:$0xff]
    %v2641 = vld [vmem:[#allocation2 + $0x24c] sm:$0xff]
    %v2642 = vld [vmem:[#allocation2 + $0x258] sm:$0xff]
    %v2643 = vld [vmem:[#allocation2 + $0x264] sm:$0xff]
    %s2644 = scalar_lea.vmem [#allocation4], 288
    %v2645 = vld [vmem:[%s2644] ss:$8 sm:$0x7]
    %s2646 = scalar_lea.vmem [#allocation4], 289
    %v2647 = vld [vmem:[%s2646] ss:$8 sm:$0x7]
    %s2648 = scalar_lea.vmem [#allocation4], 290
    %v2649 = vld [vmem:[%s2648] ss:$8 sm:$0x7]
    %v2650 = vpack.c.bf16 %v2639, %v2638
    %v2652 = vperm.slane %v2645, 0
    %v2658 = vunpack.c.l.b16 %v2640
    %v2659 = vunpack.c.l.b16 %v2641
    %v2660 = vunpack.c.l.b16 %v2642
    %v2661 = vunpack.c.l.b16 %v2643
    %v2662 = vpack.c.b16 %v2659, %v2658
    %v2663 = vpack.c.b16 %v2661, %v2660
    %v2667 = vsel %vm317, %v2650, 0
    %2669 = vmatpush.bf16.msra.mxu0 0
    %2670 = vmatpush.bf16.msra.mxu0 0
    %2671 = vmatpush.bf16.msra.mxu0 0
    %2672 = vmatpush.bf16.msra.mxu0 0
    %2673 = vmatpush.bf16.msra.mxu0 0
    %2674 = vmatpush.bf16.msra.mxu0 0
    %2675 = vmatpush.bf16.msra.mxu0 %v2663
    %2676 = vmatpush.bf16.msra.mxu0 %v2662
    %2677 = vmatmul.bf16.gmra.mxu0 %v2667
    %v2678 = vpop.f32.mrf.mxu0
    %v2679 = vadd.f32 %v2652, %v2678
    %v2680 = vpop.f32.mrf.mxu0
    %v2681 = vadd.f32 %v2652, %v2680
    %2682 = vdwg.mxu0
    %v2683 = vsel %vm317, %v2679, 0.0
    %2684 = vadd.xlane.f32.xlu0 %v2683
    %v2685 = vpop.xlane.xlu0 %2684
    %v2686 = vsel %vm2575, %v2681, 0.0
    %2687 = vadd.xlane.f32.xlu0 %v2686
    %v2688 = vpop.xlane.xlu0 %2687
    %v2689 = vmul.f32 %v2685, %v2585
    %v2690 = vmul.f32 %v2688, %v2585
    %v2691 = vsub.f32 %v2679, %v2689
    %v2692 = vsub.f32 %v2681, %v2690
    %v2693 = vmul.f32 %v2691, %v2691
    %v2694 = vmul.f32 %v2692, %v2692
    %v2695 = vsel %vm317, %v2693, 0.0
    %2696 = vadd.xlane.f32.xlu0 %v2695
    %v2697 = vpop.xlane.xlu0 %2696
    %v2698 = vsel %vm2575, %v2694, 0.0
    %2699 = vadd.xlane.f32.xlu0 %v2698
    %v2700 = vpop.xlane.xlu0 %2699
    %v2701 = vmul.f32 %v2697, %v2585
    %v2702 = vmul.f32 %v2700, %v2585
    %v2703 = vadd.f32 %v2701, 1e-05
    %v2704 = vadd.f32 %v2702, 1e-05
    %v2705 = vrsqrt.pop %v2703
    %v2706 = vmul.f32 %v2705, %v2703
    %v2707 = vmul.f32 %v2706, %v2705
    %v2708 = vmul.f32 0.5, %v2707
    %v2709 = vsub.f32 1.5, %v2708
    %v2710 = vmul.f32 %v2705, %v2709
    %vm2711 = vweird.f32 %v2703
    %vm2712 = vweird.f32 %v2705
    %vm2713 = vmor %vm2711, %vm2712
    %v2714 = vsel %vm2713, %v2705, %v2710
    %v2715 = vrsqrt.pop %v2704
    %v2716 = vmul.f32 %v2715, %v2704
    %v2717 = vmul.f32 %v2716, %v2715
    %v2718 = vmul.f32 0.5, %v2717
    %v2719 = vsub.f32 1.5, %v2718
    %v2720 = vmul.f32 %v2715, %v2719
    %vm2721 = vweird.f32 %v2704
    %vm2722 = vweird.f32 %v2715
    %vm2723 = vmor %vm2721, %vm2722
    %v2724 = vsel %vm2723, %v2715, %v2720
    %v2725 = vmul.f32 %v2691, %v2714
    %v2726 = vmul.f32 %v2692, %v2724
    %v2728 = vperm.slane %v2647, 0
    %v2730 = vmul.f32 %v2725, %v2728
    %v2731 = vmul.f32 %v2726, %v2728
    %v2733 = vperm.slane %v2649, 0
    %v2735 = vadd.f32 %v2730, %v2733
    %v2736 = vadd.f32 %v2731, %v2733
    %vm2737 = vcmp.ge.f32.partialorder %v2735, 0.0
    %vm2738 = vcmp.ge.f32.partialorder %v2736, 0.0
    %v2739 = vmul.f32 %v2735, 0.2
    %v2740 = vmul.f32 %v2736, 0.2
    %v2741 = vsel %vm2737, %v2735, %v2739
    %v2742 = vsel %vm2738, %v2736, %v2740
    %v2743 = vadd.f32 %v2741, %v2638
    %v2744 = vadd.f32 %v2742, %v2639
    %v2745 = vld [vmem:[#allocation2 + $0x270] sm:$0xff]
    %v2746 = vld [vmem:[#allocation2 + $0x27c] sm:$0xff]
    %v2747 = vld [vmem:[#allocation2 + $0x288] sm:$0xff]
    %v2748 = vld [vmem:[#allocation2 + $0x294] sm:$0xff]
    %s2749 = scalar_lea.vmem [#allocation4], 312
    %v2750 = vld [vmem:[%s2749] ss:$8 sm:$0x7]
    %s2751 = scalar_lea.vmem [#allocation4], 313
    %v2752 = vld [vmem:[%s2751] ss:$8 sm:$0x7]
    %s2753 = scalar_lea.vmem [#allocation4], 314
    %v2754 = vld [vmem:[%s2753] ss:$8 sm:$0x7]
    %v2755 = vpack.c.bf16 %v2744, %v2743
    %v2757 = vperm.slane %v2750, 0
    %v2763 = vunpack.c.l.b16 %v2745
    %v2764 = vunpack.c.l.b16 %v2746
    %v2765 = vunpack.c.l.b16 %v2747
    %v2766 = vunpack.c.l.b16 %v2748
    %v2767 = vpack.c.b16 %v2764, %v2763
    %v2768 = vpack.c.b16 %v2766, %v2765
    %v2772 = vsel %vm317, %v2755, 0
    %2774 = vmatpush.bf16.msra.mxu0 0
    %2775 = vmatpush.bf16.msra.mxu0 0
    %2776 = vmatpush.bf16.msra.mxu0 0
    %2777 = vmatpush.bf16.msra.mxu0 0
    %2778 = vmatpush.bf16.msra.mxu0 0
    %2779 = vmatpush.bf16.msra.mxu0 0
    %2780 = vmatpush.bf16.msra.mxu0 %v2768
    %2781 = vmatpush.bf16.msra.mxu0 %v2767
    %2782 = vmatmul.bf16.gmra.mxu0 %v2772
    %v2783 = vpop.f32.mrf.mxu0
    %v2784 = vadd.f32 %v2757, %v2783
    %v2785 = vpop.f32.mrf.mxu0
    %v2786 = vadd.f32 %v2757, %v2785
    %2787 = vdwg.mxu0
    %v2788 = vsel %vm317, %v2784, 0.0
    %2789 = vadd.xlane.f32.xlu0 %v2788
    %v2790 = vpop.xlane.xlu0 %2789
    %v2791 = vsel %vm2575, %v2786, 0.0
    %2792 = vadd.xlane.f32.xlu0 %v2791
    %v2793 = vpop.xlane.xlu0 %2792
    %v2794 = vmul.f32 %v2790, %v2585
    %v2795 = vmul.f32 %v2793, %v2585
    %v2796 = vsub.f32 %v2784, %v2794
    %v2797 = vsub.f32 %v2786, %v2795
    %v2798 = vmul.f32 %v2796, %v2796
    %v2799 = vmul.f32 %v2797, %v2797
    %v2800 = vsel %vm317, %v2798, 0.0
    %2801 = vadd.xlane.f32.xlu0 %v2800
    %v2802 = vpop.xlane.xlu0 %2801
    %v2803 = vsel %vm2575, %v2799, 0.0
    %2804 = vadd.xlane.f32.xlu0 %v2803
    %v2805 = vpop.xlane.xlu0 %2804
    %v2806 = vmul.f32 %v2802, %v2585
    %v2807 = vmul.f32 %v2805, %v2585
    %v2808 = vadd.f32 %v2806, 1e-05
    %v2809 = vadd.f32 %v2807, 1e-05
    %v2810 = vrsqrt.pop %v2808
    %v2811 = vmul.f32 %v2810, %v2808
    %v2812 = vmul.f32 %v2811, %v2810
    %v2813 = vmul.f32 0.5, %v2812
    %v2814 = vsub.f32 1.5, %v2813
    %v2815 = vmul.f32 %v2810, %v2814
    %vm2816 = vweird.f32 %v2808
    %vm2817 = vweird.f32 %v2810
    %vm2818 = vmor %vm2816, %vm2817
    %v2819 = vsel %vm2818, %v2810, %v2815
    %v2820 = vrsqrt.pop %v2809
    %v2821 = vmul.f32 %v2820, %v2809
    %v2822 = vmul.f32 %v2821, %v2820
    %v2823 = vmul.f32 0.5, %v2822
    %v2824 = vsub.f32 1.5, %v2823
    %v2825 = vmul.f32 %v2820, %v2824
    %vm2826 = vweird.f32 %v2809
    %vm2827 = vweird.f32 %v2820
    %vm2828 = vmor %vm2826, %vm2827
    %v2829 = vsel %vm2828, %v2820, %v2825
    %v2830 = vmul.f32 %v2796, %v2819
    %v2831 = vmul.f32 %v2797, %v2829
    %v2833 = vperm.slane %v2752, 0
    %v2835 = vmul.f32 %v2830, %v2833
    %v2836 = vmul.f32 %v2831, %v2833
    %v2838 = vperm.slane %v2754, 0
    %v2840 = vadd.f32 %v2835, %v2838
    %v2841 = vadd.f32 %v2836, %v2838
    %vm2842 = vcmp.ge.f32.partialorder %v2840, 0.0
    %vm2843 = vcmp.ge.f32.partialorder %v2841, 0.0
    %v2844 = vmul.f32 %v2840, 0.2
    %v2845 = vmul.f32 %v2841, 0.2
    %v2846 = vsel %vm2842, %v2840, %v2844
    %v2847 = vsel %vm2843, %v2841, %v2845
    %v2848 = vadd.f32 %v2846, %v2743
    %v2849 = vadd.f32 %v2847, %v2744
    %2850 = vst.msk [vmem:[%s3] sm:$0xff] %vm317, %v2848
    %2851 = vst.msk [vmem:[%s3 + $0x8] sm:$0x3f] %vm2575, %v2849
    // Predicated region
    $region22: #{audio_encoder_forward.1} parent=1 // pred_check
      _
    $region23: #{audio_encoder_forward.1} parent=1 // pred_check_branch
      %2853 = sbr.rel (0) target = $region25
    $region24: #{audio_encoder_forward.1} parent=1 // pred_region
      _
    $region25: #{audio_encoder_forward.1} parent=1 // pred_fallthru
      _
    // Predicated region
    $region26: #{audio_encoder_forward.1} parent=1 // pred_check
      _
    $region27: #{audio_encoder_forward.1} parent=1 // pred_check_branch
      %2855 = sbr.rel (0) target = $region29
    $region28: #{audio_encoder_forward.1} parent=1 // pred_region
      _
    $region29: #{audio_encoder_forward.1} parent=1 // pred_fallthru
      _
    %2856 = vsyncpa [#allocation3], 1
    %2857 = vsyncpa [#allocation5], 1

</llo_original>
